<compile_context>
chip_gen: v7x
topology: tpu7x:2x2x1
jax: 0.10.0
libtpu: 0.0.40
codegen_flags: <defaults>
</compile_context>

<pallas_src>
import functools

import jax
import jax.numpy as jnp
from jax import lax
from jax.experimental import pallas as pl
from jax.experimental.pallas import tpu as pltpu

_NEG = -1e30  # bias for padded classes: never wins softmax / argmax


def _round_up(x, m):
    return ((x + m - 1) // m) * m


def _pad_axis(x, axis, new_size, value=0):
    pad = new_size - x.shape[axis]
    if pad <= 0:
        return x
    widths = [(0, 0)] * x.ndim
    widths[axis] = (0, pad)
    return jnp.pad(x, widths, constant_values=value)


def _auto_tile_t(requested, trunc, l_block, d, h_pad, c_pad, n_hid_blk, feat_itemsize):
    """Largest tile_t (multiple of 16, <= requested / trunc-capped) whose per-step
    VMEM footprint fits a conservative ~24 MiB budget (safe on v5e/v6e/v7x together
    with the explicit 32 MiB scoped limit passed to the kernel)."""
    budget = 24 * 1024 * 1024
    tile = min(requested, _round_up(trunc, 16))
    tile = max(16, (tile // 16) * 16)

    def footprint(tt):
        feats = 2 * l_block * tt * d * feat_itemsize           # double-buffered stream
        prob = 2 * tt * c_pad * 2                               # bf16 logp, 2 buffers
        interm = 4 * tt * max(d, h_pad, c_pad) * 4              # x / h / logits / temps
        weights = 2 * 2 * (d * h_pad + n_hid_blk * h_pad * h_pad + h_pad * c_pad)
        return feats + prob + interm + weights

    while tile > 16 and footprint(tile) > budget:
        tile = max(16, ((tile // 2) // 16) * 16)
    return tile


def _classifier_kernel(w_sel_ref,              # SMEM (l_block,) f32
                       feats_ref,              # VMEM (1, l_block, TILE_T, D) f32/bf16
                       labels_ref,             # VMEM (1, TILE_T, 1) int32
                       mask_ref,               # VMEM (1, TILE_T, 1) f32
                       w_in_ref, b_in_ref,     # (D, Hp) bf16, (1, Hp) f32
                       w_hid_ref, b_hid_ref,   # (nL, Hp, Hp) bf16, (nL, 1, Hp) f32
                       w_out_ref, b_out_ref,   # (Hp, Cp) bf16, (1, Cp) f32
                       prob_ref,               # VMEM (1, TILE_T, Cp) bf16
                       stats_ref,              # VMEM (1, 1, 1, 128) f32
                       *, n_layer_block, num_hidden_layers, use_relu):
    # ---- weighted layer selection: value-level f32 reduction over the L slab ------
    # (in-vreg/temporary accumulation; no per-layer VMEM read-modify-write)
    x = feats_ref[0, 0].astype(jnp.float32) * w_sel_ref[0]
    for l in range(1, n_layer_block):
        x = x + feats_ref[0, l].astype(jnp.float32) * w_sel_ref[l]

    # ---- MLP: bf16 MXU feeds, f32 accumulation; dropout == identity (eval) --------
    def act(v):
        return jnp.maximum(v, 0.0) if use_relu else v

    h = jnp.dot(x.astype(jnp.bfloat16), w_in_ref[...],
                preferred_element_type=jnp.float32)
    h = act(h + b_in_ref[...])
    for i in range(num_hidden_layers):                 # static unroll (small)
        h = jnp.dot(h.astype(jnp.bfloat16), w_hid_ref[i],
                    preferred_element_type=jnp.float32)
        h = act(h + b_hid_ref[i])
    logits = jnp.dot(h.astype(jnp.bfloat16), w_out_ref[...],
                     preferred_element_type=jnp.float32) + b_out_ref[...]

    # ---- log-softmax over the lane-dense padded class dim -------------------------
    # padded classes sit at ~-1e30 -> exp() == 0, never argmax
    m = jnp.max(logits, axis=-1, keepdims=True)
    z = logits - m
    lse = jnp.log(jnp.sum(jnp.exp(z), axis=-1, keepdims=True))
    logp = z - lse                                      # (TILE_T, Cp) f32
    prob_ref[0] = logp.astype(prob_ref.dtype)           # bf16 store (halves this write)

    # ---- masked CE numerator + correct/valid statistics (per-tile partial sums) ---
    tile_t, c_pad = logp.shape
    col = lax.broadcasted_iota(jnp.int32, (tile_t, c_pad), 1)
    labels = labels_ref[0]                              # (TILE_T, 1) int32
    mask = mask_ref[0]                                  # (TILE_T, 1) f32
    valid = mask > 0.0

    onehot = (col == labels).astype(jnp.float32)        # gather logp[n, label[n]]
    picked = jnp.sum(logp * onehot, axis=-1, keepdims=True)
    is_max = logp == jnp.max(logp, axis=-1, keepdims=True)
    pred = jnp.min(jnp.where(is_max, col, c_pad), axis=-1, keepdims=True)  # first max

    # where-masking (not mask-multiply): boundary-tile rows may hold garbage (Pallas
    # partial-block reads are unspecified) and must never leak NaN/Inf into the sums.
    picked_sum = jnp.sum(jnp.where(valid, picked, 0.0))
    correct_sum = jnp.sum(jnp.where(valid & (pred == labels), 1.0, 0.0))
    valid_sum = jnp.sum(mask)

    lane = lax.broadcasted_iota(jnp.int32, (1, 128), 1)
    stats_ref[0, 0] = (jnp.where(lane == 0, picked_sum, 0.0)
                       + jnp.where(lane == 1, correct_sum, 0.0)
                       + jnp.where(lane == 2, valid_sum, 0.0))


def linear_classifier_forward(features, labels, label_mask, params,
                              select_hidden="weighted_sum_norm",
                              linear=False, tile_t=2048):
    """features: (B, L, T, D) or (B, T, D); labels / label_mask: (B, T_lab).
    Returns (loss, log_probs (B, trunc, C) bf16, correct, valid), trunc = min(T, T_lab)."""
    if features.ndim == 3:                              # no layer-selection branch
        features = features[:, None, :, :]
        forced_single = 0
    else:
        forced_single = None

    B, L, T, D = features.shape
    H = params["w_in"].shape[1]
    C = params["w_out"].shape[1]
    n_hidden = params["w_hid"].shape[0]

    # --- feature-selection weights --------------------------------------------------
    single_layer = forced_single
    if forced_single is not None:
        w_sel = jnp.ones((1,), jnp.float32)
    elif select_hidden == "weighted_sum_norm":
        w_sel = jax.nn.softmax(params["weight"][:L].astype(jnp.float32))
    elif select_hidden == "weighted_sum":
        w_sel = params["weight"][:L].astype(jnp.float32)
    elif select_hidden == "average":
        w_sel = jnp.full((L,), 1.0 / L, jnp.float32)
    elif select_hidden == "last":
        single_layer, w_sel = L - 1, jnp.ones((1,), jnp.float32)   # read 1 layer only
    elif select_hidden == "first":
        single_layer, w_sel = 0, jnp.ones((1,), jnp.float32)       # read 1 layer only
    else:
        raise NotImplementedError("Feature selection mode not supported!")
    l_block = 1 if single_layer is not None else L

    # --- truncate labels/mask only (features are indexed in place, never copied) ----
    trunc = min(T, labels.shape[-1])
    labels = labels[:, :trunc].astype(jnp.int32)
    label_mask = label_mask[:, :trunc].astype(jnp.float32)

    # --- token tiling ----------------------------------------------------------------
    h_pad = _round_up(H, 128)
    c_pad = _round_up(C, 128)
    n_hid_blk = max(n_hidden, 1)
    feat_isz = jnp.dtype(features.dtype).itemsize
    tile_t = _auto_tile_t(tile_t, trunc, l_block, D, h_pad, c_pad, n_hid_blk, feat_isz)
    n_t = -(-trunc // tile_t)
    if B * n_t < 2 and tile_t > 16:            # keep both v7x TensorCores busy
        tile_t = max(16, ((tile_t // 2) // 16) * 16)
        n_t = -(-trunc // tile_t)
    t_pad = n_t * tile_t

    # labels/mask are tiny: pad them (mask == 0 marks padded tokens invalid)
    labels3 = _pad_axis(labels, 1, t_pad).reshape(B, t_pad, 1)
    mask3 = _pad_axis(label_mask, 1, t_pad).reshape(B, t_pad, 1)

    # --- tiny, resident weights: MXU / lane-friendly padding --------------------------
    w_in = _pad_axis(params["w_in"].astype(jnp.float32), 1, h_pad).astype(jnp.bfloat16)
    b_in = _pad_axis(params["b_in"].astype(jnp.float32), 0, h_pad).reshape(1, h_pad)
    if n_hidden > 0:
        w_hid = _pad_axis(_pad_axis(params["w_hid"].astype(jnp.float32), 1, h_pad),
                          2, h_pad).astype(jnp.bfloat16)
        b_hid = _pad_axis(params["b_hid"].astype(jnp.float32), 1, h_pad
                          ).reshape(n_hidden, 1, h_pad)
    else:  # dummy block; the in-kernel loop runs zero times
        w_hid = jnp.zeros((1, h_pad, h_pad), jnp.bfloat16)
        b_hid = jnp.zeros((1, 1, h_pad), jnp.float32)
    w_out = _pad_axis(_pad_axis(params["w_out"].astype(jnp.float32), 0, h_pad),
                      1, c_pad).astype(jnp.bfloat16)
    b_out = jnp.concatenate(
        [params["b_out"].astype(jnp.float32),
         jnp.full((c_pad - C,), _NEG, jnp.float32)]).reshape(1, c_pad)

    # --- BlockSpecs --------------------------------------------------------------------
    if single_layer is None:
        feats_spec = pl.BlockSpec((1, L, tile_t, D), lambda b, t: (b, 0, t, 0))
    else:
        feats_spec = pl.BlockSpec((1, 1, tile_t, D),
                                  lambda b, t, _l=single_layer: (b, _l, t, 0))
    const2 = lambda b, t: (0, 0)
    const3 = lambda b, t: (0, 0, 0)

    kernel = functools.partial(_classifier_kernel, n_layer_block=l_block,
                               num_hidden_layers=n_hidden, use_relu=not linear)

    flops = 2 * B * trunc * (l_block * D + D * h_pad
                             + n_hidden * h_pad * h_pad + h_pad * c_pad)
    bytes_accessed = (B * l_block * t_pad * D * feat_isz + B * trunc * c_pad * 2)
    cost = pl.CostEstimate(flops=int(flops),
                           transcendentals=int(B * trunc * c_pad),
                           bytes_accessed=int(bytes_accessed))

    prob_pad, stats = pl.pallas_call(
        kernel,
        out_shape=(
            jax.ShapeDtypeStruct((B, trunc, c_pad), jnp.bfloat16),
            jax.ShapeDtypeStruct((B, n_t, 1, 128), jnp.float32),
        ),
        grid=(B, n_t),
        in_specs=[
            pl.BlockSpec(memory_space=pltpu.MemorySpace.SMEM),             # w_sel
            feats_spec,                                                    # features
            pl.BlockSpec((1, tile_t, 1), lambda b, t: (b, t, 0)),          # labels
            pl.BlockSpec((1, tile_t, 1), lambda b, t: (b, t, 0)),          # mask
            # Constant-index blocks are DMA'd only once (index never changes);
            # pl.Buffered(1) would merely trim ~0.15 MiB, so it is omitted.
            pl.BlockSpec((D, h_pad), const2),                              # w_in
            pl.BlockSpec((1, h_pad), const2),                              # b_in
            pl.BlockSpec((n_hid_blk, h_pad, h_pad), const3),               # w_hid
            pl.BlockSpec((n_hid_blk, 1, h_pad), const3),                   # b_hid
            pl.BlockSpec((h_pad, c_pad), const2),                          # w_out
            pl.BlockSpec((1, c_pad), const2),                              # b_out
        ],
        out_specs=(
            pl.BlockSpec((1, tile_t, c_pad), lambda b, t: (b, t, 0)),
            pl.BlockSpec((1, 1, 1, 128), lambda b, t: (b, t, 0, 0)),
        ),
        compiler_params=pltpu.CompilerParams(
            dimension_semantics=("parallel", "parallel"),
            vmem_limit_bytes=32 * 1024 * 1024),   # raises v5e's 16 MiB default; <= v7x phys
        cost_estimate=cost,
    )(w_sel, features, labels3, mask3, w_in, b_in, w_hid, b_hid, w_out, b_out)

    # Reduce per-tile partials (f32 exact while valid tokens < 2^24); divide once,
    # guarded against an all-masked input.
    picked_sum = jnp.sum(stats[..., 0])
    correct = jnp.sum(stats[..., 1])
    valid = jnp.sum(stats[..., 2])
    loss = -picked_sum / jnp.maximum(valid, 1.0)
    prob = prob_pad[..., :C]                      # drop padded classes only
    return loss, prob, correct.astype(jnp.int32), valid.astype(jnp.int32)


def init_params(key, input_dim, hidden_size, class_num, n_layers):
    """Deterministic parameter init (uniform, like torch.nn.Linear defaults).
    Weights are stored as (in, out) so the forward computes x @ W + b."""
    ks = jax.random.split(key, n_layers + 2)

    def lin(k, fan_in, fan_out):
        kw, kb = jax.random.split(k)
        bound = 1.0 / jnp.sqrt(fan_in)
        w = jax.random.uniform(kw, (fan_in, fan_out), jnp.float32, -bound, bound)
        b = jax.random.uniform(kb, (fan_out,), jnp.float32, -bound, bound)
        return w, b

    w_in, b_in = lin(ks[0], input_dim, hidden_size)
    w_hid_list, b_hid_list = [], []
    for i in range(n_layers):
        w, b = lin(ks[1 + i], hidden_size, hidden_size)
        w_hid_list.append(w)
        b_hid_list.append(b)
    w_out, b_out = lin(ks[n_layers + 1], hidden_size, class_num)
    return {
        "weight": jnp.ones((12,), jnp.float32) / 12.0,   # nn.Parameter(torch.ones(12)/12)
        "w_in": w_in, "b_in": b_in,
        "w_hid": (jnp.stack(w_hid_list) if n_layers > 0
                  else jnp.zeros((0, hidden_size, hidden_size), jnp.float32)),
        "b_hid": (jnp.stack(b_hid_list) if n_layers > 0
                  else jnp.zeros((0, hidden_size), jnp.float32)),
        "w_out": w_out, "b_out": b_out,
    }


def _reference_forward(features, labels, label_mask, params, select_hidden):
    """Pure-JAX reference of the torch forward (eval mode), using the same
    bf16-matmul / f32-accumulation recipe as the kernel."""
    B, L, T, D = features.shape
    w = params["weight"][:L].astype(jnp.float32)
    if select_hidden == "weighted_sum_norm":
        w = jax.nn.softmax(w)
    x = jnp.einsum("l,bltd->btd", w, features.astype(jnp.float32))
    trunc = min(T, labels.shape[-1])
    x = x[:, :trunc]
    labels = labels[:, :trunc]
    mask = label_mask[:, :trunc].astype(jnp.float32)

    def dot(a, w_):
        return jnp.dot(a.astype(jnp.bfloat16), w_.astype(jnp.bfloat16),
                       preferred_element_type=jnp.float32)

    h = jnp.maximum(dot(x, params["w_in"]) + params["b_in"], 0.0)
    for i in range(params["w_hid"].shape[0]):
        h = jnp.maximum(dot(h, params["w_hid"][i]) + params["b_hid"][i], 0.0)
    logits = dot(h, params["w_out"]) + params["b_out"]
    logp = jax.nn.log_softmax(logits, axis=-1)
    picked = jnp.take_along_axis(logp, labels[..., None].astype(jnp.int32), axis=-1)[..., 0]
    valid = mask.sum()
    loss = -(picked * mask).sum() / jnp.maximum(valid, 1.0)
    correct = ((jnp.argmax(logp, axis=-1) == labels).astype(jnp.float32) * mask).sum()
    return loss, logp, correct, valid


if __name__ == "__main__":
    B, L, T, D = 2, 12, 500, 128      # T=500: exercises the ragged (masked) last tile
    H, C, N_HID = 128, 10, 2          # hidden_size, class_num, dconfig['layers']

    key = jax.random.PRNGKey(0)
    k_feat, k_lab, k_mask, k_par = jax.random.split(key, 4)

    # f32 features straight from the upstream model: the kernel reads them as-is
    # (no wrapper-side cast / slice / pad pass over the big tensor).
    features = jax.random.normal(k_feat, (B, L, T, D), jnp.float32)
    labels = jax.random.randint(k_lab, (B, T), 0, C, jnp.int32)
    label_mask = (jax.random.uniform(k_mask, (B, T)) > 0.2).astype(jnp.int32)
    label_mask = label_mask.at[:, 0].set(1)      # guarantee >= 1 valid frame

    params = init_params(k_par, D, H, C, N_HID)

    loss, prob, correct, valid = linear_classifier_forward(
        features, labels, label_mask, params,
        select_hidden="weighted_sum_norm", tile_t=256)   # 256 -> >1 token tile + tail
    jax.block_until_ready((loss, prob, correct, valid))

    # Light correctness check against a pure-JAX reference (same precision recipe).
    ref_loss, _, ref_correct, ref_valid = _reference_forward(
        features, labels, label_mask, params, "weighted_sum_norm")

    assert prob.shape == (B, T, C)
    assert bool(jnp.isfinite(loss))
    assert int(valid) == int(ref_valid)
    assert abs(float(loss) - float(ref_loss)) <= 1e-2 + 1e-2 * abs(float(ref_loss))
    assert abs(int(correct) - int(ref_correct)) <= 5
    print("KERNEL_OK")
</pallas_src>

<mosaic_0001>
module attributes {stable_mosaic.version = 11 : i64} {
  func.func @_classifier_kernel(%arg0: i32, %arg1: i32, %arg2: memref<12xf32, #tpu.memory_space<smem>>, %arg3: memref<1x12x256x128xf32, #tpu.memory_space<vmem>>, %arg4: memref<1x256x1xi32, #tpu.memory_space<vmem>>, %arg5: memref<1x256x1xf32, #tpu.memory_space<vmem>>, %arg6: memref<128x128xbf16, #tpu.memory_space<vmem>>, %arg7: memref<1x128xf32, #tpu.memory_space<vmem>>, %arg8: memref<2x128x128xbf16, #tpu.memory_space<vmem>>, %arg9: memref<2x1x128xf32, #tpu.memory_space<vmem>>, %arg10: memref<128x128xbf16, #tpu.memory_space<vmem>>, %arg11: memref<1x128xf32, #tpu.memory_space<vmem>>, %arg12: memref<1x256x128xbf16, #tpu.memory_space<vmem>>, %arg13: memref<1x1x1x128xf32, #tpu.memory_space<vmem>>) attributes {dimension_semantics = [#tpu.dimension_semantics<parallel>, #tpu.dimension_semantics<parallel>], iteration_bounds = array<i64: 2, 2>, scalar_prefetch = 0 : i64, scratch_operands = 0 : i64, tpu.core_type = #tpu.core_type<tc>, window_params = [{transform_indices = @transform_0, window_bounds = array<i64: 12>}, {transform_indices = @transform_1, window_bounds = array<i64: 1, 12, 256, 128>}, {transform_indices = @transform_2, window_bounds = array<i64: 1, 256, 1>}, {transform_indices = @transform_3, window_bounds = array<i64: 1, 256, 1>}, {pipeline_mode = #tpu.pipeline_mode<synchronous>, transform_indices = @transform_4, window_bounds = array<i64: 128, 128>}, {pipeline_mode = #tpu.pipeline_mode<synchronous>, transform_indices = @transform_5, window_bounds = array<i64: 1, 128>}, {pipeline_mode = #tpu.pipeline_mode<synchronous>, transform_indices = @transform_6, window_bounds = array<i64: 2, 128, 128>}, {pipeline_mode = #tpu.pipeline_mode<synchronous>, transform_indices = @transform_7, window_bounds = array<i64: 2, 1, 128>}, {pipeline_mode = #tpu.pipeline_mode<synchronous>, transform_indices = @transform_8, window_bounds = array<i64: 128, 128>}, {pipeline_mode = #tpu.pipeline_mode<synchronous>, transform_indices = @transform_9, window_bounds = array<i64: 1, 128>}, {transform_indices = @transform_10, window_bounds = array<i64: 1, 256, 128>}, {transform_indices = @transform_11, window_bounds = array<i64: 1, 1, 1, 128>}]} {
    %c0 = arith.constant 0 : index
    %c0_0 = arith.constant 0 : index
    %c0_1 = arith.constant 0 : index
    %c0_2 = arith.constant 0 : index
    %0 = vector.load %arg3[%c0, %c0_0, %c0_1, %c0_2] : memref<1x12x256x128xf32, #tpu.memory_space<vmem>>, vector<1x1x256x128xf32>
    %1 = vector.shape_cast %0 : vector<1x1x256x128xf32> to vector<256x128xf32>
    %c0_3 = arith.constant 0 : index
    %2 = memref.load %arg2[%c0_3] : memref<12xf32, #tpu.memory_space<smem>>
    %3 = vector.broadcast %2 : f32 to vector<256x128xf32>
    %4 = arith.mulf %1, %3 : vector<256x128xf32>
    %c0_4 = arith.constant 0 : index
    %c1 = arith.constant 1 : index
    %c0_5 = arith.constant 0 : index
    %c0_6 = arith.constant 0 : index
    %5 = vector.load %arg3[%c0_4, %c1, %c0_5, %c0_6] : memref<1x12x256x128xf32, #tpu.memory_space<vmem>>, vector<1x1x256x128xf32>
    %6 = vector.shape_cast %5 : vector<1x1x256x128xf32> to vector<256x128xf32>
    %c1_7 = arith.constant 1 : index
    %7 = memref.load %arg2[%c1_7] : memref<12xf32, #tpu.memory_space<smem>>
    %8 = vector.broadcast %7 : f32 to vector<256x128xf32>
    %9 = arith.mulf %6, %8 : vector<256x128xf32>
    %10 = arith.addf %4, %9 : vector<256x128xf32>
    %c0_8 = arith.constant 0 : index
    %c2 = arith.constant 2 : index
    %c0_9 = arith.constant 0 : index
    %c0_10 = arith.constant 0 : index
    %11 = vector.load %arg3[%c0_8, %c2, %c0_9, %c0_10] : memref<1x12x256x128xf32, #tpu.memory_space<vmem>>, vector<1x1x256x128xf32>
    %12 = vector.shape_cast %11 : vector<1x1x256x128xf32> to vector<256x128xf32>
    %c2_11 = arith.constant 2 : index
    %13 = memref.load %arg2[%c2_11] : memref<12xf32, #tpu.memory_space<smem>>
    %14 = vector.broadcast %13 : f32 to vector<256x128xf32>
    %15 = arith.mulf %12, %14 : vector<256x128xf32>
    %16 = arith.addf %10, %15 : vector<256x128xf32>
    %c0_12 = arith.constant 0 : index
    %c3 = arith.constant 3 : index
    %c0_13 = arith.constant 0 : index
    %c0_14 = arith.constant 0 : index
    %17 = vector.load %arg3[%c0_12, %c3, %c0_13, %c0_14] : memref<1x12x256x128xf32, #tpu.memory_space<vmem>>, vector<1x1x256x128xf32>
    %18 = vector.shape_cast %17 : vector<1x1x256x128xf32> to vector<256x128xf32>
    %c3_15 = arith.constant 3 : index
    %19 = memref.load %arg2[%c3_15] : memref<12xf32, #tpu.memory_space<smem>>
    %20 = vector.broadcast %19 : f32 to vector<256x128xf32>
    %21 = arith.mulf %18, %20 : vector<256x128xf32>
    %22 = arith.addf %16, %21 : vector<256x128xf32>
    %c0_16 = arith.constant 0 : index
    %c4 = arith.constant 4 : index
    %c0_17 = arith.constant 0 : index
    %c0_18 = arith.constant 0 : index
    %23 = vector.load %arg3[%c0_16, %c4, %c0_17, %c0_18] : memref<1x12x256x128xf32, #tpu.memory_space<vmem>>, vector<1x1x256x128xf32>
    %24 = vector.shape_cast %23 : vector<1x1x256x128xf32> to vector<256x128xf32>
    %c4_19 = arith.constant 4 : index
    %25 = memref.load %arg2[%c4_19] : memref<12xf32, #tpu.memory_space<smem>>
    %26 = vector.broadcast %25 : f32 to vector<256x128xf32>
    %27 = arith.mulf %24, %26 : vector<256x128xf32>
    %28 = arith.addf %22, %27 : vector<256x128xf32>
    %c0_20 = arith.constant 0 : index
    %c5 = arith.constant 5 : index
    %c0_21 = arith.constant 0 : index
    %c0_22 = arith.constant 0 : index
    %29 = vector.load %arg3[%c0_20, %c5, %c0_21, %c0_22] : memref<1x12x256x128xf32, #tpu.memory_space<vmem>>, vector<1x1x256x128xf32>
    %30 = vector.shape_cast %29 : vector<1x1x256x128xf32> to vector<256x128xf32>
    %c5_23 = arith.constant 5 : index
    %31 = memref.load %arg2[%c5_23] : memref<12xf32, #tpu.memory_space<smem>>
    %32 = vector.broadcast %31 : f32 to vector<256x128xf32>
    %33 = arith.mulf %30, %32 : vector<256x128xf32>
    %34 = arith.addf %28, %33 : vector<256x128xf32>
    %c0_24 = arith.constant 0 : index
    %c6 = arith.constant 6 : index
    %c0_25 = arith.constant 0 : index
    %c0_26 = arith.constant 0 : index
    %35 = vector.load %arg3[%c0_24, %c6, %c0_25, %c0_26] : memref<1x12x256x128xf32, #tpu.memory_space<vmem>>, vector<1x1x256x128xf32>
    %36 = vector.shape_cast %35 : vector<1x1x256x128xf32> to vector<256x128xf32>
    %c6_27 = arith.constant 6 : index
    %37 = memref.load %arg2[%c6_27] : memref<12xf32, #tpu.memory_space<smem>>
    %38 = vector.broadcast %37 : f32 to vector<256x128xf32>
    %39 = arith.mulf %36, %38 : vector<256x128xf32>
    %40 = arith.addf %34, %39 : vector<256x128xf32>
    %c0_28 = arith.constant 0 : index
    %c7 = arith.constant 7 : index
    %c0_29 = arith.constant 0 : index
    %c0_30 = arith.constant 0 : index
    %41 = vector.load %arg3[%c0_28, %c7, %c0_29, %c0_30] : memref<1x12x256x128xf32, #tpu.memory_space<vmem>>, vector<1x1x256x128xf32>
    %42 = vector.shape_cast %41 : vector<1x1x256x128xf32> to vector<256x128xf32>
    %c7_31 = arith.constant 7 : index
    %43 = memref.load %arg2[%c7_31] : memref<12xf32, #tpu.memory_space<smem>>
    %44 = vector.broadcast %43 : f32 to vector<256x128xf32>
    %45 = arith.mulf %42, %44 : vector<256x128xf32>
    %46 = arith.addf %40, %45 : vector<256x128xf32>
    %c0_32 = arith.constant 0 : index
    %c8 = arith.constant 8 : index
    %c0_33 = arith.constant 0 : index
    %c0_34 = arith.constant 0 : index
    %47 = vector.load %arg3[%c0_32, %c8, %c0_33, %c0_34] : memref<1x12x256x128xf32, #tpu.memory_space<vmem>>, vector<1x1x256x128xf32>
    %48 = vector.shape_cast %47 : vector<1x1x256x128xf32> to vector<256x128xf32>
    %c8_35 = arith.constant 8 : index
    %49 = memref.load %arg2[%c8_35] : memref<12xf32, #tpu.memory_space<smem>>
    %50 = vector.broadcast %49 : f32 to vector<256x128xf32>
    %51 = arith.mulf %48, %50 : vector<256x128xf32>
    %52 = arith.addf %46, %51 : vector<256x128xf32>
    %c0_36 = arith.constant 0 : index
    %c9 = arith.constant 9 : index
    %c0_37 = arith.constant 0 : index
    %c0_38 = arith.constant 0 : index
    %53 = vector.load %arg3[%c0_36, %c9, %c0_37, %c0_38] : memref<1x12x256x128xf32, #tpu.memory_space<vmem>>, vector<1x1x256x128xf32>
    %54 = vector.shape_cast %53 : vector<1x1x256x128xf32> to vector<256x128xf32>
    %c9_39 = arith.constant 9 : index
    %55 = memref.load %arg2[%c9_39] : memref<12xf32, #tpu.memory_space<smem>>
    %56 = vector.broadcast %55 : f32 to vector<256x128xf32>
    %57 = arith.mulf %54, %56 : vector<256x128xf32>
    %58 = arith.addf %52, %57 : vector<256x128xf32>
    %c0_40 = arith.constant 0 : index
    %c10 = arith.constant 10 : index
    %c0_41 = arith.constant 0 : index
    %c0_42 = arith.constant 0 : index
    %59 = vector.load %arg3[%c0_40, %c10, %c0_41, %c0_42] : memref<1x12x256x128xf32, #tpu.memory_space<vmem>>, vector<1x1x256x128xf32>
    %60 = vector.shape_cast %59 : vector<1x1x256x128xf32> to vector<256x128xf32>
    %c10_43 = arith.constant 10 : index
    %61 = memref.load %arg2[%c10_43] : memref<12xf32, #tpu.memory_space<smem>>
    %62 = vector.broadcast %61 : f32 to vector<256x128xf32>
    %63 = arith.mulf %60, %62 : vector<256x128xf32>
    %64 = arith.addf %58, %63 : vector<256x128xf32>
    %c0_44 = arith.constant 0 : index
    %c11 = arith.constant 11 : index
    %c0_45 = arith.constant 0 : index
    %c0_46 = arith.constant 0 : index
    %65 = vector.load %arg3[%c0_44, %c11, %c0_45, %c0_46] : memref<1x12x256x128xf32, #tpu.memory_space<vmem>>, vector<1x1x256x128xf32>
    %66 = vector.shape_cast %65 : vector<1x1x256x128xf32> to vector<256x128xf32>
    %c11_47 = arith.constant 11 : index
    %67 = memref.load %arg2[%c11_47] : memref<12xf32, #tpu.memory_space<smem>>
    %68 = vector.broadcast %67 : f32 to vector<256x128xf32>
    %69 = arith.mulf %66, %68 : vector<256x128xf32>
    %70 = arith.addf %64, %69 : vector<256x128xf32>
    %71 = arith.truncf %70 : vector<256x128xf32> to vector<256x128xbf16>
    %c0_48 = arith.constant 0 : index
    %c0_49 = arith.constant 0 : index
    %72 = vector.load %arg6[%c0_48, %c0_49] : memref<128x128xbf16, #tpu.memory_space<vmem>>, vector<128x128xbf16>
    %cst = arith.constant dense<0.000000e+00> : vector<256x128xf32>
    %73 = tpu.matmul %71, %72, %cst {dimension_numbers = #tpu.dot_dimension_numbers<[1], [0], [0], [1], [0, 0, 1, 1], [], []>} : vector<256x128xbf16>, vector<128x128xbf16>, vector<256x128xf32> -> vector<256x128xf32>
    %c0_50 = arith.constant 0 : index
    %c0_51 = arith.constant 0 : index
    %74 = vector.load %arg7[%c0_50, %c0_51] : memref<1x128xf32, #tpu.memory_space<vmem>>, vector<1x128xf32>
    %75 = vector.broadcast %74 : vector<1x128xf32> to vector<256x128xf32>
    %76 = arith.addf %73, %75 : vector<256x128xf32>
    %cst_52 = arith.constant 0.000000e+00 : f32
    %77 = vector.broadcast %cst_52 : f32 to vector<256x128xf32>
    %78 = arith.maximumf %76, %77 : vector<256x128xf32>
    %79 = arith.truncf %78 : vector<256x128xf32> to vector<256x128xbf16>
    %c0_53 = arith.constant 0 : index
    %c0_54 = arith.constant 0 : index
    %c0_55 = arith.constant 0 : index
    %80 = vector.load %arg8[%c0_53, %c0_54, %c0_55] : memref<2x128x128xbf16, #tpu.memory_space<vmem>>, vector<1x128x128xbf16>
    %81 = vector.shape_cast %80 : vector<1x128x128xbf16> to vector<128x128xbf16>
    %cst_56 = arith.constant dense<0.000000e+00> : vector<256x128xf32>
    %82 = tpu.matmul %79, %81, %cst_56 {dimension_numbers = #tpu.dot_dimension_numbers<[1], [0], [0], [1], [0, 0, 1, 1], [], []>} : vector<256x128xbf16>, vector<128x128xbf16>, vector<256x128xf32> -> vector<256x128xf32>
    %c0_57 = arith.constant 0 : index
    %c0_58 = arith.constant 0 : index
    %c0_59 = arith.constant 0 : index
    %83 = vector.load %arg9[%c0_57, %c0_58, %c0_59] : memref<2x1x128xf32, #tpu.memory_space<vmem>>, vector<1x1x128xf32>
    %84 = vector.shape_cast %83 : vector<1x1x128xf32> to vector<1x128xf32>
    %85 = vector.broadcast %84 : vector<1x128xf32> to vector<256x128xf32>
    %86 = arith.addf %82, %85 : vector<256x128xf32>
    %cst_60 = arith.constant 0.000000e+00 : f32
    %87 = vector.broadcast %cst_60 : f32 to vector<256x128xf32>
    %88 = arith.maximumf %86, %87 : vector<256x128xf32>
    %89 = arith.truncf %88 : vector<256x128xf32> to vector<256x128xbf16>
    %c1_61 = arith.constant 1 : index
    %c0_62 = arith.constant 0 : index
    %c0_63 = arith.constant 0 : index
    %90 = vector.load %arg8[%c1_61, %c0_62, %c0_63] : memref<2x128x128xbf16, #tpu.memory_space<vmem>>, vector<1x128x128xbf16>
    %91 = vector.shape_cast %90 : vector<1x128x128xbf16> to vector<128x128xbf16>
    %cst_64 = arith.constant dense<0.000000e+00> : vector<256x128xf32>
    %92 = tpu.matmul %89, %91, %cst_64 {dimension_numbers = #tpu.dot_dimension_numbers<[1], [0], [0], [1], [0, 0, 1, 1], [], []>} : vector<256x128xbf16>, vector<128x128xbf16>, vector<256x128xf32> -> vector<256x128xf32>
    %c1_65 = arith.constant 1 : index
    %c0_66 = arith.constant 0 : index
    %c0_67 = arith.constant 0 : index
    %93 = vector.load %arg9[%c1_65, %c0_66, %c0_67] : memref<2x1x128xf32, #tpu.memory_space<vmem>>, vector<1x1x128xf32>
    %94 = vector.shape_cast %93 : vector<1x1x128xf32> to vector<1x128xf32>
    %95 = vector.broadcast %94 : vector<1x128xf32> to vector<256x128xf32>
    %96 = arith.addf %92, %95 : vector<256x128xf32>
    %cst_68 = arith.constant 0.000000e+00 : f32
    %97 = vector.broadcast %cst_68 : f32 to vector<256x128xf32>
    %98 = arith.maximumf %96, %97 : vector<256x128xf32>
    %99 = arith.truncf %98 : vector<256x128xf32> to vector<256x128xbf16>
    %c0_69 = arith.constant 0 : index
    %c0_70 = arith.constant 0 : index
    %100 = vector.load %arg10[%c0_69, %c0_70] : memref<128x128xbf16, #tpu.memory_space<vmem>>, vector<128x128xbf16>
    %cst_71 = arith.constant dense<0.000000e+00> : vector<256x128xf32>
    %101 = tpu.matmul %99, %100, %cst_71 {dimension_numbers = #tpu.dot_dimension_numbers<[1], [0], [0], [1], [0, 0, 1, 1], [], []>} : vector<256x128xbf16>, vector<128x128xbf16>, vector<256x128xf32> -> vector<256x128xf32>
    %c0_72 = arith.constant 0 : index
    %c0_73 = arith.constant 0 : index
    %102 = vector.load %arg11[%c0_72, %c0_73] : memref<1x128xf32, #tpu.memory_space<vmem>>, vector<1x128xf32>
    %103 = vector.broadcast %102 : vector<1x128xf32> to vector<256x128xf32>
    %104 = arith.addf %101, %103 : vector<256x128xf32>
    %cst_74 = arith.constant dense<0xFF800000> : vector<256xf32>
    %105 = vector.multi_reduction <maximumf>, %104, %cst_74 [1] : vector<256x128xf32> to vector<256xf32>
    %106 = vector.shape_cast %105 : vector<256xf32> to vector<256x1xf32>
    %107 = vector.broadcast %106 : vector<256x1xf32> to vector<256x128xf32>
    %108 = arith.subf %104, %107 : vector<256x128xf32>
    %109 = math.exp %108 : vector<256x128xf32>
    %cst_75 = arith.constant dense<0.000000e+00> : vector<256xf32>
    %110 = vector.multi_reduction <add>, %109, %cst_75 [1] : vector<256x128xf32> to vector<256xf32>
    %111 = vector.shape_cast %110 : vector<256xf32> to vector<256x1xf32>
    %112 = math.log %111 : vector<256x1xf32>
    %113 = vector.broadcast %112 : vector<256x1xf32> to vector<256x128xf32>
    %114 = arith.subf %108, %113 : vector<256x128xf32>
    %115 = arith.truncf %114 : vector<256x128xf32> to vector<256x128xbf16>
    %c0_76 = arith.constant 0 : index
    %c0_77 = arith.constant 0 : index
    %c0_78 = arith.constant 0 : index
    %116 = vector.load %arg12[%c0_76, %c0_77, %c0_78] : memref<1x256x128xbf16, #tpu.memory_space<vmem>>, vector<1x256x128xbf16>
    %117 = vector.shape_cast %116 : vector<1x256x128xbf16> to vector<256x128xbf16>
    %118 = vector.shape_cast %115 : vector<256x128xbf16> to vector<1x256x128xbf16>
    tpu.vector_store %arg12[%c0_76, %c0_77, %c0_78], %118 {strides = array<i32>} : memref<1x256x128xbf16, #tpu.memory_space<vmem>>, vector<1x256x128xbf16>,
    %119 = tpu.iota {dimensions = array<i32: 1>} : vector<256x128xi32>
    %c0_79 = arith.constant 0 : index
    %c0_80 = arith.constant 0 : index
    %c0_81 = arith.constant 0 : index
    %120 = vector.load %arg4[%c0_79, %c0_80, %c0_81] : memref<1x256x1xi32, #tpu.memory_space<vmem>>, vector<1x256x1xi32>
    %121 = vector.shape_cast %120 : vector<1x256x1xi32> to vector<256x1xi32>
    %c0_82 = arith.constant 0 : index
    %c0_83 = arith.constant 0 : index
    %c0_84 = arith.constant 0 : index
    %122 = vector.load %arg5[%c0_82, %c0_83, %c0_84] : memref<1x256x1xf32, #tpu.memory_space<vmem>>, vector<1x256x1xf32>
    %123 = vector.shape_cast %122 : vector<1x256x1xf32> to vector<256x1xf32>
    %cst_85 = arith.constant 0.000000e+00 : f32
    %124 = vector.broadcast %cst_85 : f32 to vector<256x1xf32>
    %125 = arith.cmpf ogt, %123, %124 : vector<256x1xf32>
    %126 = vector.broadcast %121 : vector<256x1xi32> to vector<256x128xi32>
    %127 = arith.cmpi eq, %119, %126 : vector<256x128xi32>
    %128 = arith.extui %127 : vector<256x128xi1> to vector<256x128xi32>
    %129 = arith.sitofp %128 : vector<256x128xi32> to vector<256x128xf32>
    %130 = arith.mulf %114, %129 : vector<256x128xf32>
    %cst_86 = arith.constant dense<0.000000e+00> : vector<256xf32>
    %131 = vector.multi_reduction <add>, %130, %cst_86 [1] : vector<256x128xf32> to vector<256xf32>
    %132 = vector.shape_cast %131 : vector<256xf32> to vector<256x1xf32>
    %cst_87 = arith.constant dense<0xFF800000> : vector<256xf32>
    %133 = vector.multi_reduction <maximumf>, %114, %cst_87 [1] : vector<256x128xf32> to vector<256xf32>
    %134 = vector.shape_cast %133 : vector<256xf32> to vector<256x1xf32>
    %135 = vector.broadcast %134 : vector<256x1xf32> to vector<256x128xf32>
    %136 = arith.cmpf oeq, %114, %135 : vector<256x128xf32>
    %c128_i32 = arith.constant 128 : i32
    %137 = vector.broadcast %c128_i32 : i32 to vector<256x128xi32>
    %138 = arith.select %136, %119, %137 : vector<256x128xi1>, vector<256x128xi32>
    %cst_88 = arith.constant dense<2147483647> : vector<256xi32>
    %139 = vector.multi_reduction <minsi>, %138, %cst_88 [1] : vector<256x128xi32> to vector<256xi32>
    %140 = vector.shape_cast %139 : vector<256xi32> to vector<256x1xi32>
    %cst_89 = arith.constant 0.000000e+00 : f32
    %141 = vector.broadcast %cst_89 : f32 to vector<256x1xf32>
    %142 = arith.select %125, %132, %141 : vector<256x1xi1>, vector<256x1xf32>
    %143 = vector.shape_cast %142 : vector<256x1xf32> to vector<1x256x1xf32>
    %cst_90 = arith.constant dense<0.000000e+00> : vector<1xf32>
    %144 = vector.multi_reduction <add>, %143, %cst_90 [1, 2] : vector<1x256x1xf32> to vector<1xf32>
    %145 = vector.shape_cast %144 : vector<1xf32> to vector<1x1x1xf32>
    %146 = vector.extract %145[0, 0, 0] : f32 from vector<1x1x1xf32>
    %147 = arith.cmpi eq, %140, %121 : vector<256x1xi32>
    %148 = arith.andi %125, %147 : vector<256x1xi1>
    %cst_91 = arith.constant 1.000000e+00 : f32
    %cst_92 = arith.constant 0.000000e+00 : f32
    %149 = vector.broadcast %cst_91 : f32 to vector<256x1xf32>
    %150 = vector.broadcast %cst_92 : f32 to vector<256x1xf32>
    %151 = arith.select %148, %149, %150 : vector<256x1xi1>, vector<256x1xf32>
    %152 = vector.shape_cast %151 : vector<256x1xf32> to vector<1x256x1xf32>
    %cst_93 = arith.constant dense<0.000000e+00> : vector<1xf32>
    %153 = vector.multi_reduction <add>, %152, %cst_93 [1, 2] : vector<1x256x1xf32> to vector<1xf32>
    %154 = vector.shape_cast %153 : vector<1xf32> to vector<1x1x1xf32>
    %155 = vector.extract %154[0, 0, 0] : f32 from vector<1x1x1xf32>
    %156 = vector.shape_cast %123 : vector<256x1xf32> to vector<1x256x1xf32>
    %cst_94 = arith.constant dense<0.000000e+00> : vector<1xf32>
    %157 = vector.multi_reduction <add>, %156, %cst_94 [1, 2] : vector<1x256x1xf32> to vector<1xf32>
    %158 = vector.shape_cast %157 : vector<1xf32> to vector<1x1x1xf32>
    %159 = vector.extract %158[0, 0, 0] : f32 from vector<1x1x1xf32>
    %160 = tpu.iota {dimensions = array<i32: 1>} : vector<1x128xi32>
    %c0_i32 = arith.constant 0 : i32
    %161 = vector.broadcast %c0_i32 : i32 to vector<1x128xi32>
    %162 = arith.cmpi eq, %160, %161 : vector<1x128xi32>
    %cst_95 = arith.constant 0.000000e+00 : f32
    %163 = vector.broadcast %146 : f32 to vector<1x128xf32>
    %164 = vector.broadcast %cst_95 : f32 to vector<1x128xf32>
    %165 = arith.select %162, %163, %164 : vector<1x128xi1>, vector<1x128xf32>
    %c1_i32 = arith.constant 1 : i32
    %166 = vector.broadcast %c1_i32 : i32 to vector<1x128xi32>
    %167 = arith.cmpi eq, %160, %166 : vector<1x128xi32>
    %cst_96 = arith.constant 0.000000e+00 : f32
    %168 = vector.broadcast %155 : f32 to vector<1x128xf32>
    %169 = vector.broadcast %cst_96 : f32 to vector<1x128xf32>
    %170 = arith.select %167, %168, %169 : vector<1x128xi1>, vector<1x128xf32>
    %171 = arith.addf %165, %170 : vector<1x128xf32>
    %c2_i32 = arith.constant 2 : i32
    %172 = vector.broadcast %c2_i32 : i32 to vector<1x128xi32>
    %173 = arith.cmpi eq, %160, %172 : vector<1x128xi32>
    %cst_97 = arith.constant 0.000000e+00 : f32
    %174 = vector.broadcast %159 : f32 to vector<1x128xf32>
    %175 = vector.broadcast %cst_97 : f32 to vector<1x128xf32>
    %176 = arith.select %173, %174, %175 : vector<1x128xi1>, vector<1x128xf32>
    %177 = arith.addf %171, %176 : vector<1x128xf32>
    %c0_98 = arith.constant 0 : index
    %c0_99 = arith.constant 0 : index
    %c0_100 = arith.constant 0 : index
    %c0_101 = arith.constant 0 : index
    %178 = vector.load %arg13[%c0_98, %c0_99, %c0_100, %c0_101] : memref<1x1x1x128xf32, #tpu.memory_space<vmem>>, vector<1x1x1x128xf32>
    %179 = vector.shape_cast %178 : vector<1x1x1x128xf32> to vector<1x128xf32>
    %180 = vector.shape_cast %177 : vector<1x128xf32> to vector<1x1x1x128xf32>
    tpu.vector_store %arg13[%c0_98, %c0_99, %c0_100, %c0_101], %180 {strides = array<i32>} : memref<1x1x1x128xf32, #tpu.memory_space<vmem>>, vector<1x1x1x128xf32>,
    return
  }
  func.func @transform_0(%arg0: i32, %arg1: i32) -> i32 {
    %c0_i32 = arith.constant 0 : i32
    %c0_i32_0 = arith.constant 0 : i32
    return %c0_i32 : i32
  }
  func.func @transform_1(%arg0: i32, %arg1: i32) -> (i32, i32, i32, i32) {
    %c0_i32 = arith.constant 0 : i32
    %c0_i32_0 = arith.constant 0 : i32
    %c0_i32_1 = arith.constant 0 : i32
    return %arg0, %c0_i32, %arg1, %c0_i32_0 : i32, i32, i32, i32
  }
  func.func @transform_2(%arg0: i32, %arg1: i32) -> (i32, i32, i32) {
    %c0_i32 = arith.constant 0 : i32
    %c0_i32_0 = arith.constant 0 : i32
    return %arg0, %arg1, %c0_i32 : i32, i32, i32
  }
  func.func @transform_3(%arg0: i32, %arg1: i32) -> (i32, i32, i32) {
    %c0_i32 = arith.constant 0 : i32
    %c0_i32_0 = arith.constant 0 : i32
    return %arg0, %arg1, %c0_i32 : i32, i32, i32
  }
  func.func @transform_4(%arg0: i32, %arg1: i32) -> (i32, i32) {
    %c0_i32 = arith.constant 0 : i32
    %c0_i32_0 = arith.constant 0 : i32
    %c0_i32_1 = arith.constant 0 : i32
    return %c0_i32, %c0_i32_0 : i32, i32
  }
  func.func @transform_5(%arg0: i32, %arg1: i32) -> (i32, i32) {
    %c0_i32 = arith.constant 0 : i32
    %c0_i32_0 = arith.constant 0 : i32
    %c0_i32_1 = arith.constant 0 : i32
    return %c0_i32, %c0_i32_0 : i32, i32
  }
  func.func @transform_6(%arg0: i32, %arg1: i32) -> (i32, i32, i32) {
    %c0_i32 = arith.constant 0 : i32
    %c0_i32_0 = arith.constant 0 : i32
    %c0_i32_1 = arith.constant 0 : i32
    %c0_i32_2 = arith.constant 0 : i32
    return %c0_i32, %c0_i32_0, %c0_i32_1 : i32, i32, i32
  }
  func.func @transform_7(%arg0: i32, %arg1: i32) -> (i32, i32, i32) {
    %c0_i32 = arith.constant 0 : i32
    %c0_i32_0 = arith.constant 0 : i32
    %c0_i32_1 = arith.constant 0 : i32
    %c0_i32_2 = arith.constant 0 : i32
    return %c0_i32, %c0_i32_0, %c0_i32_1 : i32, i32, i32
  }
  func.func @transform_8(%arg0: i32, %arg1: i32) -> (i32, i32) {
    %c0_i32 = arith.constant 0 : i32
    %c0_i32_0 = arith.constant 0 : i32
    %c0_i32_1 = arith.constant 0 : i32
    return %c0_i32, %c0_i32_0 : i32, i32
  }
  func.func @transform_9(%arg0: i32, %arg1: i32) -> (i32, i32) {
    %c0_i32 = arith.constant 0 : i32
    %c0_i32_0 = arith.constant 0 : i32
    %c0_i32_1 = arith.constant 0 : i32
    return %c0_i32, %c0_i32_0 : i32, i32
  }
  func.func @transform_10(%arg0: i32, %arg1: i32) -> (i32, i32, i32) {
    %c0_i32 = arith.constant 0 : i32
    %c0_i32_0 = arith.constant 0 : i32
    return %arg0, %arg1, %c0_i32 : i32, i32, i32
  }
  func.func @transform_11(%arg0: i32, %arg1: i32) -> (i32, i32, i32, i32) {
    %c0_i32 = arith.constant 0 : i32
    %c0_i32_0 = arith.constant 0 : i32
    %c0_i32_1 = arith.constant 0 : i32
    return %arg0, %arg1, %c0_i32, %c0_i32_0 : i32, i32, i32, i32
  }
}

</mosaic_0001>

<llo_original>
// kernel: tpu_custom_call.1
$region0: #{tpu_custom_call.1}
  #allocation0 [shape = 'u32[]', space=smem, size = 0x4, offset = 0x4, fixed_abs, tag = 'smem constant byte address 0x4 - core index']
  #allocation1 [shape = 'u32[144,128]{1,0:T(1,128)}', space=vmem, size = 0x12000, scoped, tag = 'internal scratch']
  %s0 = inlined_call_operand.vmem [shape: f32[12], index: 0, kind: input, shape index: {}]
  %s1 = inlined_call_operand.vmem [shape: f32[2,12,500,128], index: 1, kind: input, shape index: {}]
  %s2 = inlined_call_operand.vmem [shape: s32[2,512,1], index: 2, kind: input, shape index: {}]
  %s3 = inlined_call_operand.vmem [shape: f32[2,512,1], index: 3, kind: input, shape index: {}]
  %s4 = inlined_call_operand.vmem [shape: bf16[128,128], index: 4, kind: input, shape index: {}]
  %s5 = inlined_call_operand.vmem [shape: f32[1,128], index: 5, kind: input, shape index: {}]
  %s6 = inlined_call_operand.vmem [shape: bf16[2,128,128], index: 6, kind: input, shape index: {}]
  %s7 = inlined_call_operand.vmem [shape: f32[2,1,128], index: 7, kind: input, shape index: {}]
  %s8 = inlined_call_operand.vmem [shape: bf16[128,128], index: 8, kind: input, shape index: {}]
  %s9 = inlined_call_operand.vmem [shape: f32[1,128], index: 9, kind: input, shape index: {}]
  %s10 = inlined_call_operand.vmem [shape: bf16[2,500,128], index: 10, kind: output, shape index: {0}]
  %s11 = inlined_call_operand.hbm [shape: f32[2,2,1,128], index: 11, kind: output, shape index: {1}]
  %12 = xla_tuple %s10, %s11
  %s13 = sld [smem:[#allocation0]]
  $region181: #{tpu_custom_call.1} parent=0
    _
  %s15 = ssub.s32 1, %s13
  %s16 = scalar_select 0, %s15, %s13
  $region1: #{tpu_custom_call.1} parent=0
    #allocation2 [shape = 'u8[512]{0}', space=smem, size = 0x200, scoped, tag = 'input window, operand 0, single buffered']
    #allocation3 [shape = 's32[2]{0}', space=sflag, size = 0x8, scoped, tag = 'scoped memory for tpu_custom_call.1']
    #allocation4 [shape = 's32[2]{0}', space=sflag, size = 0x8, scoped, tag = 'scoped memory for tpu_custom_call.1']
    #allocation5 [shape = 'u8[3145728]{0}', space=vmem, size = 0x300000, scoped, tag = 'input window, operand 1']
    #allocation6 [shape = 'u8[131072]{0}', space=vmem, size = 0x20000, scoped, tag = 'output window, operand 0']
    #allocation7 [shape = 'u8[1024]{0}', space=vmem, size = 0x400, scoped, tag = 'output window, operand 1']
    %17 = vsyncpa [#allocation4], 0
    %18 = vsyncpa [#allocation3], 0
    %s19 = scalar_lea.sflag [#allocation3], 1
    %20 = vsyncpa %s19, 0
    loop: start=0, step=1, limit=6
    $region2: #{tpu_custom_call.1} parent=1 // loop_pre_header
      _
    $region3: #{tpu_custom_call.1} parent=1 // loop_header
      %s22 = sphi 0, %s26
      %p23 = scmp.ge.s32.totalorder %s22, 6
      %s29 = sphi 0, %s41
      %s30 = sphi 0, %s37
      %s31 = sphi 0, %s29
      %s32 = sphi 0, %s30
      %s33 = sphi 0, %s31
      %s34 = sphi 0, %s32
      %s42 = sphi 0, %s42
      %s44 = sphi 0, %s42
      %s45 = sphi 0, %s44
      %s59 = sphi 0, %s45
      %s67 = sphi 0, %s69
      %s70 = sphi 0, %s67
      %s71 = sphi 0, %s70
      %s87 = sphi 0, %s71
      %s95 = sphi 0, %s97
      %s98 = sphi 0, %s95
      %s99 = sphi 0, %s98
      %s115 = sphi 0, %s99
      %s123 = sphi 0, %s125
      %s126 = sphi 0, %s123
      %s127 = sphi 0, %s126
      %s143 = sphi 0, %s127
      %s147 = sphi 0, %s147
      %s149 = sphi 0, %s147
      %s150 = sphi 0, %s149
      %s164 = sphi 0, %s150
      %s168 = sphi 0, %s168
      %s170 = sphi 0, %s168
      %s171 = sphi 0, %s170
      %s185 = sphi 0, %s171
      %s189 = sphi 0, %s189
      %s191 = sphi 0, %s189
      %s192 = sphi 0, %s191
      %s206 = sphi 0, %s192
      %s210 = sphi 0, %s210
      %s212 = sphi 0, %s210
      %s213 = sphi 0, %s212
      %s227 = sphi 0, %s213
      %s231 = sphi 0, %s231
      %s233 = sphi 0, %s231
      %s234 = sphi 0, %s233
      %s248 = sphi 0, %s234
      %s252 = sphi 0, %s252
      %s254 = sphi 0, %s252
      %s255 = sphi 0, %s254
      %s269 = sphi 0, %s255
      %s277 = sphi 0, %s279
      %s280 = sphi 0, %s277
      %s281 = sphi 0, %s280
      %s297 = sphi 0, %s281
      %s305 = sphi 0, %s307
      %s308 = sphi 0, %s305
      %s309 = sphi 0, %s308
      %s325 = sphi 0, %s309
    $region4: #{tpu_custom_call.1} parent=1 // loop_header_branch
      %25 = sbr.rel (%p23) target = $region8
    $region5: #{tpu_custom_call.1} parent=1 // loop_body
      %s27 = ssub.s32 %s22, 1
      %s28 = ssub.s32 %s22, 2
      %s35 = sadd.s32 1, %s30
      %p36 = scmp.ge.s32.totalorder %s35, 2
      %s37 = scalar_select %p36, 0, %s35
      %s38 = sadd.s32 1, %s29
      %s39 = scalar_select %p36, %s38, %s29
      %p40 = scmp.ge.s32.totalorder %s39, 2
      %s41 = scalar_select %p40, 0, %s39
      %s43 = sadd.s32 %s42, 1
      %p46 = scmp.eq.s32.totalorder %s22, 3
      %p47 = scmp.ne.s32.totalorder %s42, %s44
      %p48 = scmp.eq.s32.totalorder %s22, 0
      %p49 = por %p47, %p48
      %p50 = scmp.ne.s32.totalorder %s42, %s44
      %p51 = scmp.eq.s32.totalorder %s27, 3
      %p52 = por %p50, %p51
      %p53 = scmp.ne.s32.totalorder %s44, %s45
      %p54 = scmp.eq.s32.totalorder %s27, 0
      %p55 = por %p53, %p54
      %p56 = scmp.ne.s32.totalorder %s44, %s45
      %p57 = scmp.eq.s32.totalorder %s28, 3
      %p58 = por %p56, %p57
      %p60 = scmp.ne.s32.totalorder %s45, %s59
      %p61 = scmp.eq.s32.totalorder %s28, 0
      %p62 = por %p60, %p61
      %s63 = ssub.s32 %s29, %s41
      %s64 = ssub.s32 %s30, %s37
      %s65 = sor.u32 %s63, %s64
      %p66 = scmp.eq.s32.totalorder %s65, 0
      %s68 = sadd.s32 %s67, 1
      %s69 = scalar_select %p66, %s67, %s68
      %p72 = pneg %p66
      %p73 = scmp.eq.s32.totalorder %s22, 3
      %p74 = por %p72, %p73
      %p75 = scmp.ne.s32.totalorder %s67, %s70
      %p76 = scmp.eq.s32.totalorder %s22, 0
      %p77 = por %p75, %p76
      %p78 = scmp.ne.s32.totalorder %s67, %s70
      %p79 = scmp.eq.s32.totalorder %s27, 3
      %p80 = por %p78, %p79
      %p81 = scmp.ne.s32.totalorder %s70, %s71
      %p82 = scmp.eq.s32.totalorder %s27, 0
      %p83 = por %p81, %p82
      %p84 = scmp.ne.s32.totalorder %s70, %s71
      %p85 = scmp.eq.s32.totalorder %s28, 3
      %p86 = por %p84, %p85
      %p88 = scmp.ne.s32.totalorder %s71, %s87
      %p89 = scmp.eq.s32.totalorder %s28, 0
      %p90 = por %p88, %p89
      %s91 = ssub.s32 %s29, %s41
      %s92 = ssub.s32 %s30, %s37
      %s93 = sor.u32 %s91, %s92
      %p94 = scmp.eq.s32.totalorder %s93, 0
      %s96 = sadd.s32 %s95, 1
      %s97 = scalar_select %p94, %s95, %s96
      %p100 = pneg %p94
      %p101 = scmp.eq.s32.totalorder %s22, 3
      %p102 = por %p100, %p101
      %p103 = scmp.ne.s32.totalorder %s95, %s98
      %p104 = scmp.eq.s32.totalorder %s22, 0
      %p105 = por %p103, %p104
      %p106 = scmp.ne.s32.totalorder %s95, %s98
      %p107 = scmp.eq.s32.totalorder %s27, 3
      %p108 = por %p106, %p107
      %p109 = scmp.ne.s32.totalorder %s98, %s99
      %p110 = scmp.eq.s32.totalorder %s27, 0
      %p111 = por %p109, %p110
      %p112 = scmp.ne.s32.totalorder %s98, %s99
      %p113 = scmp.eq.s32.totalorder %s28, 3
      %p114 = por %p112, %p113
      %p116 = scmp.ne.s32.totalorder %s99, %s115
      %p117 = scmp.eq.s32.totalorder %s28, 0
      %p118 = por %p116, %p117
      %s119 = ssub.s32 %s29, %s41
      %s120 = ssub.s32 %s30, %s37
      %s121 = sor.u32 %s119, %s120
      %p122 = scmp.eq.s32.totalorder %s121, 0
      %s124 = sadd.s32 %s123, 1
      %s125 = scalar_select %p122, %s123, %s124
      %p128 = pneg %p122
      %p129 = scmp.eq.s32.totalorder %s22, 3
      %p130 = por %p128, %p129
      %p131 = scmp.ne.s32.totalorder %s123, %s126
      %p132 = scmp.eq.s32.totalorder %s22, 0
      %p133 = por %p131, %p132
      %p134 = scmp.ne.s32.totalorder %s123, %s126
      %p135 = scmp.eq.s32.totalorder %s27, 3
      %p136 = por %p134, %p135
      %p137 = scmp.ne.s32.totalorder %s126, %s127
      %p138 = scmp.eq.s32.totalorder %s27, 0
      %p139 = por %p137, %p138
      %p140 = scmp.ne.s32.totalorder %s126, %s127
      %p141 = scmp.eq.s32.totalorder %s28, 3
      %p142 = por %p140, %p141
      %p144 = scmp.ne.s32.totalorder %s127, %s143
      %p145 = scmp.eq.s32.totalorder %s28, 0
      %p146 = por %p144, %p145
      %s148 = sadd.s32 %s147, 1
      %p151 = scmp.eq.s32.totalorder %s22, 3
      %p152 = scmp.ne.s32.totalorder %s147, %s149
      %p153 = scmp.eq.s32.totalorder %s22, 0
      %p154 = por %p152, %p153
      %p155 = scmp.ne.s32.totalorder %s147, %s149
      %p156 = scmp.eq.s32.totalorder %s27, 3
      %p157 = por %p155, %p156
      %p158 = scmp.ne.s32.totalorder %s149, %s150
      %p159 = scmp.eq.s32.totalorder %s27, 0
      %p160 = por %p158, %p159
      %p161 = scmp.ne.s32.totalorder %s149, %s150
      %p162 = scmp.eq.s32.totalorder %s28, 3
      %p163 = por %p161, %p162
      %p165 = scmp.ne.s32.totalorder %s150, %s164
      %p166 = scmp.eq.s32.totalorder %s28, 0
      %p167 = por %p165, %p166
      %s169 = sadd.s32 %s168, 1
      %p172 = scmp.eq.s32.totalorder %s22, 3
      %p173 = scmp.ne.s32.totalorder %s168, %s170
      %p174 = scmp.eq.s32.totalorder %s22, 0
      %p175 = por %p173, %p174
      %p176 = scmp.ne.s32.totalorder %s168, %s170
      %p177 = scmp.eq.s32.totalorder %s27, 3
      %p178 = por %p176, %p177
      %p179 = scmp.ne.s32.totalorder %s170, %s171
      %p180 = scmp.eq.s32.totalorder %s27, 0
      %p181 = por %p179, %p180
      %p182 = scmp.ne.s32.totalorder %s170, %s171
      %p183 = scmp.eq.s32.totalorder %s28, 3
      %p184 = por %p182, %p183
      %p186 = scmp.ne.s32.totalorder %s171, %s185
      %p187 = scmp.eq.s32.totalorder %s28, 0
      %p188 = por %p186, %p187
      %s190 = sadd.s32 %s189, 1
      %p193 = scmp.eq.s32.totalorder %s22, 3
      %p194 = scmp.ne.s32.totalorder %s189, %s191
      %p195 = scmp.eq.s32.totalorder %s22, 0
      %p196 = por %p194, %p195
      %p197 = scmp.ne.s32.totalorder %s189, %s191
      %p198 = scmp.eq.s32.totalorder %s27, 3
      %p199 = por %p197, %p198
      %p200 = scmp.ne.s32.totalorder %s191, %s192
      %p201 = scmp.eq.s32.totalorder %s27, 0
      %p202 = por %p200, %p201
      %p203 = scmp.ne.s32.totalorder %s191, %s192
      %p204 = scmp.eq.s32.totalorder %s28, 3
      %p205 = por %p203, %p204
      %p207 = scmp.ne.s32.totalorder %s192, %s206
      %p208 = scmp.eq.s32.totalorder %s28, 0
      %p209 = por %p207, %p208
      %s211 = sadd.s32 %s210, 1
      %p214 = scmp.eq.s32.totalorder %s22, 3
      %p215 = scmp.ne.s32.totalorder %s210, %s212
      %p216 = scmp.eq.s32.totalorder %s22, 0
      %p217 = por %p215, %p216
      %p218 = scmp.ne.s32.totalorder %s210, %s212
      %p219 = scmp.eq.s32.totalorder %s27, 3
      %p220 = por %p218, %p219
      %p221 = scmp.ne.s32.totalorder %s212, %s213
      %p222 = scmp.eq.s32.totalorder %s27, 0
      %p223 = por %p221, %p222
      %p224 = scmp.ne.s32.totalorder %s212, %s213
      %p225 = scmp.eq.s32.totalorder %s28, 3
      %p226 = por %p224, %p225
      %p228 = scmp.ne.s32.totalorder %s213, %s227
      %p229 = scmp.eq.s32.totalorder %s28, 0
      %p230 = por %p228, %p229
      %s232 = sadd.s32 %s231, 1
      %p235 = scmp.eq.s32.totalorder %s22, 3
      %p236 = scmp.ne.s32.totalorder %s231, %s233
      %p237 = scmp.eq.s32.totalorder %s22, 0
      %p238 = por %p236, %p237
      %p239 = scmp.ne.s32.totalorder %s231, %s233
      %p240 = scmp.eq.s32.totalorder %s27, 3
      %p241 = por %p239, %p240
      %p242 = scmp.ne.s32.totalorder %s233, %s234
      %p243 = scmp.eq.s32.totalorder %s27, 0
      %p244 = por %p242, %p243
      %p245 = scmp.ne.s32.totalorder %s233, %s234
      %p246 = scmp.eq.s32.totalorder %s28, 3
      %p247 = por %p245, %p246
      %p249 = scmp.ne.s32.totalorder %s234, %s248
      %p250 = scmp.eq.s32.totalorder %s28, 0
      %p251 = por %p249, %p250
      %s253 = sadd.s32 %s252, 1
      %p256 = scmp.eq.s32.totalorder %s22, 3
      %p257 = scmp.ne.s32.totalorder %s252, %s254
      %p258 = scmp.eq.s32.totalorder %s22, 0
      %p259 = por %p257, %p258
      %p260 = scmp.ne.s32.totalorder %s252, %s254
      %p261 = scmp.eq.s32.totalorder %s27, 3
      %p262 = por %p260, %p261
      %p263 = scmp.ne.s32.totalorder %s254, %s255
      %p264 = scmp.eq.s32.totalorder %s27, 0
      %p265 = por %p263, %p264
      %p266 = scmp.ne.s32.totalorder %s254, %s255
      %p267 = scmp.eq.s32.totalorder %s28, 3
      %p268 = por %p266, %p267
      %p270 = scmp.ne.s32.totalorder %s255, %s269
      %p271 = scmp.eq.s32.totalorder %s28, 0
      %p272 = por %p270, %p271
      %s273 = ssub.s32 %s29, %s41
      %s274 = ssub.s32 %s30, %s37
      %s275 = sor.u32 %s273, %s274
      %p276 = scmp.eq.s32.totalorder %s275, 0
      %s278 = sadd.s32 %s277, 1
      %s279 = scalar_select %p276, %s277, %s278
      %p282 = pneg %p276
      %p283 = scmp.eq.s32.totalorder %s22, 3
      %p284 = por %p282, %p283
      %p285 = scmp.ne.s32.totalorder %s277, %s280
      %p286 = scmp.eq.s32.totalorder %s22, 0
      %p287 = por %p285, %p286
      %p288 = scmp.ne.s32.totalorder %s277, %s280
      %p289 = scmp.eq.s32.totalorder %s27, 3
      %p290 = por %p288, %p289
      %p291 = scmp.ne.s32.totalorder %s280, %s281
      %p292 = scmp.eq.s32.totalorder %s27, 0
      %p293 = por %p291, %p292
      %p294 = scmp.ne.s32.totalorder %s280, %s281
      %p295 = scmp.eq.s32.totalorder %s28, 3
      %p296 = por %p294, %p295
      %p298 = scmp.ne.s32.totalorder %s281, %s297
      %p299 = scmp.eq.s32.totalorder %s28, 0
      %p300 = por %p298, %p299
      %s301 = ssub.s32 %s29, %s41
      %s302 = ssub.s32 %s30, %s37
      %s303 = sor.u32 %s301, %s302
      %p304 = scmp.eq.s32.totalorder %s303, 0
      %s306 = sadd.s32 %s305, 1
      %s307 = scalar_select %p304, %s305, %s306
      %p310 = pneg %p304
      %p311 = scmp.eq.s32.totalorder %s22, 3
      %p312 = por %p310, %p311
      %p313 = scmp.ne.s32.totalorder %s305, %s308
      %p314 = scmp.eq.s32.totalorder %s22, 0
      %p315 = por %p313, %p314
      %p316 = scmp.ne.s32.totalorder %s305, %s308
      %p317 = scmp.eq.s32.totalorder %s27, 3
      %p318 = por %p316, %p317
      %p319 = scmp.ne.s32.totalorder %s308, %s309
      %p320 = scmp.eq.s32.totalorder %s27, 0
      %p321 = por %p319, %p320
      %p322 = scmp.ne.s32.totalorder %s308, %s309
      %p323 = scmp.eq.s32.totalorder %s28, 3
      %p324 = por %p322, %p323
      %p326 = scmp.ne.s32.totalorder %s309, %s325
      %p327 = scmp.eq.s32.totalorder %s28, 0
      %p328 = por %p326, %p327
      %p329 = scmp.le.s32.totalorder 1, %s22
      %p330 = scmp.lt.s32.totalorder %s22, 5
      %p331 = pnand %p329, %p330
      %p332 = pneg %p331
      // Predicated region
      $region9: #{tpu_custom_call.1} parent=5 // pred_check
        _
      $region10: #{tpu_custom_call.1} parent=5 // pred_check_branch
        %334 = sbr.rel (%p331) target = $region12
      $region11: #{tpu_custom_call.1} parent=5 // pred_region
        %s335 = ssub.s32 %s22, 1
        // Predicated region
        $region13: #{tpu_custom_call.1} parent=11 // pred_check
          %p336 = pneg %p55
        $region14: #{tpu_custom_call.1} parent=11 // pred_check_branch
          %338 = sbr.rel (%p336) target = $region16
        $region15: #{tpu_custom_call.1} parent=11 // pred_region
          %s340 = ssub.s32 16, 16
          %341 = vsyncadd [#allocation4], %s340
          %s343 = sshll.u32 %s0, 4
          %s344 = int_to_ptr.vmem [resolvable:$true] %s343
          %346 = dma.vmem_to_smem %s344, 16, [#allocation2], [#allocation4]
        $region16: #{tpu_custom_call.1} parent=11 // pred_fallthru
          _
        // Predicated region
        $region17: #{tpu_custom_call.1} parent=11 // pred_check
          %p347 = pneg %p160
        $region18: #{tpu_custom_call.1} parent=11 // pred_check_branch
          %349 = sbr.rel (%p347) target = $region20
        $region19: #{tpu_custom_call.1} parent=11 // pred_region
          _
        $region20: #{tpu_custom_call.1} parent=11 // pred_fallthru
          _
        // Predicated region
        $region21: #{tpu_custom_call.1} parent=11 // pred_check
          %p350 = pneg %p181
        $region22: #{tpu_custom_call.1} parent=11 // pred_check_branch
          %352 = sbr.rel (%p350) target = $region24
        $region23: #{tpu_custom_call.1} parent=11 // pred_region
          _
        $region24: #{tpu_custom_call.1} parent=11 // pred_fallthru
          _
        // Predicated region
        $region25: #{tpu_custom_call.1} parent=11 // pred_check
          %p353 = pneg %p202
        $region26: #{tpu_custom_call.1} parent=11 // pred_check_branch
          %355 = sbr.rel (%p353) target = $region28
        $region27: #{tpu_custom_call.1} parent=11 // pred_region
          _
        $region28: #{tpu_custom_call.1} parent=11 // pred_fallthru
          _
        // Predicated region
        $region29: #{tpu_custom_call.1} parent=11 // pred_check
          %p356 = pneg %p223
        $region30: #{tpu_custom_call.1} parent=11 // pred_check_branch
          %358 = sbr.rel (%p356) target = $region32
        $region31: #{tpu_custom_call.1} parent=11 // pred_region
          _
        $region32: #{tpu_custom_call.1} parent=11 // pred_fallthru
          _
        // Predicated region
        $region33: #{tpu_custom_call.1} parent=11 // pred_check
          %p359 = pneg %p244
        $region34: #{tpu_custom_call.1} parent=11 // pred_check_branch
          %361 = sbr.rel (%p359) target = $region36
        $region35: #{tpu_custom_call.1} parent=11 // pred_region
          _
        $region36: #{tpu_custom_call.1} parent=11 // pred_fallthru
          _
        // Predicated region
        $region37: #{tpu_custom_call.1} parent=11 // pred_check
          %p362 = pneg %p265
        $region38: #{tpu_custom_call.1} parent=11 // pred_check_branch
          %364 = sbr.rel (%p362) target = $region40
        $region39: #{tpu_custom_call.1} parent=11 // pred_region
          _
        $region40: #{tpu_custom_call.1} parent=11 // pred_fallthru
          _
      $region12: #{tpu_custom_call.1} parent=5 // pred_fallthru
        _
      %p365 = scmp.lt.s32.totalorder %s22, 4
      // Predicated region
      $region41: #{tpu_custom_call.1} parent=5 // pred_check
        %p366 = pneg %p365
      $region42: #{tpu_custom_call.1} parent=5 // pred_check_branch
        %368 = sbr.rel (%p366) target = $region44
      $region43: #{tpu_custom_call.1} parent=5 // pred_region
        // Predicated region
        $region45: #{tpu_custom_call.1} parent=43 // pred_check
          %p369 = pneg %p77
        $region46: #{tpu_custom_call.1} parent=43 // pred_check_branch
          %371 = sbr.rel (%p369) target = $region48
        $region47: #{tpu_custom_call.1} parent=43 // pred_region
          %s372 = sand.u32 %s67, 1
          %s373 = sand.u32 %s67, 1
          %s374 = smul.addr %s373, 3072
          %s375 = scalar_lea.vmem [#allocation5], %s374
          %s376 = smul.u32 32, %s30
          %s377 = ssub.s32 63, %s376
          %p378 = scmp.lt.s32.totalorder %s377, 32
          %s379 = scalar_select %p378, %s377, 32
          %s380 = smul.u32 1536, %s379
          %p381 = scmp.ne.s32.totalorder 0, %s380
          %s382 = smul.addr %s29, 756
          %s383 = sadd.s32 %s376, %s382
          %s384 = smul.addr %s383, 8
          %s385 = scalar_lea.vmem %s1, %s384
          // Predicated region
          $region49: #{tpu_custom_call.1} parent=47 // pred_check
            %p386 = pneg %p381
          $region50: #{tpu_custom_call.1} parent=47 // pred_check_branch
            %388 = sbr.rel (%p386) target = $region52
          $region51: #{tpu_custom_call.1} parent=47 // pred_region
            // Predicated region
            $region53: #{tpu_custom_call.1} parent=51 // pred_check
              _
            $region54: #{tpu_custom_call.1} parent=51 // pred_check_branch
              %390 = sbr.rel (0) target = $region56
            $region55: #{tpu_custom_call.1} parent=51 // pred_region
              // Predicated region
              $region75: #{tpu_custom_call.1} parent=55 // pred_check
                _
              $region76: #{tpu_custom_call.1} parent=55 // pred_check_branch
                %604 = sbr.rel (0) target = $region78
              $region77: #{tpu_custom_call.1} parent=55 // pred_region
                %s605 = sdiv.u32.pop %s379, 6
                %s606 = srem.u32.pop %s379, 6
                // While loop
                $region79: #{tpu_custom_call.1} parent=77 // loop_pre_header
                  _
                $region80: #{tpu_custom_call.1} parent=77 // loop_header
                  %s608 = sphi 0, %s610
                  %p609 = scmp.ge.s32.totalorder %s608, %s605
                  %s613 = sphi 0, %s762
                  %s614 = sphi %s385, %s765
                  %s615 = sphi %s375, %s766
                $region81: #{tpu_custom_call.1} parent=77 // loop_header_branch
                  %612 = sbr.rel (%p609) target = $region85
                $region82: #{tpu_custom_call.1} parent=77 // loop_body
                  %v616 = vld [vmem:[%s614] sm:$0xff]
                  %617 = vst [vmem:[%s615] sm:$0xff] %v616
                  %v618 = vld [vmem:[%s614 + $0x8] sm:$0xff]
                  %619 = vst [vmem:[%s615 + $0x8] sm:$0xff] %v618
                  %v620 = vld [vmem:[%s614 + $0x10] sm:$0xff]
                  %621 = vst [vmem:[%s615 + $0x10] sm:$0xff] %v620
                  %v622 = vld [vmem:[%s614 + $0x18] sm:$0xff]
                  %623 = vst [vmem:[%s615 + $0x18] sm:$0xff] %v622
                  %v624 = vld [vmem:[%s614 + $0x20] sm:$0xff]
                  %625 = vst [vmem:[%s615 + $0x20] sm:$0xff] %v624
                  %v626 = vld [vmem:[%s614 + $0x28] sm:$0xff]
                  %627 = vst [vmem:[%s615 + $0x28] sm:$0xff] %v626
                  %v628 = vld [vmem:[%s614 + $0x1f8] sm:$0xff]
                  %629 = vst [vmem:[%s615 + $0x100] sm:$0xff] %v628
                  %v630 = vld [vmem:[%s614 + $0x200] sm:$0xff]
                  %631 = vst [vmem:[%s615 + $0x108] sm:$0xff] %v630
                  %v632 = vld [vmem:[%s614 + $0x208] sm:$0xff]
                  %633 = vst [vmem:[%s615 + $0x110] sm:$0xff] %v632
                  %v634 = vld [vmem:[%s614 + $0x210] sm:$0xff]
                  %635 = vst [vmem:[%s615 + $0x118] sm:$0xff] %v634
                  %v636 = vld [vmem:[%s614 + $0x218] sm:$0xff]
                  %637 = vst [vmem:[%s615 + $0x120] sm:$0xff] %v636
                  %v638 = vld [vmem:[%s614 + $0x220] sm:$0xff]
                  %639 = vst [vmem:[%s615 + $0x128] sm:$0xff] %v638
                  %v640 = vld [vmem:[%s614 + $0x3f0] sm:$0xff]
                  %641 = vst [vmem:[%s615 + $0x200] sm:$0xff] %v640
                  %v642 = vld [vmem:[%s614 + $0x3f8] sm:$0xff]
                  %643 = vst [vmem:[%s615 + $0x208] sm:$0xff] %v642
                  %v644 = vld [vmem:[%s614 + $0x400] sm:$0xff]
                  %645 = vst [vmem:[%s615 + $0x210] sm:$0xff] %v644
                  %v646 = vld [vmem:[%s614 + $0x408] sm:$0xff]
                  %647 = vst [vmem:[%s615 + $0x218] sm:$0xff] %v646
                  %v648 = vld [vmem:[%s614 + $0x410] sm:$0xff]
                  %649 = vst [vmem:[%s615 + $0x220] sm:$0xff] %v648
                  %v650 = vld [vmem:[%s614 + $0x418] sm:$0xff]
                  %651 = vst [vmem:[%s615 + $0x228] sm:$0xff] %v650
                  %v652 = vld [vmem:[%s614 + $0x5e8] sm:$0xff]
                  %653 = vst [vmem:[%s615 + $0x300] sm:$0xff] %v652
                  %v654 = vld [vmem:[%s614 + $0x5f0] sm:$0xff]
                  %655 = vst [vmem:[%s615 + $0x308] sm:$0xff] %v654
                  %v656 = vld [vmem:[%s614 + $0x5f8] sm:$0xff]
                  %657 = vst [vmem:[%s615 + $0x310] sm:$0xff] %v656
                  %v658 = vld [vmem:[%s614 + $0x600] sm:$0xff]
                  %659 = vst [vmem:[%s615 + $0x318] sm:$0xff] %v658
                  %v660 = vld [vmem:[%s614 + $0x608] sm:$0xff]
                  %661 = vst [vmem:[%s615 + $0x320] sm:$0xff] %v660
                  %v662 = vld [vmem:[%s614 + $0x610] sm:$0xff]
                  %663 = vst [vmem:[%s615 + $0x328] sm:$0xff] %v662
                  %v664 = vld [vmem:[%s614 + $0x7e0] sm:$0xff]
                  %665 = vst [vmem:[%s615 + $0x400] sm:$0xff] %v664
                  %v666 = vld [vmem:[%s614 + $0x7e8] sm:$0xff]
                  %667 = vst [vmem:[%s615 + $0x408] sm:$0xff] %v666
                  %v668 = vld [vmem:[%s614 + $0x7f0] sm:$0xff]
                  %669 = vst [vmem:[%s615 + $0x410] sm:$0xff] %v668
                  %v670 = vld [vmem:[%s614 + $0x7f8] sm:$0xff]
                  %671 = vst [vmem:[%s615 + $0x418] sm:$0xff] %v670
                  %v672 = vld [vmem:[%s614 + $0x800] sm:$0xff]
                  %673 = vst [vmem:[%s615 + $0x420] sm:$0xff] %v672
                  %v674 = vld [vmem:[%s614 + $0x808] sm:$0xff]
                  %675 = vst [vmem:[%s615 + $0x428] sm:$0xff] %v674
                  %v676 = vld [vmem:[%s614 + $0x9d8] sm:$0xff]
                  %677 = vst [vmem:[%s615 + $0x500] sm:$0xff] %v676
                  %v678 = vld [vmem:[%s614 + $0x9e0] sm:$0xff]
                  %679 = vst [vmem:[%s615 + $0x508] sm:$0xff] %v678
                  %v680 = vld [vmem:[%s614 + $0x9e8] sm:$0xff]
                  %681 = vst [vmem:[%s615 + $0x510] sm:$0xff] %v680
                  %v682 = vld [vmem:[%s614 + $0x9f0] sm:$0xff]
                  %683 = vst [vmem:[%s615 + $0x518] sm:$0xff] %v682
                  %v684 = vld [vmem:[%s614 + $0x9f8] sm:$0xff]
                  %685 = vst [vmem:[%s615 + $0x520] sm:$0xff] %v684
                  %v686 = vld [vmem:[%s614 + $0xa00] sm:$0xff]
                  %687 = vst [vmem:[%s615 + $0x528] sm:$0xff] %v686
                  %v688 = vld [vmem:[%s614 + $0xbd0] sm:$0xff]
                  %689 = vst [vmem:[%s615 + $0x600] sm:$0xff] %v688
                  %v690 = vld [vmem:[%s614 + $0xbd8] sm:$0xff]
                  %691 = vst [vmem:[%s615 + $0x608] sm:$0xff] %v690
                  %v692 = vld [vmem:[%s614 + $0xbe0] sm:$0xff]
                  %693 = vst [vmem:[%s615 + $0x610] sm:$0xff] %v692
                  %v694 = vld [vmem:[%s614 + $0xbe8] sm:$0xff]
                  %695 = vst [vmem:[%s615 + $0x618] sm:$0xff] %v694
                  %v696 = vld [vmem:[%s614 + $0xbf0] sm:$0xff]
                  %697 = vst [vmem:[%s615 + $0x620] sm:$0xff] %v696
                  %v698 = vld [vmem:[%s614 + $0xbf8] sm:$0xff]
                  %699 = vst [vmem:[%s615 + $0x628] sm:$0xff] %v698
                  %v700 = vld [vmem:[%s614 + $0xdc8] sm:$0xff]
                  %701 = vst [vmem:[%s615 + $0x700] sm:$0xff] %v700
                  %v702 = vld [vmem:[%s614 + $0xdd0] sm:$0xff]
                  %703 = vst [vmem:[%s615 + $0x708] sm:$0xff] %v702
                  %v704 = vld [vmem:[%s614 + $0xdd8] sm:$0xff]
                  %705 = vst [vmem:[%s615 + $0x710] sm:$0xff] %v704
                  %v706 = vld [vmem:[%s614 + $0xde0] sm:$0xff]
                  %707 = vst [vmem:[%s615 + $0x718] sm:$0xff] %v706
                  %v708 = vld [vmem:[%s614 + $0xde8] sm:$0xff]
                  %709 = vst [vmem:[%s615 + $0x720] sm:$0xff] %v708
                  %v710 = vld [vmem:[%s614 + $0xdf0] sm:$0xff]
                  %711 = vst [vmem:[%s615 + $0x728] sm:$0xff] %v710
                  %v712 = vld [vmem:[%s614 + $0xfc0] sm:$0xff]
                  %713 = vst [vmem:[%s615 + $0x800] sm:$0xff] %v712
                  %v714 = vld [vmem:[%s614 + $0xfc8] sm:$0xff]
                  %715 = vst [vmem:[%s615 + $0x808] sm:$0xff] %v714
                  %v716 = vld [vmem:[%s614 + $0xfd0] sm:$0xff]
                  %717 = vst [vmem:[%s615 + $0x810] sm:$0xff] %v716
                  %v718 = vld [vmem:[%s614 + $0xfd8] sm:$0xff]
                  %719 = vst [vmem:[%s615 + $0x818] sm:$0xff] %v718
                  %v720 = vld [vmem:[%s614 + $0xfe0] sm:$0xff]
                  %721 = vst [vmem:[%s615 + $0x820] sm:$0xff] %v720
                  %v722 = vld [vmem:[%s614 + $0xfe8] sm:$0xff]
                  %723 = vst [vmem:[%s615 + $0x828] sm:$0xff] %v722
                  %v724 = vld [vmem:[%s614 + $0x11b8] sm:$0xff]
                  %725 = vst [vmem:[%s615 + $0x900] sm:$0xff] %v724
                  %v726 = vld [vmem:[%s614 + $0x11c0] sm:$0xff]
                  %727 = vst [vmem:[%s615 + $0x908] sm:$0xff] %v726
                  %v728 = vld [vmem:[%s614 + $0x11c8] sm:$0xff]
                  %729 = vst [vmem:[%s615 + $0x910] sm:$0xff] %v728
                  %v730 = vld [vmem:[%s614 + $0x11d0] sm:$0xff]
                  %731 = vst [vmem:[%s615 + $0x918] sm:$0xff] %v730
                  %v732 = vld [vmem:[%s614 + $0x11d8] sm:$0xff]
                  %733 = vst [vmem:[%s615 + $0x920] sm:$0xff] %v732
                  %v734 = vld [vmem:[%s614 + $0x11e0] sm:$0xff]
                  %735 = vst [vmem:[%s615 + $0x928] sm:$0xff] %v734
                  %v736 = vld [vmem:[%s614 + $0x13b0] sm:$0xff]
                  %737 = vst [vmem:[%s615 + $0xa00] sm:$0xff] %v736
                  %v738 = vld [vmem:[%s614 + $0x13b8] sm:$0xff]
                  %739 = vst [vmem:[%s615 + $0xa08] sm:$0xff] %v738
                  %v740 = vld [vmem:[%s614 + $0x13c0] sm:$0xff]
                  %741 = vst [vmem:[%s615 + $0xa10] sm:$0xff] %v740
                  %v742 = vld [vmem:[%s614 + $0x13c8] sm:$0xff]
                  %743 = vst [vmem:[%s615 + $0xa18] sm:$0xff] %v742
                  %v744 = vld [vmem:[%s614 + $0x13d0] sm:$0xff]
                  %745 = vst [vmem:[%s615 + $0xa20] sm:$0xff] %v744
                  %v746 = vld [vmem:[%s614 + $0x13d8] sm:$0xff]
                  %747 = vst [vmem:[%s615 + $0xa28] sm:$0xff] %v746
                  %v748 = vld [vmem:[%s614 + $0x15a8] sm:$0xff]
                  %749 = vst [vmem:[%s615 + $0xb00] sm:$0xff] %v748
                  %v750 = vld [vmem:[%s614 + $0x15b0] sm:$0xff]
                  %751 = vst [vmem:[%s615 + $0xb08] sm:$0xff] %v750
                  %v752 = vld [vmem:[%s614 + $0x15b8] sm:$0xff]
                  %753 = vst [vmem:[%s615 + $0xb10] sm:$0xff] %v752
                  %v754 = vld [vmem:[%s614 + $0x15c0] sm:$0xff]
                  %755 = vst [vmem:[%s615 + $0xb18] sm:$0xff] %v754
                  %v756 = vld [vmem:[%s614 + $0x15c8] sm:$0xff]
                  %757 = vst [vmem:[%s615 + $0xb20] sm:$0xff] %v756
                  %v758 = vld [vmem:[%s614 + $0x15d0] sm:$0xff]
                  %759 = vst [vmem:[%s615 + $0xb28] sm:$0xff] %v758
                  %s760 = sadd.s32 1, %s613
                  %p761 = scmp.ge.s32.totalorder %s760, %s605
                  %s762 = scalar_select %p761, 0, %s760
                  %s763 = smul.u32 %s762, 48
                  %s764 = smul.u32 %s762, 48
                  %s765 = scalar_lea.vmem %s385, %s763
                  %s766 = scalar_lea.vmem %s375, %s764 [#allocation5]
                $region83: #{tpu_custom_call.1} parent=77 // loop_footer
                  %s610 = sadd.s32 %s608, 1
                $region84: #{tpu_custom_call.1} parent=77 // loop_footer_branch
                  %607 = sbr.rel target = $region80
                $region85: #{tpu_custom_call.1} parent=77 // loop_exit
                  _
                %s767 = sdiv.u32.pop %s379, 6
                %s768 = srem.u32.pop %s379, 6
                %s769 = smul.u32 %s767, 6
                %s770 = smul.u32 8, %s769
                %s771 = scalar_lea.vmem %s385, %s770
                %s772 = smul.u32 8, %s769
                %s773 = scalar_lea.vmem %s375, %s772 [#allocation5]
                // While loop
                $region86: #{tpu_custom_call.1} parent=77 // loop_pre_header
                  _
                $region87: #{tpu_custom_call.1} parent=77 // loop_header
                  %s775 = sphi 0, %s777
                  %p776 = scmp.ge.s32.totalorder %s775, %s768
                  %s780 = sphi 0, %s809
                  %s781 = sphi %s771, %s812
                  %s782 = sphi %s773, %s813
                $region88: #{tpu_custom_call.1} parent=77 // loop_header_branch
                  %779 = sbr.rel (%p776) target = $region92
                $region89: #{tpu_custom_call.1} parent=77 // loop_body
                  %v783 = vld [vmem:[%s781] sm:$0xff]
                  %784 = vst [vmem:[%s782] sm:$0xff] %v783
                  %v785 = vld [vmem:[%s781 + $0x1f8] sm:$0xff]
                  %786 = vst [vmem:[%s782 + $0x100] sm:$0xff] %v785
                  %v787 = vld [vmem:[%s781 + $0x3f0] sm:$0xff]
                  %788 = vst [vmem:[%s782 + $0x200] sm:$0xff] %v787
                  %v789 = vld [vmem:[%s781 + $0x5e8] sm:$0xff]
                  %790 = vst [vmem:[%s782 + $0x300] sm:$0xff] %v789
                  %v791 = vld [vmem:[%s781 + $0x7e0] sm:$0xff]
                  %792 = vst [vmem:[%s782 + $0x400] sm:$0xff] %v791
                  %v793 = vld [vmem:[%s781 + $0x9d8] sm:$0xff]
                  %794 = vst [vmem:[%s782 + $0x500] sm:$0xff] %v793
                  %v795 = vld [vmem:[%s781 + $0xbd0] sm:$0xff]
                  %796 = vst [vmem:[%s782 + $0x600] sm:$0xff] %v795
                  %v797 = vld [vmem:[%s781 + $0xdc8] sm:$0xff]
                  %798 = vst [vmem:[%s782 + $0x700] sm:$0xff] %v797
                  %v799 = vld [vmem:[%s781 + $0xfc0] sm:$0xff]
                  %800 = vst [vmem:[%s782 + $0x800] sm:$0xff] %v799
                  %v801 = vld [vmem:[%s781 + $0x11b8] sm:$0xff]
                  %802 = vst [vmem:[%s782 + $0x900] sm:$0xff] %v801
                  %v803 = vld [vmem:[%s781 + $0x13b0] sm:$0xff]
                  %804 = vst [vmem:[%s782 + $0xa00] sm:$0xff] %v803
                  %v805 = vld [vmem:[%s781 + $0x15a8] sm:$0xff]
                  %806 = vst [vmem:[%s782 + $0xb00] sm:$0xff] %v805
                  %s807 = sadd.s32 1, %s780
                  %p808 = scmp.ge.s32.totalorder %s807, %s768
                  %s809 = scalar_select %p808, 0, %s807
                  %s810 = smul.u32 %s809, 8
                  %s811 = smul.u32 %s809, 8
                  %s812 = scalar_lea.vmem %s771, %s810
                  %s813 = scalar_lea.vmem %s773, %s811 [#allocation5]
                $region90: #{tpu_custom_call.1} parent=77 // loop_footer
                  %s777 = sadd.s32 %s775, 1
                $region91: #{tpu_custom_call.1} parent=77 // loop_footer_branch
                  %774 = sbr.rel target = $region87
                $region92: #{tpu_custom_call.1} parent=77 // loop_exit
                  _
              $region78: #{tpu_custom_call.1} parent=55 // pred_fallthru
                _
              // Predicated region
              $region93: #{tpu_custom_call.1} parent=55 // pred_check
                _
              $region94: #{tpu_custom_call.1} parent=55 // pred_check_branch
                %815 = sbr.rel target = $region96
              $region95: #{tpu_custom_call.1} parent=55 // pred_region
                _
              $region96: #{tpu_custom_call.1} parent=55 // pred_fallthru
                _
            $region56: #{tpu_custom_call.1} parent=51 // pred_fallthru
              _
            // Predicated region
            $region57: #{tpu_custom_call.1} parent=51 // pred_check
              _
            $region58: #{tpu_custom_call.1} parent=51 // pred_check_branch
              %392 = sbr.rel target = $region60
            $region59: #{tpu_custom_call.1} parent=51 // pred_region
              %s394 = sdiv.u32.pop %s379, 6
              %s395 = srem.u32.pop %s379, 6
              // While loop
              $region61: #{tpu_custom_call.1} parent=59 // loop_pre_header
                _
              $region62: #{tpu_custom_call.1} parent=59 // loop_header
                %s397 = sphi 0, %s399
                %p398 = scmp.ge.s32.totalorder %s397, %s394
                %s402 = sphi 0, %s551
                %s403 = sphi %s385, %s554
                %s404 = sphi %s375, %s555
              $region63: #{tpu_custom_call.1} parent=59 // loop_header_branch
                %401 = sbr.rel (%p398) target = $region67
              $region64: #{tpu_custom_call.1} parent=59 // loop_body
                %v405 = vld [vmem:[%s403] sm:$0xff]
                %406 = vst [vmem:[%s404] sm:$0xff] %v405
                %v407 = vld [vmem:[%s403 + $0x8] sm:$0xff]
                %408 = vst [vmem:[%s404 + $0x8] sm:$0xff] %v407
                %v409 = vld [vmem:[%s403 + $0x10] sm:$0xff]
                %410 = vst [vmem:[%s404 + $0x10] sm:$0xff] %v409
                %v411 = vld [vmem:[%s403 + $0x18] sm:$0xff]
                %412 = vst [vmem:[%s404 + $0x18] sm:$0xff] %v411
                %v413 = vld [vmem:[%s403 + $0x20] sm:$0xff]
                %414 = vst [vmem:[%s404 + $0x20] sm:$0xff] %v413
                %v415 = vld [vmem:[%s403 + $0x28] sm:$0xff]
                %416 = vst [vmem:[%s404 + $0x28] sm:$0xff] %v415
                %v417 = vld [vmem:[%s403 + $0x1f8] sm:$0xff]
                %418 = vst [vmem:[%s404 + $0x100] sm:$0xff] %v417
                %v419 = vld [vmem:[%s403 + $0x200] sm:$0xff]
                %420 = vst [vmem:[%s404 + $0x108] sm:$0xff] %v419
                %v421 = vld [vmem:[%s403 + $0x208] sm:$0xff]
                %422 = vst [vmem:[%s404 + $0x110] sm:$0xff] %v421
                %v423 = vld [vmem:[%s403 + $0x210] sm:$0xff]
                %424 = vst [vmem:[%s404 + $0x118] sm:$0xff] %v423
                %v425 = vld [vmem:[%s403 + $0x218] sm:$0xff]
                %426 = vst [vmem:[%s404 + $0x120] sm:$0xff] %v425
                %v427 = vld [vmem:[%s403 + $0x220] sm:$0xff]
                %428 = vst [vmem:[%s404 + $0x128] sm:$0xff] %v427
                %v429 = vld [vmem:[%s403 + $0x3f0] sm:$0xff]
                %430 = vst [vmem:[%s404 + $0x200] sm:$0xff] %v429
                %v431 = vld [vmem:[%s403 + $0x3f8] sm:$0xff]
                %432 = vst [vmem:[%s404 + $0x208] sm:$0xff] %v431
                %v433 = vld [vmem:[%s403 + $0x400] sm:$0xff]
                %434 = vst [vmem:[%s404 + $0x210] sm:$0xff] %v433
                %v435 = vld [vmem:[%s403 + $0x408] sm:$0xff]
                %436 = vst [vmem:[%s404 + $0x218] sm:$0xff] %v435
                %v437 = vld [vmem:[%s403 + $0x410] sm:$0xff]
                %438 = vst [vmem:[%s404 + $0x220] sm:$0xff] %v437
                %v439 = vld [vmem:[%s403 + $0x418] sm:$0xff]
                %440 = vst [vmem:[%s404 + $0x228] sm:$0xff] %v439
                %v441 = vld [vmem:[%s403 + $0x5e8] sm:$0xff]
                %442 = vst [vmem:[%s404 + $0x300] sm:$0xff] %v441
                %v443 = vld [vmem:[%s403 + $0x5f0] sm:$0xff]
                %444 = vst [vmem:[%s404 + $0x308] sm:$0xff] %v443
                %v445 = vld [vmem:[%s403 + $0x5f8] sm:$0xff]
                %446 = vst [vmem:[%s404 + $0x310] sm:$0xff] %v445
                %v447 = vld [vmem:[%s403 + $0x600] sm:$0xff]
                %448 = vst [vmem:[%s404 + $0x318] sm:$0xff] %v447
                %v449 = vld [vmem:[%s403 + $0x608] sm:$0xff]
                %450 = vst [vmem:[%s404 + $0x320] sm:$0xff] %v449
                %v451 = vld [vmem:[%s403 + $0x610] sm:$0xff]
                %452 = vst [vmem:[%s404 + $0x328] sm:$0xff] %v451
                %v453 = vld [vmem:[%s403 + $0x7e0] sm:$0xff]
                %454 = vst [vmem:[%s404 + $0x400] sm:$0xff] %v453
                %v455 = vld [vmem:[%s403 + $0x7e8] sm:$0xff]
                %456 = vst [vmem:[%s404 + $0x408] sm:$0xff] %v455
                %v457 = vld [vmem:[%s403 + $0x7f0] sm:$0xff]
                %458 = vst [vmem:[%s404 + $0x410] sm:$0xff] %v457
                %v459 = vld [vmem:[%s403 + $0x7f8] sm:$0xff]
                %460 = vst [vmem:[%s404 + $0x418] sm:$0xff] %v459
                %v461 = vld [vmem:[%s403 + $0x800] sm:$0xff]
                %462 = vst [vmem:[%s404 + $0x420] sm:$0xff] %v461
                %v463 = vld [vmem:[%s403 + $0x808] sm:$0xff]
                %464 = vst [vmem:[%s404 + $0x428] sm:$0xff] %v463
                %v465 = vld [vmem:[%s403 + $0x9d8] sm:$0xff]
                %466 = vst [vmem:[%s404 + $0x500] sm:$0xff] %v465
                %v467 = vld [vmem:[%s403 + $0x9e0] sm:$0xff]
                %468 = vst [vmem:[%s404 + $0x508] sm:$0xff] %v467
                %v469 = vld [vmem:[%s403 + $0x9e8] sm:$0xff]
                %470 = vst [vmem:[%s404 + $0x510] sm:$0xff] %v469
                %v471 = vld [vmem:[%s403 + $0x9f0] sm:$0xff]
                %472 = vst [vmem:[%s404 + $0x518] sm:$0xff] %v471
                %v473 = vld [vmem:[%s403 + $0x9f8] sm:$0xff]
                %474 = vst [vmem:[%s404 + $0x520] sm:$0xff] %v473
                %v475 = vld [vmem:[%s403 + $0xa00] sm:$0xff]
                %476 = vst [vmem:[%s404 + $0x528] sm:$0xff] %v475
                %v477 = vld [vmem:[%s403 + $0xbd0] sm:$0xff]
                %478 = vst [vmem:[%s404 + $0x600] sm:$0xff] %v477
                %v479 = vld [vmem:[%s403 + $0xbd8] sm:$0xff]
                %480 = vst [vmem:[%s404 + $0x608] sm:$0xff] %v479
                %v481 = vld [vmem:[%s403 + $0xbe0] sm:$0xff]
                %482 = vst [vmem:[%s404 + $0x610] sm:$0xff] %v481
                %v483 = vld [vmem:[%s403 + $0xbe8] sm:$0xff]
                %484 = vst [vmem:[%s404 + $0x618] sm:$0xff] %v483
                %v485 = vld [vmem:[%s403 + $0xbf0] sm:$0xff]
                %486 = vst [vmem:[%s404 + $0x620] sm:$0xff] %v485
                %v487 = vld [vmem:[%s403 + $0xbf8] sm:$0xff]
                %488 = vst [vmem:[%s404 + $0x628] sm:$0xff] %v487
                %v489 = vld [vmem:[%s403 + $0xdc8] sm:$0xff]
                %490 = vst [vmem:[%s404 + $0x700] sm:$0xff] %v489
                %v491 = vld [vmem:[%s403 + $0xdd0] sm:$0xff]
                %492 = vst [vmem:[%s404 + $0x708] sm:$0xff] %v491
                %v493 = vld [vmem:[%s403 + $0xdd8] sm:$0xff]
                %494 = vst [vmem:[%s404 + $0x710] sm:$0xff] %v493
                %v495 = vld [vmem:[%s403 + $0xde0] sm:$0xff]
                %496 = vst [vmem:[%s404 + $0x718] sm:$0xff] %v495
                %v497 = vld [vmem:[%s403 + $0xde8] sm:$0xff]
                %498 = vst [vmem:[%s404 + $0x720] sm:$0xff] %v497
                %v499 = vld [vmem:[%s403 + $0xdf0] sm:$0xff]
                %500 = vst [vmem:[%s404 + $0x728] sm:$0xff] %v499
                %v501 = vld [vmem:[%s403 + $0xfc0] sm:$0xff]
                %502 = vst [vmem:[%s404 + $0x800] sm:$0xff] %v501
                %v503 = vld [vmem:[%s403 + $0xfc8] sm:$0xff]
                %504 = vst [vmem:[%s404 + $0x808] sm:$0xff] %v503
                %v505 = vld [vmem:[%s403 + $0xfd0] sm:$0xff]
                %506 = vst [vmem:[%s404 + $0x810] sm:$0xff] %v505
                %v507 = vld [vmem:[%s403 + $0xfd8] sm:$0xff]
                %508 = vst [vmem:[%s404 + $0x818] sm:$0xff] %v507
                %v509 = vld [vmem:[%s403 + $0xfe0] sm:$0xff]
                %510 = vst [vmem:[%s404 + $0x820] sm:$0xff] %v509
                %v511 = vld [vmem:[%s403 + $0xfe8] sm:$0xff]
                %512 = vst [vmem:[%s404 + $0x828] sm:$0xff] %v511
                %v513 = vld [vmem:[%s403 + $0x11b8] sm:$0xff]
                %514 = vst [vmem:[%s404 + $0x900] sm:$0xff] %v513
                %v515 = vld [vmem:[%s403 + $0x11c0] sm:$0xff]
                %516 = vst [vmem:[%s404 + $0x908] sm:$0xff] %v515
                %v517 = vld [vmem:[%s403 + $0x11c8] sm:$0xff]
                %518 = vst [vmem:[%s404 + $0x910] sm:$0xff] %v517
                %v519 = vld [vmem:[%s403 + $0x11d0] sm:$0xff]
                %520 = vst [vmem:[%s404 + $0x918] sm:$0xff] %v519
                %v521 = vld [vmem:[%s403 + $0x11d8] sm:$0xff]
                %522 = vst [vmem:[%s404 + $0x920] sm:$0xff] %v521
                %v523 = vld [vmem:[%s403 + $0x11e0] sm:$0xff]
                %524 = vst [vmem:[%s404 + $0x928] sm:$0xff] %v523
                %v525 = vld [vmem:[%s403 + $0x13b0] sm:$0xff]
                %526 = vst [vmem:[%s404 + $0xa00] sm:$0xff] %v525
                %v527 = vld [vmem:[%s403 + $0x13b8] sm:$0xff]
                %528 = vst [vmem:[%s404 + $0xa08] sm:$0xff] %v527
                %v529 = vld [vmem:[%s403 + $0x13c0] sm:$0xff]
                %530 = vst [vmem:[%s404 + $0xa10] sm:$0xff] %v529
                %v531 = vld [vmem:[%s403 + $0x13c8] sm:$0xff]
                %532 = vst [vmem:[%s404 + $0xa18] sm:$0xff] %v531
                %v533 = vld [vmem:[%s403 + $0x13d0] sm:$0xff]
                %534 = vst [vmem:[%s404 + $0xa20] sm:$0xff] %v533
                %v535 = vld [vmem:[%s403 + $0x13d8] sm:$0xff]
                %536 = vst [vmem:[%s404 + $0xa28] sm:$0xff] %v535
                %v537 = vld [vmem:[%s403 + $0x15a8] sm:$0xff]
                %538 = vst [vmem:[%s404 + $0xb00] sm:$0xff] %v537
                %v539 = vld [vmem:[%s403 + $0x15b0] sm:$0xff]
                %540 = vst [vmem:[%s404 + $0xb08] sm:$0xff] %v539
                %v541 = vld [vmem:[%s403 + $0x15b8] sm:$0xff]
                %542 = vst [vmem:[%s404 + $0xb10] sm:$0xff] %v541
                %v543 = vld [vmem:[%s403 + $0x15c0] sm:$0xff]
                %544 = vst [vmem:[%s404 + $0xb18] sm:$0xff] %v543
                %v545 = vld [vmem:[%s403 + $0x15c8] sm:$0xff]
                %546 = vst [vmem:[%s404 + $0xb20] sm:$0xff] %v545
                %v547 = vld [vmem:[%s403 + $0x15d0] sm:$0xff]
                %548 = vst [vmem:[%s404 + $0xb28] sm:$0xff] %v547
                %s549 = sadd.s32 1, %s402
                %p550 = scmp.ge.s32.totalorder %s549, %s394
                %s551 = scalar_select %p550, 0, %s549
                %s552 = smul.u32 %s551, 48
                %s553 = smul.u32 %s551, 48
                %s554 = scalar_lea.vmem %s385, %s552
                %s555 = scalar_lea.vmem %s375, %s553 [#allocation5]
              $region65: #{tpu_custom_call.1} parent=59 // loop_footer
                %s399 = sadd.s32 %s397, 1
              $region66: #{tpu_custom_call.1} parent=59 // loop_footer_branch
                %396 = sbr.rel target = $region62
              $region67: #{tpu_custom_call.1} parent=59 // loop_exit
                _
              %s556 = sdiv.u32.pop %s379, 6
              %s557 = srem.u32.pop %s379, 6
              %s558 = smul.u32 %s556, 6
              %s559 = smul.u32 8, %s558
              %s560 = scalar_lea.vmem %s385, %s559
              %s561 = smul.u32 8, %s558
              %s562 = scalar_lea.vmem %s375, %s561 [#allocation5]
              // While loop
              $region68: #{tpu_custom_call.1} parent=59 // loop_pre_header
                _
              $region69: #{tpu_custom_call.1} parent=59 // loop_header
                %s564 = sphi 0, %s566
                %p565 = scmp.ge.s32.totalorder %s564, %s557
                %s569 = sphi 0, %s598
                %s570 = sphi %s560, %s601
                %s571 = sphi %s562, %s602
              $region70: #{tpu_custom_call.1} parent=59 // loop_header_branch
                %568 = sbr.rel (%p565) target = $region74
              $region71: #{tpu_custom_call.1} parent=59 // loop_body
                %v572 = vld [vmem:[%s570] sm:$0xff]
                %573 = vst [vmem:[%s571] sm:$0xff] %v572
                %v574 = vld [vmem:[%s570 + $0x1f8] sm:$0xff]
                %575 = vst [vmem:[%s571 + $0x100] sm:$0xff] %v574
                %v576 = vld [vmem:[%s570 + $0x3f0] sm:$0xff]
                %577 = vst [vmem:[%s571 + $0x200] sm:$0xff] %v576
                %v578 = vld [vmem:[%s570 + $0x5e8] sm:$0xff]
                %579 = vst [vmem:[%s571 + $0x300] sm:$0xff] %v578
                %v580 = vld [vmem:[%s570 + $0x7e0] sm:$0xff]
                %581 = vst [vmem:[%s571 + $0x400] sm:$0xff] %v580
                %v582 = vld [vmem:[%s570 + $0x9d8] sm:$0xff]
                %583 = vst [vmem:[%s571 + $0x500] sm:$0xff] %v582
                %v584 = vld [vmem:[%s570 + $0xbd0] sm:$0xff]
                %585 = vst [vmem:[%s571 + $0x600] sm:$0xff] %v584
                %v586 = vld [vmem:[%s570 + $0xdc8] sm:$0xff]
                %587 = vst [vmem:[%s571 + $0x700] sm:$0xff] %v586
                %v588 = vld [vmem:[%s570 + $0xfc0] sm:$0xff]
                %589 = vst [vmem:[%s571 + $0x800] sm:$0xff] %v588
                %v590 = vld [vmem:[%s570 + $0x11b8] sm:$0xff]
                %591 = vst [vmem:[%s571 + $0x900] sm:$0xff] %v590
                %v592 = vld [vmem:[%s570 + $0x13b0] sm:$0xff]
                %593 = vst [vmem:[%s571 + $0xa00] sm:$0xff] %v592
                %v594 = vld [vmem:[%s570 + $0x15a8] sm:$0xff]
                %595 = vst [vmem:[%s571 + $0xb00] sm:$0xff] %v594
                %s596 = sadd.s32 1, %s569
                %p597 = scmp.ge.s32.totalorder %s596, %s557
                %s598 = scalar_select %p597, 0, %s596
                %s599 = smul.u32 %s598, 8
                %s600 = smul.u32 %s598, 8
                %s601 = scalar_lea.vmem %s560, %s599
                %s602 = scalar_lea.vmem %s562, %s600 [#allocation5]
              $region72: #{tpu_custom_call.1} parent=59 // loop_footer
                %s566 = sadd.s32 %s564, 1
              $region73: #{tpu_custom_call.1} parent=59 // loop_footer_branch
                %563 = sbr.rel target = $region69
              $region74: #{tpu_custom_call.1} parent=59 // loop_exit
                _
            $region60: #{tpu_custom_call.1} parent=51 // pred_fallthru
              _
          $region52: #{tpu_custom_call.1} parent=47 // pred_fallthru
            _
          %816 = vnop
        $region48: #{tpu_custom_call.1} parent=43 // pred_fallthru
          _
        // Predicated region
        $region97: #{tpu_custom_call.1} parent=43 // pred_check
          %p817 = pneg %p105
        $region98: #{tpu_custom_call.1} parent=43 // pred_check_branch
          %819 = sbr.rel (%p817) target = $region100
        $region99: #{tpu_custom_call.1} parent=43 // pred_region
          %s820 = smul.u32 32, %s30
          %p821 = scmp.lt.s32.totalorder %s29, 1
          %s822 = scalar_select %p821, %s29, 1
          %p823 = scmp.lt.s32.totalorder %s820, 63
          %s824 = scalar_select %p823, %s820, 63
          %s825 = smul.addr %s822, 64
          %s826 = sadd.s32 %s824, %s825
          %s827 = smul.addr %s826, 8
          %s828 = scalar_lea.vmem %s2, %s827
          %s829 = smul.u32 32, %s30
        $region100: #{tpu_custom_call.1} parent=43 // pred_fallthru
          _
        // Predicated region
        $region101: #{tpu_custom_call.1} parent=43 // pred_check
          %p830 = pneg %p133
        $region102: #{tpu_custom_call.1} parent=43 // pred_check_branch
          %832 = sbr.rel (%p830) target = $region104
        $region103: #{tpu_custom_call.1} parent=43 // pred_region
          %s833 = smul.u32 32, %s30
          %p834 = scmp.lt.s32.totalorder %s29, 1
          %s835 = scalar_select %p834, %s29, 1
          %p836 = scmp.lt.s32.totalorder %s833, 63
          %s837 = scalar_select %p836, %s833, 63
          %s838 = smul.addr %s835, 64
          %s839 = sadd.s32 %s837, %s838
          %s840 = smul.addr %s839, 8
          %s841 = scalar_lea.vmem %s3, %s840
          %s842 = smul.u32 32, %s30
        $region104: #{tpu_custom_call.1} parent=43 // pred_fallthru
          _
      $region44: #{tpu_custom_call.1} parent=5 // pred_fallthru
        _
      %p843 = scmp.le.s32.totalorder 1, %s22
      %p844 = scmp.lt.s32.totalorder %s22, 5
      %p845 = pnand %p843, %p844
      %p846 = pneg %p845
      // Predicated region
      $region105: #{tpu_custom_call.1} parent=5 // pred_check
        _
      $region106: #{tpu_custom_call.1} parent=5 // pred_check_branch
        %848 = sbr.rel (%p845) target = $region108
      $region107: #{tpu_custom_call.1} parent=5 // pred_region
        %s849 = ssub.s32 %s22, 1
        // Predicated region
        $region109: #{tpu_custom_call.1} parent=107 // pred_check
          %p850 = pneg %p55
        $region110: #{tpu_custom_call.1} parent=107 // pred_check_branch
          %852 = sbr.rel (%p850) target = $region112
        $region111: #{tpu_custom_call.1} parent=107 // pred_region
          %853 = dma.done [#allocation4], 16
        $region112: #{tpu_custom_call.1} parent=107 // pred_fallthru
          _
        %s854 = sand.u32 %s70, 1
        %s855 = sand.u32 %s70, 1
        %s856 = smul.addr %s855, 3072
        %s857 = scalar_lea.vmem [#allocation5], %s856
        // Predicated region
        $region113: #{tpu_custom_call.1} parent=107 // pred_check
          %p858 = pneg %p83
        $region114: #{tpu_custom_call.1} parent=107 // pred_check_branch
          %860 = sbr.rel (%p858) target = $region116
        $region115: #{tpu_custom_call.1} parent=107 // pred_region
          _
        $region116: #{tpu_custom_call.1} parent=107 // pred_fallthru
          _
        %861 = sfence
        %p862 = pneg %p55
        %p863 = pneg %p52
        %s864 = sand.u32 %s70, 1
        %s865 = sand.u32 %s70, 1
        %s866 = smul.addr %s865, 3072
        %s867 = scalar_lea.vmem [#allocation5], %s866
        %p868 = pneg %p83
        %p869 = pneg %p80
        %s870 = smul.u32 32, %s32
        %p871 = scmp.lt.s32.totalorder %s31, 1
        %s872 = scalar_select %p871, %s31, 1
        %p873 = scmp.lt.s32.totalorder %s870, 63
        %s874 = scalar_select %p873, %s870, 63
        %s875 = smul.addr %s872, 64
        %s876 = sadd.s32 %s874, %s875
        %s877 = smul.addr %s876, 8
        %s878 = scalar_lea.vmem %s2, %s877
        %p879 = pneg %p111
        %p880 = pneg %p108
        %s881 = smul.u32 32, %s32
        %p882 = scmp.lt.s32.totalorder %s31, 1
        %s883 = scalar_select %p882, %s31, 1
        %p884 = scmp.lt.s32.totalorder %s881, 63
        %s885 = scalar_select %p884, %s881, 63
        %s886 = smul.addr %s883, 64
        %s887 = sadd.s32 %s885, %s886
        %s888 = smul.addr %s887, 8
        %s889 = scalar_lea.vmem %s3, %s888
        %p890 = pneg %p139
        %p891 = pneg %p136
        %p892 = pneg %p160
        %p893 = pneg %p157
        %p894 = pneg %p181
        %p895 = pneg %p178
        %p896 = pneg %p202
        %p897 = pneg %p199
        %p898 = pneg %p223
        %p899 = pneg %p220
        %p900 = pneg %p244
        %p901 = pneg %p241
        %p902 = pneg %p265
        %p903 = pneg %p262
        %p904 = pneg %p293
        %p905 = pneg %p290
        %s906 = sand.u32 %s280, 1
        %s907 = sand.u32 %s280, 1
        %s908 = smul.addr %s907, 128
        %s909 = scalar_lea.vmem [#allocation6], %s908
        %p910 = pneg %p321
        %p911 = pneg %p318
        %s912 = sand.u32 %s308, 1
        %s913 = scalar_lea.sflag [#allocation3], %s912
        %s914 = sand.u32 %s308, 1
        %s915 = scalar_lea.vmem [#allocation7], %s914
        %s916 = smul.u32 32, %s32
        %s917 = ssub.s32 63, %s916
        %p918 = scmp.lt.s32.totalorder %s917, 32
        %s919 = scalar_select %p918, %s917, 32
        %s920 = smul.u32 1536, %s919
        %s921 = smul.u32 32, %s32
        %p922 = scmp.lt.s32.totalorder %s31, 1
        %s923 = scalar_select %p922, %s31, 1
        %p924 = scmp.lt.s32.totalorder %s921, 63
        %s925 = scalar_select %p924, %s921, 63
        %s926 = smul.addr %s923, 64
        %s927 = sadd.s32 %s925, %s926
        %s928 = smul.addr %s927, 8
        %s929 = scalar_lea.vmem %s2, %s928
        %s930 = smul.u32 32, %s32
        %s931 = smul.u32 32, %s32
        %p932 = scmp.lt.s32.totalorder %s31, 1
        %s933 = scalar_select %p932, %s31, 1
        %p934 = scmp.lt.s32.totalorder %s931, 63
        %s935 = scalar_select %p934, %s931, 63
        %s936 = smul.addr %s933, 64
        %s937 = sadd.s32 %s935, %s936
        %s938 = smul.addr %s937, 8
        %s939 = scalar_lea.vmem %s3, %s938
        %s940 = smul.u32 32, %s32
        %s941 = smul.u32 32, %s32
        %s942 = ssub.s32 63, %s941
        %p943 = scmp.lt.s32.totalorder %s942, 32
        %s944 = scalar_select %p943, %s942, 32
        %s945 = smul.u32 64, %s944
        %v947 = vld [vmem:[%s857] sm:$0xff]
        %v948 = vld [vmem:[%s857 + $0x8] sm:$0xff]
        %v949 = vld [vmem:[%s857 + $0x10] sm:$0xff]
        %v950 = vld [vmem:[%s857 + $0x18] sm:$0xff]
        %v951 = vld [vmem:[%s857 + $0x20] sm:$0xff]
        %v952 = vld [vmem:[%s857 + $0x28] sm:$0xff]
        %v953 = vld [vmem:[%s857 + $0x30] sm:$0xff]
        %v954 = vld [vmem:[%s857 + $0x38] sm:$0xff]
        %v955 = vld [vmem:[%s857 + $0x40] sm:$0xff]
        %v956 = vld [vmem:[%s857 + $0x48] sm:$0xff]
        %v957 = vld [vmem:[%s857 + $0x50] sm:$0xff]
        %v958 = vld [vmem:[%s857 + $0x58] sm:$0xff]
        %v959 = vld [vmem:[%s857 + $0x60] sm:$0xff]
        %v960 = vld [vmem:[%s857 + $0x68] sm:$0xff]
        %v961 = vld [vmem:[%s857 + $0x70] sm:$0xff]
        %v962 = vld [vmem:[%s857 + $0x78] sm:$0xff]
        %v963 = vld [vmem:[%s857 + $0x80] sm:$0xff]
        %v964 = vld [vmem:[%s857 + $0x88] sm:$0xff]
        %v965 = vld [vmem:[%s857 + $0x90] sm:$0xff]
        %v966 = vld [vmem:[%s857 + $0x98] sm:$0xff]
        %v967 = vld [vmem:[%s857 + $0xa0] sm:$0xff]
        %v968 = vld [vmem:[%s857 + $0xa8] sm:$0xff]
        %v969 = vld [vmem:[%s857 + $0xb0] sm:$0xff]
        %v970 = vld [vmem:[%s857 + $0xb8] sm:$0xff]
        %v971 = vld [vmem:[%s857 + $0xc0] sm:$0xff]
        %v972 = vld [vmem:[%s857 + $0xc8] sm:$0xff]
        %v973 = vld [vmem:[%s857 + $0xd0] sm:$0xff]
        %v974 = vld [vmem:[%s857 + $0xd8] sm:$0xff]
        %v975 = vld [vmem:[%s857 + $0xe0] sm:$0xff]
        %v976 = vld [vmem:[%s857 + $0xe8] sm:$0xff]
        %v977 = vld [vmem:[%s857 + $0xf0] sm:$0xff]
        %v978 = vld [vmem:[%s857 + $0xf8] sm:$0xff]
        %s979 = sld [smem:[#allocation2]]
        %v980 = vstv %s979
        %v981 = vmul.f32 %v947, %v980
        %v982 = vmul.f32 %v948, %v980
        %v983 = vmul.f32 %v949, %v980
        %v984 = vmul.f32 %v950, %v980
        %v985 = vmul.f32 %v951, %v980
        %v986 = vmul.f32 %v952, %v980
        %v987 = vmul.f32 %v953, %v980
        %v988 = vmul.f32 %v954, %v980
        %v989 = vmul.f32 %v955, %v980
        %v990 = vmul.f32 %v956, %v980
        %v991 = vmul.f32 %v957, %v980
        %v992 = vmul.f32 %v958, %v980
        %v993 = vmul.f32 %v959, %v980
        %v994 = vmul.f32 %v960, %v980
        %v995 = vmul.f32 %v961, %v980
        %v996 = vmul.f32 %v962, %v980
        %v997 = vmul.f32 %v963, %v980
        %v998 = vmul.f32 %v964, %v980
        %v999 = vmul.f32 %v965, %v980
        %v1000 = vmul.f32 %v966, %v980
        %v1001 = vmul.f32 %v967, %v980
        %v1002 = vmul.f32 %v968, %v980
        %v1003 = vmul.f32 %v969, %v980
        %v1004 = vmul.f32 %v970, %v980
        %v1005 = vmul.f32 %v971, %v980
        %v1006 = vmul.f32 %v972, %v980
        %v1007 = vmul.f32 %v973, %v980
        %v1008 = vmul.f32 %v974, %v980
        %v1009 = vmul.f32 %v975, %v980
        %v1010 = vmul.f32 %v976, %v980
        %v1011 = vmul.f32 %v977, %v980
        %v1012 = vmul.f32 %v978, %v980
        %s1013 = scalar_lea.vmem %s857, 256 [#allocation5]
        %v1014 = vld [vmem:[%s1013] sm:$0xff]
        %v1015 = vld [vmem:[%s1013 + $0x8] sm:$0xff]
        %v1016 = vld [vmem:[%s1013 + $0x10] sm:$0xff]
        %v1017 = vld [vmem:[%s1013 + $0x18] sm:$0xff]
        %v1018 = vld [vmem:[%s1013 + $0x20] sm:$0xff]
        %v1019 = vld [vmem:[%s1013 + $0x28] sm:$0xff]
        %v1020 = vld [vmem:[%s1013 + $0x30] sm:$0xff]
        %v1021 = vld [vmem:[%s1013 + $0x38] sm:$0xff]
        %v1022 = vld [vmem:[%s1013 + $0x40] sm:$0xff]
        %v1023 = vld [vmem:[%s1013 + $0x48] sm:$0xff]
        %v1024 = vld [vmem:[%s1013 + $0x50] sm:$0xff]
        %v1025 = vld [vmem:[%s1013 + $0x58] sm:$0xff]
        %v1026 = vld [vmem:[%s1013 + $0x60] sm:$0xff]
        %v1027 = vld [vmem:[%s1013 + $0x68] sm:$0xff]
        %v1028 = vld [vmem:[%s1013 + $0x70] sm:$0xff]
        %v1029 = vld [vmem:[%s1013 + $0x78] sm:$0xff]
        %v1030 = vld [vmem:[%s1013 + $0x80] sm:$0xff]
        %v1031 = vld [vmem:[%s1013 + $0x88] sm:$0xff]
        %v1032 = vld [vmem:[%s1013 + $0x90] sm:$0xff]
        %v1033 = vld [vmem:[%s1013 + $0x98] sm:$0xff]
        %v1034 = vld [vmem:[%s1013 + $0xa0] sm:$0xff]
        %v1035 = vld [vmem:[%s1013 + $0xa8] sm:$0xff]
        %v1036 = vld [vmem:[%s1013 + $0xb0] sm:$0xff]
        %v1037 = vld [vmem:[%s1013 + $0xb8] sm:$0xff]
        %v1038 = vld [vmem:[%s1013 + $0xc0] sm:$0xff]
        %v1039 = vld [vmem:[%s1013 + $0xc8] sm:$0xff]
        %v1040 = vld [vmem:[%s1013 + $0xd0] sm:$0xff]
        %v1041 = vld [vmem:[%s1013 + $0xd8] sm:$0xff]
        %v1042 = vld [vmem:[%s1013 + $0xe0] sm:$0xff]
        %v1043 = vld [vmem:[%s1013 + $0xe8] sm:$0xff]
        %v1044 = vld [vmem:[%s1013 + $0xf0] sm:$0xff]
        %v1045 = vld [vmem:[%s1013 + $0xf8] sm:$0xff]
        %s1046 = sld [smem:[#allocation2 + $0x1]]
        %v1047 = vstv %s1046
        %v1048 = vmul.f32 %v1014, %v1047
        %v1049 = vmul.f32 %v1015, %v1047
        %v1050 = vmul.f32 %v1016, %v1047
        %v1051 = vmul.f32 %v1017, %v1047
        %v1052 = vmul.f32 %v1018, %v1047
        %v1053 = vmul.f32 %v1019, %v1047
        %v1054 = vmul.f32 %v1020, %v1047
        %v1055 = vmul.f32 %v1021, %v1047
        %v1056 = vmul.f32 %v1022, %v1047
        %v1057 = vmul.f32 %v1023, %v1047
        %v1058 = vmul.f32 %v1024, %v1047
        %v1059 = vmul.f32 %v1025, %v1047
        %v1060 = vmul.f32 %v1026, %v1047
        %v1061 = vmul.f32 %v1027, %v1047
        %v1062 = vmul.f32 %v1028, %v1047
        %v1063 = vmul.f32 %v1029, %v1047
        %v1064 = vmul.f32 %v1030, %v1047
        %v1065 = vmul.f32 %v1031, %v1047
        %v1066 = vmul.f32 %v1032, %v1047
        %v1067 = vmul.f32 %v1033, %v1047
        %v1068 = vmul.f32 %v1034, %v1047
        %v1069 = vmul.f32 %v1035, %v1047
        %v1070 = vmul.f32 %v1036, %v1047
        %v1071 = vmul.f32 %v1037, %v1047
        %v1072 = vmul.f32 %v1038, %v1047
        %v1073 = vmul.f32 %v1039, %v1047
        %v1074 = vmul.f32 %v1040, %v1047
        %v1075 = vmul.f32 %v1041, %v1047
        %v1076 = vmul.f32 %v1042, %v1047
        %v1077 = vmul.f32 %v1043, %v1047
        %v1078 = vmul.f32 %v1044, %v1047
        %v1079 = vmul.f32 %v1045, %v1047
        %v1080 = vadd.f32 %v981, %v1048
        %v1081 = vadd.f32 %v982, %v1049
        %v1082 = vadd.f32 %v983, %v1050
        %v1083 = vadd.f32 %v984, %v1051
        %v1084 = vadd.f32 %v985, %v1052
        %v1085 = vadd.f32 %v986, %v1053
        %v1086 = vadd.f32 %v987, %v1054
        %v1087 = vadd.f32 %v988, %v1055
        %v1088 = vadd.f32 %v989, %v1056
        %v1089 = vadd.f32 %v990, %v1057
        %v1090 = vadd.f32 %v991, %v1058
        %v1091 = vadd.f32 %v992, %v1059
        %v1092 = vadd.f32 %v993, %v1060
        %v1093 = vadd.f32 %v994, %v1061
        %v1094 = vadd.f32 %v995, %v1062
        %v1095 = vadd.f32 %v996, %v1063
        %v1096 = vadd.f32 %v997, %v1064
        %v1097 = vadd.f32 %v998, %v1065
        %v1098 = vadd.f32 %v999, %v1066
        %v1099 = vadd.f32 %v1000, %v1067
        %v1100 = vadd.f32 %v1001, %v1068
        %v1101 = vadd.f32 %v1002, %v1069
        %v1102 = vadd.f32 %v1003, %v1070
        %v1103 = vadd.f32 %v1004, %v1071
        %v1104 = vadd.f32 %v1005, %v1072
        %v1105 = vadd.f32 %v1006, %v1073
        %v1106 = vadd.f32 %v1007, %v1074
        %v1107 = vadd.f32 %v1008, %v1075
        %v1108 = vadd.f32 %v1009, %v1076
        %v1109 = vadd.f32 %v1010, %v1077
        %v1110 = vadd.f32 %v1011, %v1078
        %v1111 = vadd.f32 %v1012, %v1079
        %s1112 = scalar_lea.vmem %s857, 512 [#allocation5]
        %v1113 = vld [vmem:[%s1112] sm:$0xff]
        %v1114 = vld [vmem:[%s1112 + $0x8] sm:$0xff]
        %v1115 = vld [vmem:[%s1112 + $0x10] sm:$0xff]
        %v1116 = vld [vmem:[%s1112 + $0x18] sm:$0xff]
        %v1117 = vld [vmem:[%s1112 + $0x20] sm:$0xff]
        %v1118 = vld [vmem:[%s1112 + $0x28] sm:$0xff]
        %v1119 = vld [vmem:[%s1112 + $0x30] sm:$0xff]
        %v1120 = vld [vmem:[%s1112 + $0x38] sm:$0xff]
        %v1121 = vld [vmem:[%s1112 + $0x40] sm:$0xff]
        %v1122 = vld [vmem:[%s1112 + $0x48] sm:$0xff]
        %v1123 = vld [vmem:[%s1112 + $0x50] sm:$0xff]
        %v1124 = vld [vmem:[%s1112 + $0x58] sm:$0xff]
        %v1125 = vld [vmem:[%s1112 + $0x60] sm:$0xff]
        %v1126 = vld [vmem:[%s1112 + $0x68] sm:$0xff]
        %v1127 = vld [vmem:[%s1112 + $0x70] sm:$0xff]
        %v1128 = vld [vmem:[%s1112 + $0x78] sm:$0xff]
        %v1129 = vld [vmem:[%s1112 + $0x80] sm:$0xff]
        %v1130 = vld [vmem:[%s1112 + $0x88] sm:$0xff]
        %v1131 = vld [vmem:[%s1112 + $0x90] sm:$0xff]
        %v1132 = vld [vmem:[%s1112 + $0x98] sm:$0xff]
        %v1133 = vld [vmem:[%s1112 + $0xa0] sm:$0xff]
        %v1134 = vld [vmem:[%s1112 + $0xa8] sm:$0xff]
        %v1135 = vld [vmem:[%s1112 + $0xb0] sm:$0xff]
        %v1136 = vld [vmem:[%s1112 + $0xb8] sm:$0xff]
        %v1137 = vld [vmem:[%s1112 + $0xc0] sm:$0xff]
        %v1138 = vld [vmem:[%s1112 + $0xc8] sm:$0xff]
        %v1139 = vld [vmem:[%s1112 + $0xd0] sm:$0xff]
        %v1140 = vld [vmem:[%s1112 + $0xd8] sm:$0xff]
        %v1141 = vld [vmem:[%s1112 + $0xe0] sm:$0xff]
        %v1142 = vld [vmem:[%s1112 + $0xe8] sm:$0xff]
        %v1143 = vld [vmem:[%s1112 + $0xf0] sm:$0xff]
        %v1144 = vld [vmem:[%s1112 + $0xf8] sm:$0xff]
        %s1145 = sld [smem:[#allocation2 + $0x2]]
        %v1146 = vstv %s1145
        %v1147 = vmul.f32 %v1113, %v1146
        %v1148 = vmul.f32 %v1114, %v1146
        %v1149 = vmul.f32 %v1115, %v1146
        %v1150 = vmul.f32 %v1116, %v1146
        %v1151 = vmul.f32 %v1117, %v1146
        %v1152 = vmul.f32 %v1118, %v1146
        %v1153 = vmul.f32 %v1119, %v1146
        %v1154 = vmul.f32 %v1120, %v1146
        %v1155 = vmul.f32 %v1121, %v1146
        %v1156 = vmul.f32 %v1122, %v1146
        %v1157 = vmul.f32 %v1123, %v1146
        %v1158 = vmul.f32 %v1124, %v1146
        %v1159 = vmul.f32 %v1125, %v1146
        %v1160 = vmul.f32 %v1126, %v1146
        %v1161 = vmul.f32 %v1127, %v1146
        %v1162 = vmul.f32 %v1128, %v1146
        %v1163 = vmul.f32 %v1129, %v1146
        %v1164 = vmul.f32 %v1130, %v1146
        %v1165 = vmul.f32 %v1131, %v1146
        %v1166 = vmul.f32 %v1132, %v1146
        %v1167 = vmul.f32 %v1133, %v1146
        %v1168 = vmul.f32 %v1134, %v1146
        %v1169 = vmul.f32 %v1135, %v1146
        %v1170 = vmul.f32 %v1136, %v1146
        %v1171 = vmul.f32 %v1137, %v1146
        %v1172 = vmul.f32 %v1138, %v1146
        %v1173 = vmul.f32 %v1139, %v1146
        %v1174 = vmul.f32 %v1140, %v1146
        %v1175 = vmul.f32 %v1141, %v1146
        %v1176 = vmul.f32 %v1142, %v1146
        %v1177 = vmul.f32 %v1143, %v1146
        %v1178 = vmul.f32 %v1144, %v1146
        %v1179 = vadd.f32 %v1080, %v1147
        %v1180 = vadd.f32 %v1081, %v1148
        %v1181 = vadd.f32 %v1082, %v1149
        %v1182 = vadd.f32 %v1083, %v1150
        %v1183 = vadd.f32 %v1084, %v1151
        %v1184 = vadd.f32 %v1085, %v1152
        %v1185 = vadd.f32 %v1086, %v1153
        %v1186 = vadd.f32 %v1087, %v1154
        %v1187 = vadd.f32 %v1088, %v1155
        %v1188 = vadd.f32 %v1089, %v1156
        %v1189 = vadd.f32 %v1090, %v1157
        %v1190 = vadd.f32 %v1091, %v1158
        %v1191 = vadd.f32 %v1092, %v1159
        %v1192 = vadd.f32 %v1093, %v1160
        %v1193 = vadd.f32 %v1094, %v1161
        %v1194 = vadd.f32 %v1095, %v1162
        %v1195 = vadd.f32 %v1096, %v1163
        %v1196 = vadd.f32 %v1097, %v1164
        %v1197 = vadd.f32 %v1098, %v1165
        %v1198 = vadd.f32 %v1099, %v1166
        %v1199 = vadd.f32 %v1100, %v1167
        %v1200 = vadd.f32 %v1101, %v1168
        %v1201 = vadd.f32 %v1102, %v1169
        %v1202 = vadd.f32 %v1103, %v1170
        %v1203 = vadd.f32 %v1104, %v1171
        %v1204 = vadd.f32 %v1105, %v1172
        %v1205 = vadd.f32 %v1106, %v1173
        %v1206 = vadd.f32 %v1107, %v1174
        %v1207 = vadd.f32 %v1108, %v1175
        %v1208 = vadd.f32 %v1109, %v1176
        %v1209 = vadd.f32 %v1110, %v1177
        %v1210 = vadd.f32 %v1111, %v1178
        %s1211 = scalar_lea.vmem %s857, 768 [#allocation5]
        %v1212 = vld [vmem:[%s1211] sm:$0xff]
        %v1213 = vld [vmem:[%s1211 + $0x8] sm:$0xff]
        %v1214 = vld [vmem:[%s1211 + $0x10] sm:$0xff]
        %v1215 = vld [vmem:[%s1211 + $0x18] sm:$0xff]
        %v1216 = vld [vmem:[%s1211 + $0x20] sm:$0xff]
        %v1217 = vld [vmem:[%s1211 + $0x28] sm:$0xff]
        %v1218 = vld [vmem:[%s1211 + $0x30] sm:$0xff]
        %v1219 = vld [vmem:[%s1211 + $0x38] sm:$0xff]
        %v1220 = vld [vmem:[%s1211 + $0x40] sm:$0xff]
        %v1221 = vld [vmem:[%s1211 + $0x48] sm:$0xff]
        %v1222 = vld [vmem:[%s1211 + $0x50] sm:$0xff]
        %v1223 = vld [vmem:[%s1211 + $0x58] sm:$0xff]
        %v1224 = vld [vmem:[%s1211 + $0x60] sm:$0xff]
        %v1225 = vld [vmem:[%s1211 + $0x68] sm:$0xff]
        %v1226 = vld [vmem:[%s1211 + $0x70] sm:$0xff]
        %v1227 = vld [vmem:[%s1211 + $0x78] sm:$0xff]
        %v1228 = vld [vmem:[%s1211 + $0x80] sm:$0xff]
        %v1229 = vld [vmem:[%s1211 + $0x88] sm:$0xff]
        %v1230 = vld [vmem:[%s1211 + $0x90] sm:$0xff]
        %v1231 = vld [vmem:[%s1211 + $0x98] sm:$0xff]
        %v1232 = vld [vmem:[%s1211 + $0xa0] sm:$0xff]
        %v1233 = vld [vmem:[%s1211 + $0xa8] sm:$0xff]
        %v1234 = vld [vmem:[%s1211 + $0xb0] sm:$0xff]
        %v1235 = vld [vmem:[%s1211 + $0xb8] sm:$0xff]
        %v1236 = vld [vmem:[%s1211 + $0xc0] sm:$0xff]
        %v1237 = vld [vmem:[%s1211 + $0xc8] sm:$0xff]
        %v1238 = vld [vmem:[%s1211 + $0xd0] sm:$0xff]
        %v1239 = vld [vmem:[%s1211 + $0xd8] sm:$0xff]
        %v1240 = vld [vmem:[%s1211 + $0xe0] sm:$0xff]
        %v1241 = vld [vmem:[%s1211 + $0xe8] sm:$0xff]
        %v1242 = vld [vmem:[%s1211 + $0xf0] sm:$0xff]
        %v1243 = vld [vmem:[%s1211 + $0xf8] sm:$0xff]
        %s1244 = sld [smem:[#allocation2 + $0x3]]
        %v1245 = vstv %s1244
        %v1246 = vmul.f32 %v1212, %v1245
        %v1247 = vmul.f32 %v1213, %v1245
        %v1248 = vmul.f32 %v1214, %v1245
        %v1249 = vmul.f32 %v1215, %v1245
        %v1250 = vmul.f32 %v1216, %v1245
        %v1251 = vmul.f32 %v1217, %v1245
        %v1252 = vmul.f32 %v1218, %v1245
        %v1253 = vmul.f32 %v1219, %v1245
        %v1254 = vmul.f32 %v1220, %v1245
        %v1255 = vmul.f32 %v1221, %v1245
        %v1256 = vmul.f32 %v1222, %v1245
        %v1257 = vmul.f32 %v1223, %v1245
        %v1258 = vmul.f32 %v1224, %v1245
        %v1259 = vmul.f32 %v1225, %v1245
        %v1260 = vmul.f32 %v1226, %v1245
        %v1261 = vmul.f32 %v1227, %v1245
        %v1262 = vmul.f32 %v1228, %v1245
        %v1263 = vmul.f32 %v1229, %v1245
        %v1264 = vmul.f32 %v1230, %v1245
        %v1265 = vmul.f32 %v1231, %v1245
        %v1266 = vmul.f32 %v1232, %v1245
        %v1267 = vmul.f32 %v1233, %v1245
        %v1268 = vmul.f32 %v1234, %v1245
        %v1269 = vmul.f32 %v1235, %v1245
        %v1270 = vmul.f32 %v1236, %v1245
        %v1271 = vmul.f32 %v1237, %v1245
        %v1272 = vmul.f32 %v1238, %v1245
        %v1273 = vmul.f32 %v1239, %v1245
        %v1274 = vmul.f32 %v1240, %v1245
        %v1275 = vmul.f32 %v1241, %v1245
        %v1276 = vmul.f32 %v1242, %v1245
        %v1277 = vmul.f32 %v1243, %v1245
        %v1278 = vadd.f32 %v1179, %v1246
        %v1279 = vadd.f32 %v1180, %v1247
        %v1280 = vadd.f32 %v1181, %v1248
        %v1281 = vadd.f32 %v1182, %v1249
        %v1282 = vadd.f32 %v1183, %v1250
        %v1283 = vadd.f32 %v1184, %v1251
        %v1284 = vadd.f32 %v1185, %v1252
        %v1285 = vadd.f32 %v1186, %v1253
        %v1286 = vadd.f32 %v1187, %v1254
        %v1287 = vadd.f32 %v1188, %v1255
        %v1288 = vadd.f32 %v1189, %v1256
        %v1289 = vadd.f32 %v1190, %v1257
        %v1290 = vadd.f32 %v1191, %v1258
        %v1291 = vadd.f32 %v1192, %v1259
        %v1292 = vadd.f32 %v1193, %v1260
        %v1293 = vadd.f32 %v1194, %v1261
        %v1294 = vadd.f32 %v1195, %v1262
        %v1295 = vadd.f32 %v1196, %v1263
        %v1296 = vadd.f32 %v1197, %v1264
        %v1297 = vadd.f32 %v1198, %v1265
        %v1298 = vadd.f32 %v1199, %v1266
        %v1299 = vadd.f32 %v1200, %v1267
        %v1300 = vadd.f32 %v1201, %v1268
        %v1301 = vadd.f32 %v1202, %v1269
        %v1302 = vadd.f32 %v1203, %v1270
        %v1303 = vadd.f32 %v1204, %v1271
        %v1304 = vadd.f32 %v1205, %v1272
        %v1305 = vadd.f32 %v1206, %v1273
        %v1306 = vadd.f32 %v1207, %v1274
        %v1307 = vadd.f32 %v1208, %v1275
        %v1308 = vadd.f32 %v1209, %v1276
        %v1309 = vadd.f32 %v1210, %v1277
        %s1310 = scalar_lea.vmem %s857, 1024 [#allocation5]
        %v1311 = vld [vmem:[%s1310] sm:$0xff]
        %v1312 = vld [vmem:[%s1310 + $0x8] sm:$0xff]
        %v1313 = vld [vmem:[%s1310 + $0x10] sm:$0xff]
        %v1314 = vld [vmem:[%s1310 + $0x18] sm:$0xff]
        %v1315 = vld [vmem:[%s1310 + $0x20] sm:$0xff]
        %v1316 = vld [vmem:[%s1310 + $0x28] sm:$0xff]
        %v1317 = vld [vmem:[%s1310 + $0x30] sm:$0xff]
        %v1318 = vld [vmem:[%s1310 + $0x38] sm:$0xff]
        %v1319 = vld [vmem:[%s1310 + $0x40] sm:$0xff]
        %v1320 = vld [vmem:[%s1310 + $0x48] sm:$0xff]
        %v1321 = vld [vmem:[%s1310 + $0x50] sm:$0xff]
        %v1322 = vld [vmem:[%s1310 + $0x58] sm:$0xff]
        %v1323 = vld [vmem:[%s1310 + $0x60] sm:$0xff]
        %v1324 = vld [vmem:[%s1310 + $0x68] sm:$0xff]
        %v1325 = vld [vmem:[%s1310 + $0x70] sm:$0xff]
        %v1326 = vld [vmem:[%s1310 + $0x78] sm:$0xff]
        %v1327 = vld [vmem:[%s1310 + $0x80] sm:$0xff]
        %v1328 = vld [vmem:[%s1310 + $0x88] sm:$0xff]
        %v1329 = vld [vmem:[%s1310 + $0x90] sm:$0xff]
        %v1330 = vld [vmem:[%s1310 + $0x98] sm:$0xff]
        %v1331 = vld [vmem:[%s1310 + $0xa0] sm:$0xff]
        %v1332 = vld [vmem:[%s1310 + $0xa8] sm:$0xff]
        %v1333 = vld [vmem:[%s1310 + $0xb0] sm:$0xff]
        %v1334 = vld [vmem:[%s1310 + $0xb8] sm:$0xff]
        %v1335 = vld [vmem:[%s1310 + $0xc0] sm:$0xff]
        %v1336 = vld [vmem:[%s1310 + $0xc8] sm:$0xff]
        %v1337 = vld [vmem:[%s1310 + $0xd0] sm:$0xff]
        %v1338 = vld [vmem:[%s1310 + $0xd8] sm:$0xff]
        %v1339 = vld [vmem:[%s1310 + $0xe0] sm:$0xff]
        %v1340 = vld [vmem:[%s1310 + $0xe8] sm:$0xff]
        %v1341 = vld [vmem:[%s1310 + $0xf0] sm:$0xff]
        %v1342 = vld [vmem:[%s1310 + $0xf8] sm:$0xff]
        %s1343 = sld [smem:[#allocation2 + $0x4]]
        %v1344 = vstv %s1343
        %v1345 = vmul.f32 %v1311, %v1344
        %v1346 = vmul.f32 %v1312, %v1344
        %v1347 = vmul.f32 %v1313, %v1344
        %v1348 = vmul.f32 %v1314, %v1344
        %v1349 = vmul.f32 %v1315, %v1344
        %v1350 = vmul.f32 %v1316, %v1344
        %v1351 = vmul.f32 %v1317, %v1344
        %v1352 = vmul.f32 %v1318, %v1344
        %v1353 = vmul.f32 %v1319, %v1344
        %v1354 = vmul.f32 %v1320, %v1344
        %v1355 = vmul.f32 %v1321, %v1344
        %v1356 = vmul.f32 %v1322, %v1344
        %v1357 = vmul.f32 %v1323, %v1344
        %v1358 = vmul.f32 %v1324, %v1344
        %v1359 = vmul.f32 %v1325, %v1344
        %v1360 = vmul.f32 %v1326, %v1344
        %v1361 = vmul.f32 %v1327, %v1344
        %v1362 = vmul.f32 %v1328, %v1344
        %v1363 = vmul.f32 %v1329, %v1344
        %v1364 = vmul.f32 %v1330, %v1344
        %v1365 = vmul.f32 %v1331, %v1344
        %v1366 = vmul.f32 %v1332, %v1344
        %v1367 = vmul.f32 %v1333, %v1344
        %v1368 = vmul.f32 %v1334, %v1344
        %v1369 = vmul.f32 %v1335, %v1344
        %v1370 = vmul.f32 %v1336, %v1344
        %v1371 = vmul.f32 %v1337, %v1344
        %v1372 = vmul.f32 %v1338, %v1344
        %v1373 = vmul.f32 %v1339, %v1344
        %v1374 = vmul.f32 %v1340, %v1344
        %v1375 = vmul.f32 %v1341, %v1344
        %v1376 = vmul.f32 %v1342, %v1344
        %v1377 = vadd.f32 %v1278, %v1345
        %v1378 = vadd.f32 %v1279, %v1346
        %v1379 = vadd.f32 %v1280, %v1347
        %v1380 = vadd.f32 %v1281, %v1348
        %v1381 = vadd.f32 %v1282, %v1349
        %v1382 = vadd.f32 %v1283, %v1350
        %v1383 = vadd.f32 %v1284, %v1351
        %v1384 = vadd.f32 %v1285, %v1352
        %v1385 = vadd.f32 %v1286, %v1353
        %v1386 = vadd.f32 %v1287, %v1354
        %v1387 = vadd.f32 %v1288, %v1355
        %v1388 = vadd.f32 %v1289, %v1356
        %v1389 = vadd.f32 %v1290, %v1357
        %v1390 = vadd.f32 %v1291, %v1358
        %v1391 = vadd.f32 %v1292, %v1359
        %v1392 = vadd.f32 %v1293, %v1360
        %v1393 = vadd.f32 %v1294, %v1361
        %v1394 = vadd.f32 %v1295, %v1362
        %v1395 = vadd.f32 %v1296, %v1363
        %v1396 = vadd.f32 %v1297, %v1364
        %v1397 = vadd.f32 %v1298, %v1365
        %v1398 = vadd.f32 %v1299, %v1366
        %v1399 = vadd.f32 %v1300, %v1367
        %v1400 = vadd.f32 %v1301, %v1368
        %v1401 = vadd.f32 %v1302, %v1369
        %v1402 = vadd.f32 %v1303, %v1370
        %v1403 = vadd.f32 %v1304, %v1371
        %v1404 = vadd.f32 %v1305, %v1372
        %v1405 = vadd.f32 %v1306, %v1373
        %v1406 = vadd.f32 %v1307, %v1374
        %v1407 = vadd.f32 %v1308, %v1375
        %v1408 = vadd.f32 %v1309, %v1376
        %s1409 = scalar_lea.vmem %s857, 1280 [#allocation5]
        %v1410 = vld [vmem:[%s1409] sm:$0xff]
        %v1411 = vld [vmem:[%s1409 + $0x8] sm:$0xff]
        %v1412 = vld [vmem:[%s1409 + $0x10] sm:$0xff]
        %v1413 = vld [vmem:[%s1409 + $0x18] sm:$0xff]
        %v1414 = vld [vmem:[%s1409 + $0x20] sm:$0xff]
        %v1415 = vld [vmem:[%s1409 + $0x28] sm:$0xff]
        %v1416 = vld [vmem:[%s1409 + $0x30] sm:$0xff]
        %v1417 = vld [vmem:[%s1409 + $0x38] sm:$0xff]
        %v1418 = vld [vmem:[%s1409 + $0x40] sm:$0xff]
        %v1419 = vld [vmem:[%s1409 + $0x48] sm:$0xff]
        %v1420 = vld [vmem:[%s1409 + $0x50] sm:$0xff]
        %v1421 = vld [vmem:[%s1409 + $0x58] sm:$0xff]
        %v1422 = vld [vmem:[%s1409 + $0x60] sm:$0xff]
        %v1423 = vld [vmem:[%s1409 + $0x68] sm:$0xff]
        %v1424 = vld [vmem:[%s1409 + $0x70] sm:$0xff]
        %v1425 = vld [vmem:[%s1409 + $0x78] sm:$0xff]
        %v1426 = vld [vmem:[%s1409 + $0x80] sm:$0xff]
        %v1427 = vld [vmem:[%s1409 + $0x88] sm:$0xff]
        %v1428 = vld [vmem:[%s1409 + $0x90] sm:$0xff]
        %v1429 = vld [vmem:[%s1409 + $0x98] sm:$0xff]
        %v1430 = vld [vmem:[%s1409 + $0xa0] sm:$0xff]
        %v1431 = vld [vmem:[%s1409 + $0xa8] sm:$0xff]
        %v1432 = vld [vmem:[%s1409 + $0xb0] sm:$0xff]
        %v1433 = vld [vmem:[%s1409 + $0xb8] sm:$0xff]
        %v1434 = vld [vmem:[%s1409 + $0xc0] sm:$0xff]
        %v1435 = vld [vmem:[%s1409 + $0xc8] sm:$0xff]
        %v1436 = vld [vmem:[%s1409 + $0xd0] sm:$0xff]
        %v1437 = vld [vmem:[%s1409 + $0xd8] sm:$0xff]
        %v1438 = vld [vmem:[%s1409 + $0xe0] sm:$0xff]
        %v1439 = vld [vmem:[%s1409 + $0xe8] sm:$0xff]
        %v1440 = vld [vmem:[%s1409 + $0xf0] sm:$0xff]
        %v1441 = vld [vmem:[%s1409 + $0xf8] sm:$0xff]
        %s1442 = sld [smem:[#allocation2 + $0x5]]
        %v1443 = vstv %s1442
        %v1444 = vmul.f32 %v1410, %v1443
        %v1445 = vmul.f32 %v1411, %v1443
        %v1446 = vmul.f32 %v1412, %v1443
        %v1447 = vmul.f32 %v1413, %v1443
        %v1448 = vmul.f32 %v1414, %v1443
        %v1449 = vmul.f32 %v1415, %v1443
        %v1450 = vmul.f32 %v1416, %v1443
        %v1451 = vmul.f32 %v1417, %v1443
        %v1452 = vmul.f32 %v1418, %v1443
        %v1453 = vmul.f32 %v1419, %v1443
        %v1454 = vmul.f32 %v1420, %v1443
        %v1455 = vmul.f32 %v1421, %v1443
        %v1456 = vmul.f32 %v1422, %v1443
        %v1457 = vmul.f32 %v1423, %v1443
        %v1458 = vmul.f32 %v1424, %v1443
        %v1459 = vmul.f32 %v1425, %v1443
        %v1460 = vmul.f32 %v1426, %v1443
        %v1461 = vmul.f32 %v1427, %v1443
        %v1462 = vmul.f32 %v1428, %v1443
        %v1463 = vmul.f32 %v1429, %v1443
        %v1464 = vmul.f32 %v1430, %v1443
        %v1465 = vmul.f32 %v1431, %v1443
        %v1466 = vmul.f32 %v1432, %v1443
        %v1467 = vmul.f32 %v1433, %v1443
        %v1468 = vmul.f32 %v1434, %v1443
        %v1469 = vmul.f32 %v1435, %v1443
        %v1470 = vmul.f32 %v1436, %v1443
        %v1471 = vmul.f32 %v1437, %v1443
        %v1472 = vmul.f32 %v1438, %v1443
        %v1473 = vmul.f32 %v1439, %v1443
        %v1474 = vmul.f32 %v1440, %v1443
        %v1475 = vmul.f32 %v1441, %v1443
        %v1476 = vadd.f32 %v1377, %v1444
        %v1477 = vadd.f32 %v1378, %v1445
        %v1478 = vadd.f32 %v1379, %v1446
        %v1479 = vadd.f32 %v1380, %v1447
        %v1480 = vadd.f32 %v1381, %v1448
        %v1481 = vadd.f32 %v1382, %v1449
        %v1482 = vadd.f32 %v1383, %v1450
        %v1483 = vadd.f32 %v1384, %v1451
        %v1484 = vadd.f32 %v1385, %v1452
        %v1485 = vadd.f32 %v1386, %v1453
        %v1486 = vadd.f32 %v1387, %v1454
        %v1487 = vadd.f32 %v1388, %v1455
        %v1488 = vadd.f32 %v1389, %v1456
        %v1489 = vadd.f32 %v1390, %v1457
        %v1490 = vadd.f32 %v1391, %v1458
        %v1491 = vadd.f32 %v1392, %v1459
        %v1492 = vadd.f32 %v1393, %v1460
        %v1493 = vadd.f32 %v1394, %v1461
        %v1494 = vadd.f32 %v1395, %v1462
        %v1495 = vadd.f32 %v1396, %v1463
        %v1496 = vadd.f32 %v1397, %v1464
        %v1497 = vadd.f32 %v1398, %v1465
        %v1498 = vadd.f32 %v1399, %v1466
        %v1499 = vadd.f32 %v1400, %v1467
        %v1500 = vadd.f32 %v1401, %v1468
        %v1501 = vadd.f32 %v1402, %v1469
        %v1502 = vadd.f32 %v1403, %v1470
        %v1503 = vadd.f32 %v1404, %v1471
        %v1504 = vadd.f32 %v1405, %v1472
        %v1505 = vadd.f32 %v1406, %v1473
        %v1506 = vadd.f32 %v1407, %v1474
        %v1507 = vadd.f32 %v1408, %v1475
        %s1508 = scalar_lea.vmem %s857, 1536 [#allocation5]
        %v1509 = vld [vmem:[%s1508] sm:$0xff]
        %v1510 = vld [vmem:[%s1508 + $0x8] sm:$0xff]
        %v1511 = vld [vmem:[%s1508 + $0x10] sm:$0xff]
        %v1512 = vld [vmem:[%s1508 + $0x18] sm:$0xff]
        %v1513 = vld [vmem:[%s1508 + $0x20] sm:$0xff]
        %v1514 = vld [vmem:[%s1508 + $0x28] sm:$0xff]
        %v1515 = vld [vmem:[%s1508 + $0x30] sm:$0xff]
        %v1516 = vld [vmem:[%s1508 + $0x38] sm:$0xff]
        %v1517 = vld [vmem:[%s1508 + $0x40] sm:$0xff]
        %v1518 = vld [vmem:[%s1508 + $0x48] sm:$0xff]
        %v1519 = vld [vmem:[%s1508 + $0x50] sm:$0xff]
        %v1520 = vld [vmem:[%s1508 + $0x58] sm:$0xff]
        %v1521 = vld [vmem:[%s1508 + $0x60] sm:$0xff]
        %v1522 = vld [vmem:[%s1508 + $0x68] sm:$0xff]
        %v1523 = vld [vmem:[%s1508 + $0x70] sm:$0xff]
        %v1524 = vld [vmem:[%s1508 + $0x78] sm:$0xff]
        %v1525 = vld [vmem:[%s1508 + $0x80] sm:$0xff]
        %v1526 = vld [vmem:[%s1508 + $0x88] sm:$0xff]
        %v1527 = vld [vmem:[%s1508 + $0x90] sm:$0xff]
        %v1528 = vld [vmem:[%s1508 + $0x98] sm:$0xff]
        %v1529 = vld [vmem:[%s1508 + $0xa0] sm:$0xff]
        %v1530 = vld [vmem:[%s1508 + $0xa8] sm:$0xff]
        %v1531 = vld [vmem:[%s1508 + $0xb0] sm:$0xff]
        %v1532 = vld [vmem:[%s1508 + $0xb8] sm:$0xff]
        %v1533 = vld [vmem:[%s1508 + $0xc0] sm:$0xff]
        %v1534 = vld [vmem:[%s1508 + $0xc8] sm:$0xff]
        %v1535 = vld [vmem:[%s1508 + $0xd0] sm:$0xff]
        %v1536 = vld [vmem:[%s1508 + $0xd8] sm:$0xff]
        %v1537 = vld [vmem:[%s1508 + $0xe0] sm:$0xff]
        %v1538 = vld [vmem:[%s1508 + $0xe8] sm:$0xff]
        %v1539 = vld [vmem:[%s1508 + $0xf0] sm:$0xff]
        %v1540 = vld [vmem:[%s1508 + $0xf8] sm:$0xff]
        %s1541 = sld [smem:[#allocation2 + $0x6]]
        %v1542 = vstv %s1541
        %v1543 = vmul.f32 %v1509, %v1542
        %v1544 = vmul.f32 %v1510, %v1542
        %v1545 = vmul.f32 %v1511, %v1542
        %v1546 = vmul.f32 %v1512, %v1542
        %v1547 = vmul.f32 %v1513, %v1542
        %v1548 = vmul.f32 %v1514, %v1542
        %v1549 = vmul.f32 %v1515, %v1542
        %v1550 = vmul.f32 %v1516, %v1542
        %v1551 = vmul.f32 %v1517, %v1542
        %v1552 = vmul.f32 %v1518, %v1542
        %v1553 = vmul.f32 %v1519, %v1542
        %v1554 = vmul.f32 %v1520, %v1542
        %v1555 = vmul.f32 %v1521, %v1542
        %v1556 = vmul.f32 %v1522, %v1542
        %v1557 = vmul.f32 %v1523, %v1542
        %v1558 = vmul.f32 %v1524, %v1542
        %v1559 = vmul.f32 %v1525, %v1542
        %v1560 = vmul.f32 %v1526, %v1542
        %v1561 = vmul.f32 %v1527, %v1542
        %v1562 = vmul.f32 %v1528, %v1542
        %v1563 = vmul.f32 %v1529, %v1542
        %v1564 = vmul.f32 %v1530, %v1542
        %v1565 = vmul.f32 %v1531, %v1542
        %v1566 = vmul.f32 %v1532, %v1542
        %v1567 = vmul.f32 %v1533, %v1542
        %v1568 = vmul.f32 %v1534, %v1542
        %v1569 = vmul.f32 %v1535, %v1542
        %v1570 = vmul.f32 %v1536, %v1542
        %v1571 = vmul.f32 %v1537, %v1542
        %v1572 = vmul.f32 %v1538, %v1542
        %v1573 = vmul.f32 %v1539, %v1542
        %v1574 = vmul.f32 %v1540, %v1542
        %v1575 = vadd.f32 %v1476, %v1543
        %v1576 = vadd.f32 %v1477, %v1544
        %v1577 = vadd.f32 %v1478, %v1545
        %v1578 = vadd.f32 %v1479, %v1546
        %v1579 = vadd.f32 %v1480, %v1547
        %v1580 = vadd.f32 %v1481, %v1548
        %v1581 = vadd.f32 %v1482, %v1549
        %v1582 = vadd.f32 %v1483, %v1550
        %v1583 = vadd.f32 %v1484, %v1551
        %v1584 = vadd.f32 %v1485, %v1552
        %v1585 = vadd.f32 %v1486, %v1553
        %v1586 = vadd.f32 %v1487, %v1554
        %v1587 = vadd.f32 %v1488, %v1555
        %v1588 = vadd.f32 %v1489, %v1556
        %v1589 = vadd.f32 %v1490, %v1557
        %v1590 = vadd.f32 %v1491, %v1558
        %v1591 = vadd.f32 %v1492, %v1559
        %v1592 = vadd.f32 %v1493, %v1560
        %v1593 = vadd.f32 %v1494, %v1561
        %v1594 = vadd.f32 %v1495, %v1562
        %v1595 = vadd.f32 %v1496, %v1563
        %v1596 = vadd.f32 %v1497, %v1564
        %v1597 = vadd.f32 %v1498, %v1565
        %v1598 = vadd.f32 %v1499, %v1566
        %v1599 = vadd.f32 %v1500, %v1567
        %v1600 = vadd.f32 %v1501, %v1568
        %v1601 = vadd.f32 %v1502, %v1569
        %v1602 = vadd.f32 %v1503, %v1570
        %v1603 = vadd.f32 %v1504, %v1571
        %v1604 = vadd.f32 %v1505, %v1572
        %v1605 = vadd.f32 %v1506, %v1573
        %v1606 = vadd.f32 %v1507, %v1574
        %s1607 = scalar_lea.vmem %s857, 1792 [#allocation5]
        %v1608 = vld [vmem:[%s1607] sm:$0xff]
        %v1609 = vld [vmem:[%s1607 + $0x8] sm:$0xff]
        %v1610 = vld [vmem:[%s1607 + $0x10] sm:$0xff]
        %v1611 = vld [vmem:[%s1607 + $0x18] sm:$0xff]
        %v1612 = vld [vmem:[%s1607 + $0x20] sm:$0xff]
        %v1613 = vld [vmem:[%s1607 + $0x28] sm:$0xff]
        %v1614 = vld [vmem:[%s1607 + $0x30] sm:$0xff]
        %v1615 = vld [vmem:[%s1607 + $0x38] sm:$0xff]
        %v1616 = vld [vmem:[%s1607 + $0x40] sm:$0xff]
        %v1617 = vld [vmem:[%s1607 + $0x48] sm:$0xff]
        %v1618 = vld [vmem:[%s1607 + $0x50] sm:$0xff]
        %v1619 = vld [vmem:[%s1607 + $0x58] sm:$0xff]
        %v1620 = vld [vmem:[%s1607 + $0x60] sm:$0xff]
        %v1621 = vld [vmem:[%s1607 + $0x68] sm:$0xff]
        %v1622 = vld [vmem:[%s1607 + $0x70] sm:$0xff]
        %v1623 = vld [vmem:[%s1607 + $0x78] sm:$0xff]
        %v1624 = vld [vmem:[%s1607 + $0x80] sm:$0xff]
        %v1625 = vld [vmem:[%s1607 + $0x88] sm:$0xff]
        %v1626 = vld [vmem:[%s1607 + $0x90] sm:$0xff]
        %v1627 = vld [vmem:[%s1607 + $0x98] sm:$0xff]
        %v1628 = vld [vmem:[%s1607 + $0xa0] sm:$0xff]
        %v1629 = vld [vmem:[%s1607 + $0xa8] sm:$0xff]
        %v1630 = vld [vmem:[%s1607 + $0xb0] sm:$0xff]
        %v1631 = vld [vmem:[%s1607 + $0xb8] sm:$0xff]
        %v1632 = vld [vmem:[%s1607 + $0xc0] sm:$0xff]
        %v1633 = vld [vmem:[%s1607 + $0xc8] sm:$0xff]
        %v1634 = vld [vmem:[%s1607 + $0xd0] sm:$0xff]
        %v1635 = vld [vmem:[%s1607 + $0xd8] sm:$0xff]
        %v1636 = vld [vmem:[%s1607 + $0xe0] sm:$0xff]
        %v1637 = vld [vmem:[%s1607 + $0xe8] sm:$0xff]
        %v1638 = vld [vmem:[%s1607 + $0xf0] sm:$0xff]
        %v1639 = vld [vmem:[%s1607 + $0xf8] sm:$0xff]
        %s1640 = sld [smem:[#allocation2 + $0x7]]
        %v1641 = vstv %s1640
        %v1642 = vmul.f32 %v1608, %v1641
        %v1643 = vmul.f32 %v1609, %v1641
        %v1644 = vmul.f32 %v1610, %v1641
        %v1645 = vmul.f32 %v1611, %v1641
        %v1646 = vmul.f32 %v1612, %v1641
        %v1647 = vmul.f32 %v1613, %v1641
        %v1648 = vmul.f32 %v1614, %v1641
        %v1649 = vmul.f32 %v1615, %v1641
        %v1650 = vmul.f32 %v1616, %v1641
        %v1651 = vmul.f32 %v1617, %v1641
        %v1652 = vmul.f32 %v1618, %v1641
        %v1653 = vmul.f32 %v1619, %v1641
        %v1654 = vmul.f32 %v1620, %v1641
        %v1655 = vmul.f32 %v1621, %v1641
        %v1656 = vmul.f32 %v1622, %v1641
        %v1657 = vmul.f32 %v1623, %v1641
        %v1658 = vmul.f32 %v1624, %v1641
        %v1659 = vmul.f32 %v1625, %v1641
        %v1660 = vmul.f32 %v1626, %v1641
        %v1661 = vmul.f32 %v1627, %v1641
        %v1662 = vmul.f32 %v1628, %v1641
        %v1663 = vmul.f32 %v1629, %v1641
        %v1664 = vmul.f32 %v1630, %v1641
        %v1665 = vmul.f32 %v1631, %v1641
        %v1666 = vmul.f32 %v1632, %v1641
        %v1667 = vmul.f32 %v1633, %v1641
        %v1668 = vmul.f32 %v1634, %v1641
        %v1669 = vmul.f32 %v1635, %v1641
        %v1670 = vmul.f32 %v1636, %v1641
        %v1671 = vmul.f32 %v1637, %v1641
        %v1672 = vmul.f32 %v1638, %v1641
        %v1673 = vmul.f32 %v1639, %v1641
        %v1674 = vadd.f32 %v1575, %v1642
        %v1675 = vadd.f32 %v1576, %v1643
        %v1676 = vadd.f32 %v1577, %v1644
        %v1677 = vadd.f32 %v1578, %v1645
        %v1678 = vadd.f32 %v1579, %v1646
        %v1679 = vadd.f32 %v1580, %v1647
        %v1680 = vadd.f32 %v1581, %v1648
        %v1681 = vadd.f32 %v1582, %v1649
        %v1682 = vadd.f32 %v1583, %v1650
        %v1683 = vadd.f32 %v1584, %v1651
        %v1684 = vadd.f32 %v1585, %v1652
        %v1685 = vadd.f32 %v1586, %v1653
        %v1686 = vadd.f32 %v1587, %v1654
        %v1687 = vadd.f32 %v1588, %v1655
        %v1688 = vadd.f32 %v1589, %v1656
        %v1689 = vadd.f32 %v1590, %v1657
        %v1690 = vadd.f32 %v1591, %v1658
        %v1691 = vadd.f32 %v1592, %v1659
        %v1692 = vadd.f32 %v1593, %v1660
        %v1693 = vadd.f32 %v1594, %v1661
        %v1694 = vadd.f32 %v1595, %v1662
        %v1695 = vadd.f32 %v1596, %v1663
        %v1696 = vadd.f32 %v1597, %v1664
        %v1697 = vadd.f32 %v1598, %v1665
        %v1698 = vadd.f32 %v1599, %v1666
        %v1699 = vadd.f32 %v1600, %v1667
        %v1700 = vadd.f32 %v1601, %v1668
        %v1701 = vadd.f32 %v1602, %v1669
        %v1702 = vadd.f32 %v1603, %v1670
        %v1703 = vadd.f32 %v1604, %v1671
        %v1704 = vadd.f32 %v1605, %v1672
        %v1705 = vadd.f32 %v1606, %v1673
        %s1706 = scalar_lea.vmem %s857, 2048 [#allocation5]
        %v1707 = vld [vmem:[%s1706] sm:$0xff]
        %v1708 = vld [vmem:[%s1706 + $0x8] sm:$0xff]
        %v1709 = vld [vmem:[%s1706 + $0x10] sm:$0xff]
        %v1710 = vld [vmem:[%s1706 + $0x18] sm:$0xff]
        %v1711 = vld [vmem:[%s1706 + $0x20] sm:$0xff]
        %v1712 = vld [vmem:[%s1706 + $0x28] sm:$0xff]
        %v1713 = vld [vmem:[%s1706 + $0x30] sm:$0xff]
        %v1714 = vld [vmem:[%s1706 + $0x38] sm:$0xff]
        %v1715 = vld [vmem:[%s1706 + $0x40] sm:$0xff]
        %v1716 = vld [vmem:[%s1706 + $0x48] sm:$0xff]
        %v1717 = vld [vmem:[%s1706 + $0x50] sm:$0xff]
        %v1718 = vld [vmem:[%s1706 + $0x58] sm:$0xff]
        %v1719 = vld [vmem:[%s1706 + $0x60] sm:$0xff]
        %v1720 = vld [vmem:[%s1706 + $0x68] sm:$0xff]
        %v1721 = vld [vmem:[%s1706 + $0x70] sm:$0xff]
        %v1722 = vld [vmem:[%s1706 + $0x78] sm:$0xff]
        %v1723 = vld [vmem:[%s1706 + $0x80] sm:$0xff]
        %v1724 = vld [vmem:[%s1706 + $0x88] sm:$0xff]
        %v1725 = vld [vmem:[%s1706 + $0x90] sm:$0xff]
        %v1726 = vld [vmem:[%s1706 + $0x98] sm:$0xff]
        %v1727 = vld [vmem:[%s1706 + $0xa0] sm:$0xff]
        %v1728 = vld [vmem:[%s1706 + $0xa8] sm:$0xff]
        %v1729 = vld [vmem:[%s1706 + $0xb0] sm:$0xff]
        %v1730 = vld [vmem:[%s1706 + $0xb8] sm:$0xff]
        %v1731 = vld [vmem:[%s1706 + $0xc0] sm:$0xff]
        %v1732 = vld [vmem:[%s1706 + $0xc8] sm:$0xff]
        %v1733 = vld [vmem:[%s1706 + $0xd0] sm:$0xff]
        %v1734 = vld [vmem:[%s1706 + $0xd8] sm:$0xff]
        %v1735 = vld [vmem:[%s1706 + $0xe0] sm:$0xff]
        %v1736 = vld [vmem:[%s1706 + $0xe8] sm:$0xff]
        %v1737 = vld [vmem:[%s1706 + $0xf0] sm:$0xff]
        %v1738 = vld [vmem:[%s1706 + $0xf8] sm:$0xff]
        %s1739 = sld [smem:[#allocation2 + $0x8]]
        %v1740 = vstv %s1739
        %v1741 = vmul.f32 %v1707, %v1740
        %v1742 = vmul.f32 %v1708, %v1740
        %v1743 = vmul.f32 %v1709, %v1740
        %v1744 = vmul.f32 %v1710, %v1740
        %v1745 = vmul.f32 %v1711, %v1740
        %v1746 = vmul.f32 %v1712, %v1740
        %v1747 = vmul.f32 %v1713, %v1740
        %v1748 = vmul.f32 %v1714, %v1740
        %v1749 = vmul.f32 %v1715, %v1740
        %v1750 = vmul.f32 %v1716, %v1740
        %v1751 = vmul.f32 %v1717, %v1740
        %v1752 = vmul.f32 %v1718, %v1740
        %v1753 = vmul.f32 %v1719, %v1740
        %v1754 = vmul.f32 %v1720, %v1740
        %v1755 = vmul.f32 %v1721, %v1740
        %v1756 = vmul.f32 %v1722, %v1740
        %v1757 = vmul.f32 %v1723, %v1740
        %v1758 = vmul.f32 %v1724, %v1740
        %v1759 = vmul.f32 %v1725, %v1740
        %v1760 = vmul.f32 %v1726, %v1740
        %v1761 = vmul.f32 %v1727, %v1740
        %v1762 = vmul.f32 %v1728, %v1740
        %v1763 = vmul.f32 %v1729, %v1740
        %v1764 = vmul.f32 %v1730, %v1740
        %v1765 = vmul.f32 %v1731, %v1740
        %v1766 = vmul.f32 %v1732, %v1740
        %v1767 = vmul.f32 %v1733, %v1740
        %v1768 = vmul.f32 %v1734, %v1740
        %v1769 = vmul.f32 %v1735, %v1740
        %v1770 = vmul.f32 %v1736, %v1740
        %v1771 = vmul.f32 %v1737, %v1740
        %v1772 = vmul.f32 %v1738, %v1740
        %v1773 = vadd.f32 %v1674, %v1741
        %v1774 = vadd.f32 %v1675, %v1742
        %v1775 = vadd.f32 %v1676, %v1743
        %v1776 = vadd.f32 %v1677, %v1744
        %v1777 = vadd.f32 %v1678, %v1745
        %v1778 = vadd.f32 %v1679, %v1746
        %v1779 = vadd.f32 %v1680, %v1747
        %v1780 = vadd.f32 %v1681, %v1748
        %v1781 = vadd.f32 %v1682, %v1749
        %v1782 = vadd.f32 %v1683, %v1750
        %v1783 = vadd.f32 %v1684, %v1751
        %v1784 = vadd.f32 %v1685, %v1752
        %v1785 = vadd.f32 %v1686, %v1753
        %v1786 = vadd.f32 %v1687, %v1754
        %v1787 = vadd.f32 %v1688, %v1755
        %v1788 = vadd.f32 %v1689, %v1756
        %v1789 = vadd.f32 %v1690, %v1757
        %v1790 = vadd.f32 %v1691, %v1758
        %v1791 = vadd.f32 %v1692, %v1759
        %v1792 = vadd.f32 %v1693, %v1760
        %v1793 = vadd.f32 %v1694, %v1761
        %v1794 = vadd.f32 %v1695, %v1762
        %v1795 = vadd.f32 %v1696, %v1763
        %v1796 = vadd.f32 %v1697, %v1764
        %v1797 = vadd.f32 %v1698, %v1765
        %v1798 = vadd.f32 %v1699, %v1766
        %v1799 = vadd.f32 %v1700, %v1767
        %v1800 = vadd.f32 %v1701, %v1768
        %v1801 = vadd.f32 %v1702, %v1769
        %v1802 = vadd.f32 %v1703, %v1770
        %v1803 = vadd.f32 %v1704, %v1771
        %v1804 = vadd.f32 %v1705, %v1772
        %s1805 = scalar_lea.vmem %s857, 2304 [#allocation5]
        %v1806 = vld [vmem:[%s1805] sm:$0xff]
        %v1807 = vld [vmem:[%s1805 + $0x8] sm:$0xff]
        %v1808 = vld [vmem:[%s1805 + $0x10] sm:$0xff]
        %v1809 = vld [vmem:[%s1805 + $0x18] sm:$0xff]
        %v1810 = vld [vmem:[%s1805 + $0x20] sm:$0xff]
        %v1811 = vld [vmem:[%s1805 + $0x28] sm:$0xff]
        %v1812 = vld [vmem:[%s1805 + $0x30] sm:$0xff]
        %v1813 = vld [vmem:[%s1805 + $0x38] sm:$0xff]
        %v1814 = vld [vmem:[%s1805 + $0x40] sm:$0xff]
        %v1815 = vld [vmem:[%s1805 + $0x48] sm:$0xff]
        %v1816 = vld [vmem:[%s1805 + $0x50] sm:$0xff]
        %v1817 = vld [vmem:[%s1805 + $0x58] sm:$0xff]
        %v1818 = vld [vmem:[%s1805 + $0x60] sm:$0xff]
        %v1819 = vld [vmem:[%s1805 + $0x68] sm:$0xff]
        %v1820 = vld [vmem:[%s1805 + $0x70] sm:$0xff]
        %v1821 = vld [vmem:[%s1805 + $0x78] sm:$0xff]
        %v1822 = vld [vmem:[%s1805 + $0x80] sm:$0xff]
        %v1823 = vld [vmem:[%s1805 + $0x88] sm:$0xff]
        %v1824 = vld [vmem:[%s1805 + $0x90] sm:$0xff]
        %v1825 = vld [vmem:[%s1805 + $0x98] sm:$0xff]
        %v1826 = vld [vmem:[%s1805 + $0xa0] sm:$0xff]
        %v1827 = vld [vmem:[%s1805 + $0xa8] sm:$0xff]
        %v1828 = vld [vmem:[%s1805 + $0xb0] sm:$0xff]
        %v1829 = vld [vmem:[%s1805 + $0xb8] sm:$0xff]
        %v1830 = vld [vmem:[%s1805 + $0xc0] sm:$0xff]
        %v1831 = vld [vmem:[%s1805 + $0xc8] sm:$0xff]
        %v1832 = vld [vmem:[%s1805 + $0xd0] sm:$0xff]
        %v1833 = vld [vmem:[%s1805 + $0xd8] sm:$0xff]
        %v1834 = vld [vmem:[%s1805 + $0xe0] sm:$0xff]
        %v1835 = vld [vmem:[%s1805 + $0xe8] sm:$0xff]
        %v1836 = vld [vmem:[%s1805 + $0xf0] sm:$0xff]
        %v1837 = vld [vmem:[%s1805 + $0xf8] sm:$0xff]
        %s1838 = sld [smem:[#allocation2 + $0x9]]
        %v1839 = vstv %s1838
        %v1840 = vmul.f32 %v1806, %v1839
        %v1841 = vmul.f32 %v1807, %v1839
        %v1842 = vmul.f32 %v1808, %v1839
        %v1843 = vmul.f32 %v1809, %v1839
        %v1844 = vmul.f32 %v1810, %v1839
        %v1845 = vmul.f32 %v1811, %v1839
        %v1846 = vmul.f32 %v1812, %v1839
        %v1847 = vmul.f32 %v1813, %v1839
        %v1848 = vmul.f32 %v1814, %v1839
        %v1849 = vmul.f32 %v1815, %v1839
        %v1850 = vmul.f32 %v1816, %v1839
        %v1851 = vmul.f32 %v1817, %v1839
        %v1852 = vmul.f32 %v1818, %v1839
        %v1853 = vmul.f32 %v1819, %v1839
        %v1854 = vmul.f32 %v1820, %v1839
        %v1855 = vmul.f32 %v1821, %v1839
        %v1856 = vmul.f32 %v1822, %v1839
        %v1857 = vmul.f32 %v1823, %v1839
        %v1858 = vmul.f32 %v1824, %v1839
        %v1859 = vmul.f32 %v1825, %v1839
        %v1860 = vmul.f32 %v1826, %v1839
        %v1861 = vmul.f32 %v1827, %v1839
        %v1862 = vmul.f32 %v1828, %v1839
        %v1863 = vmul.f32 %v1829, %v1839
        %v1864 = vmul.f32 %v1830, %v1839
        %v1865 = vmul.f32 %v1831, %v1839
        %v1866 = vmul.f32 %v1832, %v1839
        %v1867 = vmul.f32 %v1833, %v1839
        %v1868 = vmul.f32 %v1834, %v1839
        %v1869 = vmul.f32 %v1835, %v1839
        %v1870 = vmul.f32 %v1836, %v1839
        %v1871 = vmul.f32 %v1837, %v1839
        %v1872 = vadd.f32 %v1773, %v1840
        %v1873 = vadd.f32 %v1774, %v1841
        %v1874 = vadd.f32 %v1775, %v1842
        %v1875 = vadd.f32 %v1776, %v1843
        %v1876 = vadd.f32 %v1777, %v1844
        %v1877 = vadd.f32 %v1778, %v1845
        %v1878 = vadd.f32 %v1779, %v1846
        %v1879 = vadd.f32 %v1780, %v1847
        %v1880 = vadd.f32 %v1781, %v1848
        %v1881 = vadd.f32 %v1782, %v1849
        %v1882 = vadd.f32 %v1783, %v1850
        %v1883 = vadd.f32 %v1784, %v1851
        %v1884 = vadd.f32 %v1785, %v1852
        %v1885 = vadd.f32 %v1786, %v1853
        %v1886 = vadd.f32 %v1787, %v1854
        %v1887 = vadd.f32 %v1788, %v1855
        %v1888 = vadd.f32 %v1789, %v1856
        %v1889 = vadd.f32 %v1790, %v1857
        %v1890 = vadd.f32 %v1791, %v1858
        %v1891 = vadd.f32 %v1792, %v1859
        %v1892 = vadd.f32 %v1793, %v1860
        %v1893 = vadd.f32 %v1794, %v1861
        %v1894 = vadd.f32 %v1795, %v1862
        %v1895 = vadd.f32 %v1796, %v1863
        %v1896 = vadd.f32 %v1797, %v1864
        %v1897 = vadd.f32 %v1798, %v1865
        %v1898 = vadd.f32 %v1799, %v1866
        %v1899 = vadd.f32 %v1800, %v1867
        %v1900 = vadd.f32 %v1801, %v1868
        %v1901 = vadd.f32 %v1802, %v1869
        %v1902 = vadd.f32 %v1803, %v1870
        %v1903 = vadd.f32 %v1804, %v1871
        %s1904 = scalar_lea.vmem %s857, 2560 [#allocation5]
        %v1905 = vld [vmem:[%s1904] sm:$0xff]
        %v1906 = vld [vmem:[%s1904 + $0x8] sm:$0xff]
        %v1907 = vld [vmem:[%s1904 + $0x10] sm:$0xff]
        %v1908 = vld [vmem:[%s1904 + $0x18] sm:$0xff]
        %v1909 = vld [vmem:[%s1904 + $0x20] sm:$0xff]
        %v1910 = vld [vmem:[%s1904 + $0x28] sm:$0xff]
        %v1911 = vld [vmem:[%s1904 + $0x30] sm:$0xff]
        %v1912 = vld [vmem:[%s1904 + $0x38] sm:$0xff]
        %v1913 = vld [vmem:[%s1904 + $0x40] sm:$0xff]
        %v1914 = vld [vmem:[%s1904 + $0x48] sm:$0xff]
        %v1915 = vld [vmem:[%s1904 + $0x50] sm:$0xff]
        %v1916 = vld [vmem:[%s1904 + $0x58] sm:$0xff]
        %v1917 = vld [vmem:[%s1904 + $0x60] sm:$0xff]
        %v1918 = vld [vmem:[%s1904 + $0x68] sm:$0xff]
        %v1919 = vld [vmem:[%s1904 + $0x70] sm:$0xff]
        %v1920 = vld [vmem:[%s1904 + $0x78] sm:$0xff]
        %v1921 = vld [vmem:[%s1904 + $0x80] sm:$0xff]
        %v1922 = vld [vmem:[%s1904 + $0x88] sm:$0xff]
        %v1923 = vld [vmem:[%s1904 + $0x90] sm:$0xff]
        %v1924 = vld [vmem:[%s1904 + $0x98] sm:$0xff]
        %v1925 = vld [vmem:[%s1904 + $0xa0] sm:$0xff]
        %v1926 = vld [vmem:[%s1904 + $0xa8] sm:$0xff]
        %v1927 = vld [vmem:[%s1904 + $0xb0] sm:$0xff]
        %v1928 = vld [vmem:[%s1904 + $0xb8] sm:$0xff]
        %v1929 = vld [vmem:[%s1904 + $0xc0] sm:$0xff]
        %v1930 = vld [vmem:[%s1904 + $0xc8] sm:$0xff]
        %v1931 = vld [vmem:[%s1904 + $0xd0] sm:$0xff]
        %v1932 = vld [vmem:[%s1904 + $0xd8] sm:$0xff]
        %v1933 = vld [vmem:[%s1904 + $0xe0] sm:$0xff]
        %v1934 = vld [vmem:[%s1904 + $0xe8] sm:$0xff]
        %v1935 = vld [vmem:[%s1904 + $0xf0] sm:$0xff]
        %v1936 = vld [vmem:[%s1904 + $0xf8] sm:$0xff]
        %s1937 = sld [smem:[#allocation2 + $0xa]]
        %v1938 = vstv %s1937
        %v1939 = vmul.f32 %v1905, %v1938
        %v1940 = vmul.f32 %v1906, %v1938
        %v1941 = vmul.f32 %v1907, %v1938
        %v1942 = vmul.f32 %v1908, %v1938
        %v1943 = vmul.f32 %v1909, %v1938
        %v1944 = vmul.f32 %v1910, %v1938
        %v1945 = vmul.f32 %v1911, %v1938
        %v1946 = vmul.f32 %v1912, %v1938
        %v1947 = vmul.f32 %v1913, %v1938
        %v1948 = vmul.f32 %v1914, %v1938
        %v1949 = vmul.f32 %v1915, %v1938
        %v1950 = vmul.f32 %v1916, %v1938
        %v1951 = vmul.f32 %v1917, %v1938
        %v1952 = vmul.f32 %v1918, %v1938
        %v1953 = vmul.f32 %v1919, %v1938
        %v1954 = vmul.f32 %v1920, %v1938
        %v1955 = vmul.f32 %v1921, %v1938
        %v1956 = vmul.f32 %v1922, %v1938
        %v1957 = vmul.f32 %v1923, %v1938
        %v1958 = vmul.f32 %v1924, %v1938
        %v1959 = vmul.f32 %v1925, %v1938
        %v1960 = vmul.f32 %v1926, %v1938
        %v1961 = vmul.f32 %v1927, %v1938
        %v1962 = vmul.f32 %v1928, %v1938
        %v1963 = vmul.f32 %v1929, %v1938
        %v1964 = vmul.f32 %v1930, %v1938
        %v1965 = vmul.f32 %v1931, %v1938
        %v1966 = vmul.f32 %v1932, %v1938
        %v1967 = vmul.f32 %v1933, %v1938
        %v1968 = vmul.f32 %v1934, %v1938
        %v1969 = vmul.f32 %v1935, %v1938
        %v1970 = vmul.f32 %v1936, %v1938
        %v1971 = vadd.f32 %v1872, %v1939
        %v1972 = vadd.f32 %v1873, %v1940
        %v1973 = vadd.f32 %v1874, %v1941
        %v1974 = vadd.f32 %v1875, %v1942
        %v1975 = vadd.f32 %v1876, %v1943
        %v1976 = vadd.f32 %v1877, %v1944
        %v1977 = vadd.f32 %v1878, %v1945
        %v1978 = vadd.f32 %v1879, %v1946
        %v1979 = vadd.f32 %v1880, %v1947
        %v1980 = vadd.f32 %v1881, %v1948
        %v1981 = vadd.f32 %v1882, %v1949
        %v1982 = vadd.f32 %v1883, %v1950
        %v1983 = vadd.f32 %v1884, %v1951
        %v1984 = vadd.f32 %v1885, %v1952
        %v1985 = vadd.f32 %v1886, %v1953
        %v1986 = vadd.f32 %v1887, %v1954
        %v1987 = vadd.f32 %v1888, %v1955
        %v1988 = vadd.f32 %v1889, %v1956
        %v1989 = vadd.f32 %v1890, %v1957
        %v1990 = vadd.f32 %v1891, %v1958
        %v1991 = vadd.f32 %v1892, %v1959
        %v1992 = vadd.f32 %v1893, %v1960
        %v1993 = vadd.f32 %v1894, %v1961
        %v1994 = vadd.f32 %v1895, %v1962
        %v1995 = vadd.f32 %v1896, %v1963
        %v1996 = vadd.f32 %v1897, %v1964
        %v1997 = vadd.f32 %v1898, %v1965
        %v1998 = vadd.f32 %v1899, %v1966
        %v1999 = vadd.f32 %v1900, %v1967
        %v2000 = vadd.f32 %v1901, %v1968
        %v2001 = vadd.f32 %v1902, %v1969
        %v2002 = vadd.f32 %v1903, %v1970
        %s2003 = scalar_lea.vmem %s857, 2816 [#allocation5]
        %v2004 = vld [vmem:[%s2003] sm:$0xff]
        %v2005 = vld [vmem:[%s2003 + $0x8] sm:$0xff]
        %v2006 = vld [vmem:[%s2003 + $0x10] sm:$0xff]
        %v2007 = vld [vmem:[%s2003 + $0x18] sm:$0xff]
        %v2008 = vld [vmem:[%s2003 + $0x20] sm:$0xff]
        %v2009 = vld [vmem:[%s2003 + $0x28] sm:$0xff]
        %v2010 = vld [vmem:[%s2003 + $0x30] sm:$0xff]
        %v2011 = vld [vmem:[%s2003 + $0x38] sm:$0xff]
        %v2012 = vld [vmem:[%s2003 + $0x40] sm:$0xff]
        %v2013 = vld [vmem:[%s2003 + $0x48] sm:$0xff]
        %v2014 = vld [vmem:[%s2003 + $0x50] sm:$0xff]
        %v2015 = vld [vmem:[%s2003 + $0x58] sm:$0xff]
        %v2016 = vld [vmem:[%s2003 + $0x60] sm:$0xff]
        %v2017 = vld [vmem:[%s2003 + $0x68] sm:$0xff]
        %v2018 = vld [vmem:[%s2003 + $0x70] sm:$0xff]
        %v2019 = vld [vmem:[%s2003 + $0x78] sm:$0xff]
        %v2020 = vld [vmem:[%s2003 + $0x80] sm:$0xff]
        %v2021 = vld [vmem:[%s2003 + $0x88] sm:$0xff]
        %v2022 = vld [vmem:[%s2003 + $0x90] sm:$0xff]
        %v2023 = vld [vmem:[%s2003 + $0x98] sm:$0xff]
        %v2024 = vld [vmem:[%s2003 + $0xa0] sm:$0xff]
        %v2025 = vld [vmem:[%s2003 + $0xa8] sm:$0xff]
        %v2026 = vld [vmem:[%s2003 + $0xb0] sm:$0xff]
        %v2027 = vld [vmem:[%s2003 + $0xb8] sm:$0xff]
        %v2028 = vld [vmem:[%s2003 + $0xc0] sm:$0xff]
        %v2029 = vld [vmem:[%s2003 + $0xc8] sm:$0xff]
        %v2030 = vld [vmem:[%s2003 + $0xd0] sm:$0xff]
        %v2031 = vld [vmem:[%s2003 + $0xd8] sm:$0xff]
        %v2032 = vld [vmem:[%s2003 + $0xe0] sm:$0xff]
        %v2033 = vld [vmem:[%s2003 + $0xe8] sm:$0xff]
        %v2034 = vld [vmem:[%s2003 + $0xf0] sm:$0xff]
        %v2035 = vld [vmem:[%s2003 + $0xf8] sm:$0xff]
        %s2036 = sld [smem:[#allocation2 + $0xb]]
        %v2037 = vstv %s2036
        %v2038 = vmul.f32 %v2004, %v2037
        %v2039 = vmul.f32 %v2005, %v2037
        %v2040 = vmul.f32 %v2006, %v2037
        %v2041 = vmul.f32 %v2007, %v2037
        %v2042 = vmul.f32 %v2008, %v2037
        %v2043 = vmul.f32 %v2009, %v2037
        %v2044 = vmul.f32 %v2010, %v2037
        %v2045 = vmul.f32 %v2011, %v2037
        %v2046 = vmul.f32 %v2012, %v2037
        %v2047 = vmul.f32 %v2013, %v2037
        %v2048 = vmul.f32 %v2014, %v2037
        %v2049 = vmul.f32 %v2015, %v2037
        %v2050 = vmul.f32 %v2016, %v2037
        %v2051 = vmul.f32 %v2017, %v2037
        %v2052 = vmul.f32 %v2018, %v2037
        %v2053 = vmul.f32 %v2019, %v2037
        %v2054 = vmul.f32 %v2020, %v2037
        %v2055 = vmul.f32 %v2021, %v2037
        %v2056 = vmul.f32 %v2022, %v2037
        %v2057 = vmul.f32 %v2023, %v2037
        %v2058 = vmul.f32 %v2024, %v2037
        %v2059 = vmul.f32 %v2025, %v2037
        %v2060 = vmul.f32 %v2026, %v2037
        %v2061 = vmul.f32 %v2027, %v2037
        %v2062 = vmul.f32 %v2028, %v2037
        %v2063 = vmul.f32 %v2029, %v2037
        %v2064 = vmul.f32 %v2030, %v2037
        %v2065 = vmul.f32 %v2031, %v2037
        %v2066 = vmul.f32 %v2032, %v2037
        %v2067 = vmul.f32 %v2033, %v2037
        %v2068 = vmul.f32 %v2034, %v2037
        %v2069 = vmul.f32 %v2035, %v2037
        %v2070 = vadd.f32 %v1971, %v2038
        %v2071 = vadd.f32 %v1972, %v2039
        %v2072 = vadd.f32 %v1973, %v2040
        %v2073 = vadd.f32 %v1974, %v2041
        %v2074 = vadd.f32 %v1975, %v2042
        %v2075 = vadd.f32 %v1976, %v2043
        %v2076 = vadd.f32 %v1977, %v2044
        %v2077 = vadd.f32 %v1978, %v2045
        %v2078 = vadd.f32 %v1979, %v2046
        %v2079 = vadd.f32 %v1980, %v2047
        %v2080 = vadd.f32 %v1981, %v2048
        %v2081 = vadd.f32 %v1982, %v2049
        %v2082 = vadd.f32 %v1983, %v2050
        %v2083 = vadd.f32 %v1984, %v2051
        %v2084 = vadd.f32 %v1985, %v2052
        %v2085 = vadd.f32 %v1986, %v2053
        %v2086 = vadd.f32 %v1987, %v2054
        %v2087 = vadd.f32 %v1988, %v2055
        %v2088 = vadd.f32 %v1989, %v2056
        %v2089 = vadd.f32 %v1990, %v2057
        %v2090 = vadd.f32 %v1991, %v2058
        %v2091 = vadd.f32 %v1992, %v2059
        %v2092 = vadd.f32 %v1993, %v2060
        %v2093 = vadd.f32 %v1994, %v2061
        %v2094 = vadd.f32 %v1995, %v2062
        %v2095 = vadd.f32 %v1996, %v2063
        %v2096 = vadd.f32 %v1997, %v2064
        %v2097 = vadd.f32 %v1998, %v2065
        %v2098 = vadd.f32 %v1999, %v2066
        %v2099 = vadd.f32 %v2000, %v2067
        %v2100 = vadd.f32 %v2001, %v2068
        %v2101 = vadd.f32 %v2002, %v2069
        %v2102 = vpack.c.bf16 %v2071, %v2070
        %v2103 = vpack.c.bf16 %v2073, %v2072
        %v2104 = vpack.c.bf16 %v2075, %v2074
        %v2105 = vpack.c.bf16 %v2077, %v2076
        %v2106 = vpack.c.bf16 %v2079, %v2078
        %v2107 = vpack.c.bf16 %v2081, %v2080
        %v2108 = vpack.c.bf16 %v2083, %v2082
        %v2109 = vpack.c.bf16 %v2085, %v2084
        %v2110 = vpack.c.bf16 %v2087, %v2086
        %v2111 = vpack.c.bf16 %v2089, %v2088
        %v2112 = vpack.c.bf16 %v2091, %v2090
        %v2113 = vpack.c.bf16 %v2093, %v2092
        %v2114 = vpack.c.bf16 %v2095, %v2094
        %v2115 = vpack.c.bf16 %v2097, %v2096
        %v2116 = vpack.c.bf16 %v2099, %v2098
        %v2117 = vpack.c.bf16 %v2101, %v2100
        %v2118 = vld [vmem:[%s4] sm:$0xf]
        %v2119 = vld [vmem:[%s4 + $0x4] sm:$0xf]
        %v2120 = vld [vmem:[%s4 + $0x8] sm:$0xf]
        %v2121 = vld [vmem:[%s4 + $0xc] sm:$0xf]
        %v2122 = vld [vmem:[%s4 + $0x10] sm:$0xf]
        %v2123 = vld [vmem:[%s4 + $0x14] sm:$0xf]
        %v2124 = vld [vmem:[%s4 + $0x18] sm:$0xf]
        %v2125 = vld [vmem:[%s4 + $0x1c] sm:$0xf]
        %v2126 = vld [vmem:[%s4 + $0x20] sm:$0xf]
        %v2127 = vld [vmem:[%s4 + $0x24] sm:$0xf]
        %v2128 = vld [vmem:[%s4 + $0x28] sm:$0xf]
        %v2129 = vld [vmem:[%s4 + $0x2c] sm:$0xf]
        %v2130 = vld [vmem:[%s4 + $0x30] sm:$0xf]
        %v2131 = vld [vmem:[%s4 + $0x34] sm:$0xf]
        %v2132 = vld [vmem:[%s4 + $0x38] sm:$0xf]
        %v2133 = vld [vmem:[%s4 + $0x3c] sm:$0xf]
        %v2134 = vld [vmem:[%s5] sm:$0x1]
        %v2136 = vlaneseq
        %v2137 = vshrl.u32 %v2136, 7
        %v2138 = vsub.s32 0, %v2137
        %v2139 = vrot.slane %v2134, %v2138
        %v2157 = vunpack.c.l.b16 %v2118
        %v2158 = vunpack.c.l.b16 %v2119
        %v2159 = vunpack.c.l.b16 %v2120
        %v2160 = vunpack.c.l.b16 %v2121
        %v2161 = vunpack.c.l.b16 %v2122
        %v2162 = vunpack.c.l.b16 %v2123
        %v2163 = vunpack.c.l.b16 %v2124
        %v2164 = vunpack.c.l.b16 %v2125
        %v2165 = vunpack.c.l.b16 %v2126
        %v2166 = vunpack.c.l.b16 %v2127
        %v2167 = vunpack.c.l.b16 %v2128
        %v2168 = vunpack.c.l.b16 %v2129
        %v2169 = vunpack.c.l.b16 %v2130
        %v2170 = vunpack.c.l.b16 %v2131
        %v2171 = vunpack.c.l.b16 %v2132
        %v2172 = vunpack.c.l.b16 %v2133
        %v2173 = vpack.c.b16 %v2158, %v2157
        %v2174 = vpack.c.b16 %v2160, %v2159
        %v2175 = vpack.c.b16 %v2162, %v2161
        %v2176 = vpack.c.b16 %v2164, %v2163
        %v2177 = vpack.c.b16 %v2166, %v2165
        %v2178 = vpack.c.b16 %v2168, %v2167
        %v2179 = vpack.c.b16 %v2170, %v2169
        %v2180 = vpack.c.b16 %v2172, %v2171
        %2189 = vmatprep.subr.bf16.mxu0 0
        %2190 = vmatpush1.bf16.msra.mxu0 %v2173
        %2191 = vmatprep.subr.bf16.mxu0 0
        %2192 = vmatpush1.bf16.msra.mxu0 %v2174
        %2193 = vmatprep.subr.bf16.mxu0 0
        %2194 = vmatpush1.bf16.msra.mxu0 %v2175
        %2195 = vmatprep.subr.bf16.mxu0 0
        %2196 = vmatpush1.bf16.msra.mxu0 %v2176
        %2197 = vmatprep.subr.bf16.mxu0 0
        %2198 = vmatpush1.bf16.msra.mxu0 %v2177
        %2199 = vmatprep.subr.bf16.mxu0 0
        %2200 = vmatpush1.bf16.msra.mxu0 %v2178
        %2201 = vmatprep.subr.bf16.mxu0 0
        %2202 = vmatpush1.bf16.msra.mxu0 %v2179
        %2203 = vmatprep.subr.bf16.mxu0 0
        %2204 = vmatpush1.bf16.msra.mxu0 %v2180
        %2205 = vmatprep.subr.bf16.mxu0 0
        %2206 = vmatpush1.bf16.msra.mxu0 0
        %2207 = vmatprep.subr.bf16.mxu0 0
        %2208 = vmatpush1.bf16.msra.mxu0 0
        %2209 = vmatprep.subr.bf16.mxu0 0
        %2210 = vmatpush1.bf16.msra.mxu0 0
        %2211 = vmatprep.subr.bf16.mxu0 0
        %2212 = vmatpush1.bf16.msra.mxu0 0
        %2213 = vmatprep.subr.bf16.mxu0 0
        %2214 = vmatpush1.bf16.msra.mxu0 0
        %2215 = vmatprep.subr.bf16.mxu0 0
        %2216 = vmatpush1.bf16.msra.mxu0 0
        %2217 = vmatprep.subr.bf16.mxu0 0
        %2218 = vmatpush1.bf16.msra.mxu0 0
        %2219 = vmatprep.subr.bf16.mxu0 0
        %2220 = vmatpush1.bf16.msra.mxu0 0
        %2221 = vmatprep.mubr.bf16.mxu0 0
        %2222 = vmatmul.mubr.bf16.gmra.mrb[0].mxu0 %v2102
        %v2223 = vpop.f32.mrb[0].mxu0
        %v2224 = vadd.f32 %v2139, %v2223
        %v2225 = vpop.f32.mrb[0].mxu0
        %v2226 = vpop.f32.mrb[0].mxu0
        %v2227 = vadd.f32 %v2139, %v2226
        %v2228 = vpop.f32.mrb[0].mxu0
        %2229 = vmatprep.mubr.bf16.mxu0 0
        %2230 = vmatmul.mubr.bf16.gmra.mrb[0].mxu0 %v2103
        %v2231 = vpop.f32.mrb[0].mxu0
        %v2232 = vadd.f32 %v2139, %v2231
        %v2233 = vpop.f32.mrb[0].mxu0
        %v2234 = vpop.f32.mrb[0].mxu0
        %v2235 = vadd.f32 %v2139, %v2234
        %v2236 = vpop.f32.mrb[0].mxu0
        %2237 = vmatprep.mubr.bf16.mxu0 0
        %2238 = vmatmul.mubr.bf16.gmra.mrb[0].mxu0 %v2104
        %v2239 = vpop.f32.mrb[0].mxu0
        %v2240 = vadd.f32 %v2139, %v2239
        %v2241 = vpop.f32.mrb[0].mxu0
        %v2242 = vpop.f32.mrb[0].mxu0
        %v2243 = vadd.f32 %v2139, %v2242
        %v2244 = vpop.f32.mrb[0].mxu0
        %2245 = vmatprep.mubr.bf16.mxu0 0
        %2246 = vmatmul.mubr.bf16.gmra.mrb[0].mxu0 %v2105
        %v2247 = vpop.f32.mrb[0].mxu0
        %v2248 = vadd.f32 %v2139, %v2247
        %v2249 = vpop.f32.mrb[0].mxu0
        %v2250 = vpop.f32.mrb[0].mxu0
        %v2251 = vadd.f32 %v2139, %v2250
        %v2252 = vpop.f32.mrb[0].mxu0
        %2253 = vmatprep.mubr.bf16.mxu0 0
        %2254 = vmatmul.mubr.bf16.gmra.mrb[0].mxu0 %v2106
        %v2255 = vpop.f32.mrb[0].mxu0
        %v2256 = vadd.f32 %v2139, %v2255
        %v2257 = vpop.f32.mrb[0].mxu0
        %v2258 = vpop.f32.mrb[0].mxu0
        %v2259 = vadd.f32 %v2139, %v2258
        %v2260 = vpop.f32.mrb[0].mxu0
        %2261 = vmatprep.mubr.bf16.mxu0 0
        %2262 = vmatmul.mubr.bf16.gmra.mrb[0].mxu0 %v2107
        %v2263 = vpop.f32.mrb[0].mxu0
        %v2264 = vadd.f32 %v2139, %v2263
        %v2265 = vpop.f32.mrb[0].mxu0
        %v2266 = vpop.f32.mrb[0].mxu0
        %v2267 = vadd.f32 %v2139, %v2266
        %v2268 = vpop.f32.mrb[0].mxu0
        %2269 = vmatprep.mubr.bf16.mxu0 0
        %2270 = vmatmul.mubr.bf16.gmra.mrb[0].mxu0 %v2108
        %v2271 = vpop.f32.mrb[0].mxu0
        %v2272 = vadd.f32 %v2139, %v2271
        %v2273 = vpop.f32.mrb[0].mxu0
        %v2274 = vpop.f32.mrb[0].mxu0
        %v2275 = vadd.f32 %v2139, %v2274
        %v2276 = vpop.f32.mrb[0].mxu0
        %2277 = vmatprep.mubr.bf16.mxu0 0
        %2278 = vmatmul.mubr.bf16.gmra.mrb[0].mxu0 %v2109
        %v2279 = vpop.f32.mrb[0].mxu0
        %v2280 = vadd.f32 %v2139, %v2279
        %v2281 = vpop.f32.mrb[0].mxu0
        %v2282 = vpop.f32.mrb[0].mxu0
        %v2283 = vadd.f32 %v2139, %v2282
        %v2284 = vpop.f32.mrb[0].mxu0
        %2285 = vmatprep.mubr.bf16.mxu0 0
        %2286 = vmatmul.mubr.bf16.gmra.mrb[0].mxu0 %v2110
        %v2287 = vpop.f32.mrb[0].mxu0
        %v2288 = vadd.f32 %v2139, %v2287
        %v2289 = vpop.f32.mrb[0].mxu0
        %v2290 = vpop.f32.mrb[0].mxu0
        %v2291 = vadd.f32 %v2139, %v2290
        %v2292 = vpop.f32.mrb[0].mxu0
        %2293 = vmatprep.mubr.bf16.mxu0 0
        %2294 = vmatmul.mubr.bf16.gmra.mrb[0].mxu0 %v2111
        %v2295 = vpop.f32.mrb[0].mxu0
        %v2296 = vadd.f32 %v2139, %v2295
        %v2297 = vpop.f32.mrb[0].mxu0
        %v2298 = vpop.f32.mrb[0].mxu0
        %v2299 = vadd.f32 %v2139, %v2298
        %v2300 = vpop.f32.mrb[0].mxu0
        %2301 = vmatprep.mubr.bf16.mxu0 0
        %2302 = vmatmul.mubr.bf16.gmra.mrb[0].mxu0 %v2112
        %v2303 = vpop.f32.mrb[0].mxu0
        %v2304 = vadd.f32 %v2139, %v2303
        %v2305 = vpop.f32.mrb[0].mxu0
        %v2306 = vpop.f32.mrb[0].mxu0
        %v2307 = vadd.f32 %v2139, %v2306
        %v2308 = vpop.f32.mrb[0].mxu0
        %2309 = vmatprep.mubr.bf16.mxu0 0
        %2310 = vmatmul.mubr.bf16.gmra.mrb[0].mxu0 %v2113
        %v2311 = vpop.f32.mrb[0].mxu0
        %v2312 = vadd.f32 %v2139, %v2311
        %v2313 = vpop.f32.mrb[0].mxu0
        %v2314 = vpop.f32.mrb[0].mxu0
        %v2315 = vadd.f32 %v2139, %v2314
        %v2316 = vpop.f32.mrb[0].mxu0
        %2317 = vmatprep.mubr.bf16.mxu0 0
        %2318 = vmatmul.mubr.bf16.gmra.mrb[0].mxu0 %v2114
        %v2319 = vpop.f32.mrb[0].mxu0
        %v2320 = vadd.f32 %v2139, %v2319
        %v2321 = vpop.f32.mrb[0].mxu0
        %v2322 = vpop.f32.mrb[0].mxu0
        %v2323 = vadd.f32 %v2139, %v2322
        %v2324 = vpop.f32.mrb[0].mxu0
        %2325 = vmatprep.mubr.bf16.mxu0 0
        %2326 = vmatmul.mubr.bf16.gmra.mrb[0].mxu0 %v2115
        %v2327 = vpop.f32.mrb[0].mxu0
        %v2328 = vadd.f32 %v2139, %v2327
        %v2329 = vpop.f32.mrb[0].mxu0
        %v2330 = vpop.f32.mrb[0].mxu0
        %v2331 = vadd.f32 %v2139, %v2330
        %v2332 = vpop.f32.mrb[0].mxu0
        %2333 = vmatprep.mubr.bf16.mxu0 0
        %2334 = vmatmul.mubr.bf16.gmra.mrb[0].mxu0 %v2116
        %v2335 = vpop.f32.mrb[0].mxu0
        %v2336 = vadd.f32 %v2139, %v2335
        %v2337 = vpop.f32.mrb[0].mxu0
        %v2338 = vpop.f32.mrb[0].mxu0
        %v2339 = vadd.f32 %v2139, %v2338
        %v2340 = vpop.f32.mrb[0].mxu0
        %2341 = vmatprep.mubr.bf16.mxu0 0
        %2342 = vmatmul.mubr.bf16.gmra.mrb[0].mxu0 %v2117
        %v2343 = vpop.f32.mrb[0].mxu0
        %v2344 = vadd.f32 %v2139, %v2343
        %v2345 = vpop.f32.mrb[0].mxu0
        %v2346 = vpop.f32.mrb[0].mxu0
        %v2347 = vadd.f32 %v2139, %v2346
        %v2348 = vpop.f32.mrb[0].mxu0
        %2349 = vdwg.mxu0
        %v2350 = vmax.f32 %v2224, 0.0
        %v2351 = vmax.f32 %v2227, 0.0
        %v2352 = vmax.f32 %v2232, 0.0
        %v2353 = vmax.f32 %v2235, 0.0
        %v2354 = vmax.f32 %v2240, 0.0
        %v2355 = vmax.f32 %v2243, 0.0
        %v2356 = vmax.f32 %v2248, 0.0
        %v2357 = vmax.f32 %v2251, 0.0
        %v2358 = vmax.f32 %v2256, 0.0
        %v2359 = vmax.f32 %v2259, 0.0
        %v2360 = vmax.f32 %v2264, 0.0
        %v2361 = vmax.f32 %v2267, 0.0
        %v2362 = vmax.f32 %v2272, 0.0
        %v2363 = vmax.f32 %v2275, 0.0
        %v2364 = vmax.f32 %v2280, 0.0
        %v2365 = vmax.f32 %v2283, 0.0
        %v2366 = vmax.f32 %v2288, 0.0
        %v2367 = vmax.f32 %v2291, 0.0
        %v2368 = vmax.f32 %v2296, 0.0
        %v2369 = vmax.f32 %v2299, 0.0
        %v2370 = vmax.f32 %v2304, 0.0
        %v2371 = vmax.f32 %v2307, 0.0
        %v2372 = vmax.f32 %v2312, 0.0
        %v2373 = vmax.f32 %v2315, 0.0
        %v2374 = vmax.f32 %v2320, 0.0
        %v2375 = vmax.f32 %v2323, 0.0
        %v2376 = vmax.f32 %v2328, 0.0
        %v2377 = vmax.f32 %v2331, 0.0
        %v2378 = vmax.f32 %v2336, 0.0
        %v2379 = vmax.f32 %v2339, 0.0
        %v2380 = vmax.f32 %v2344, 0.0
        %v2381 = vmax.f32 %v2347, 0.0
        %v2382 = vpack.c.bf16 %v2351, %v2350
        %v2383 = vpack.c.bf16 %v2353, %v2352
        %v2384 = vpack.c.bf16 %v2355, %v2354
        %v2385 = vpack.c.bf16 %v2357, %v2356
        %v2386 = vpack.c.bf16 %v2359, %v2358
        %v2387 = vpack.c.bf16 %v2361, %v2360
        %v2388 = vpack.c.bf16 %v2363, %v2362
        %v2389 = vpack.c.bf16 %v2365, %v2364
        %v2390 = vpack.c.bf16 %v2367, %v2366
        %v2391 = vpack.c.bf16 %v2369, %v2368
        %v2392 = vpack.c.bf16 %v2371, %v2370
        %v2393 = vpack.c.bf16 %v2373, %v2372
        %v2394 = vpack.c.bf16 %v2375, %v2374
        %v2395 = vpack.c.bf16 %v2377, %v2376
        %v2396 = vpack.c.bf16 %v2379, %v2378
        %v2397 = vpack.c.bf16 %v2381, %v2380
        %v2398 = vld [vmem:[%s6] sm:$0xf]
        %v2399 = vld [vmem:[%s6 + $0x4] sm:$0xf]
        %v2400 = vld [vmem:[%s6 + $0x8] sm:$0xf]
        %v2401 = vld [vmem:[%s6 + $0xc] sm:$0xf]
        %v2402 = vld [vmem:[%s6 + $0x10] sm:$0xf]
        %v2403 = vld [vmem:[%s6 + $0x14] sm:$0xf]
        %v2404 = vld [vmem:[%s6 + $0x18] sm:$0xf]
        %v2405 = vld [vmem:[%s6 + $0x1c] sm:$0xf]
        %v2406 = vld [vmem:[%s6 + $0x20] sm:$0xf]
        %v2407 = vld [vmem:[%s6 + $0x24] sm:$0xf]
        %v2408 = vld [vmem:[%s6 + $0x28] sm:$0xf]
        %v2409 = vld [vmem:[%s6 + $0x2c] sm:$0xf]
        %v2410 = vld [vmem:[%s6 + $0x30] sm:$0xf]
        %v2411 = vld [vmem:[%s6 + $0x34] sm:$0xf]
        %v2412 = vld [vmem:[%s6 + $0x38] sm:$0xf]
        %v2413 = vld [vmem:[%s6 + $0x3c] sm:$0xf]
        %v2414 = vld [vmem:[%s7] sm:$0x1]
        %v2416 = vlaneseq
        %v2417 = vshrl.u32 %v2416, 7
        %v2418 = vsub.s32 0, %v2417
        %v2419 = vrot.slane %v2414, %v2418
        %v2437 = vunpack.c.l.b16 %v2398
        %v2438 = vunpack.c.l.b16 %v2399
        %v2439 = vunpack.c.l.b16 %v2400
        %v2440 = vunpack.c.l.b16 %v2401
        %v2441 = vunpack.c.l.b16 %v2402
        %v2442 = vunpack.c.l.b16 %v2403
        %v2443 = vunpack.c.l.b16 %v2404
        %v2444 = vunpack.c.l.b16 %v2405
        %v2445 = vunpack.c.l.b16 %v2406
        %v2446 = vunpack.c.l.b16 %v2407
        %v2447 = vunpack.c.l.b16 %v2408
        %v2448 = vunpack.c.l.b16 %v2409
        %v2449 = vunpack.c.l.b16 %v2410
        %v2450 = vunpack.c.l.b16 %v2411
        %v2451 = vunpack.c.l.b16 %v2412
        %v2452 = vunpack.c.l.b16 %v2413
        %v2453 = vpack.c.b16 %v2438, %v2437
        %v2454 = vpack.c.b16 %v2440, %v2439
        %v2455 = vpack.c.b16 %v2442, %v2441
        %v2456 = vpack.c.b16 %v2444, %v2443
        %v2457 = vpack.c.b16 %v2446, %v2445
        %v2458 = vpack.c.b16 %v2448, %v2447
        %v2459 = vpack.c.b16 %v2450, %v2449
        %v2460 = vpack.c.b16 %v2452, %v2451
        %2469 = vmatprep.subr.bf16.mxu0 0
        %2470 = vmatpush1.bf16.msra.mxu0 %v2453
        %2471 = vmatprep.subr.bf16.mxu0 0
        %2472 = vmatpush1.bf16.msra.mxu0 %v2454
        %2473 = vmatprep.subr.bf16.mxu0 0
        %2474 = vmatpush1.bf16.msra.mxu0 %v2455
        %2475 = vmatprep.subr.bf16.mxu0 0
        %2476 = vmatpush1.bf16.msra.mxu0 %v2456
        %2477 = vmatprep.subr.bf16.mxu0 0
        %2478 = vmatpush1.bf16.msra.mxu0 %v2457
        %2479 = vmatprep.subr.bf16.mxu0 0
        %2480 = vmatpush1.bf16.msra.mxu0 %v2458
        %2481 = vmatprep.subr.bf16.mxu0 0
        %2482 = vmatpush1.bf16.msra.mxu0 %v2459
        %2483 = vmatprep.subr.bf16.mxu0 0
        %2484 = vmatpush1.bf16.msra.mxu0 %v2460
        %2485 = vmatprep.subr.bf16.mxu0 0
        %2486 = vmatpush1.bf16.msra.mxu0 0
        %2487 = vmatprep.subr.bf16.mxu0 0
        %2488 = vmatpush1.bf16.msra.mxu0 0
        %2489 = vmatprep.subr.bf16.mxu0 0
        %2490 = vmatpush1.bf16.msra.mxu0 0
        %2491 = vmatprep.subr.bf16.mxu0 0
        %2492 = vmatpush1.bf16.msra.mxu0 0
        %2493 = vmatprep.subr.bf16.mxu0 0
        %2494 = vmatpush1.bf16.msra.mxu0 0
        %2495 = vmatprep.subr.bf16.mxu0 0
        %2496 = vmatpush1.bf16.msra.mxu0 0
        %2497 = vmatprep.subr.bf16.mxu0 0
        %2498 = vmatpush1.bf16.msra.mxu0 0
        %2499 = vmatprep.subr.bf16.mxu0 0
        %2500 = vmatpush1.bf16.msra.mxu0 0
        %2501 = vmatprep.mubr.bf16.mxu0 0
        %2502 = vmatmul.mubr.bf16.gmra.mrb[0].mxu0 %v2382
        %v2503 = vpop.f32.mrb[0].mxu0
        %v2504 = vadd.f32 %v2419, %v2503
        %v2505 = vpop.f32.mrb[0].mxu0
        %v2506 = vpop.f32.mrb[0].mxu0
        %v2507 = vadd.f32 %v2419, %v2506
        %v2508 = vpop.f32.mrb[0].mxu0
        %2509 = vmatprep.mubr.bf16.mxu0 0
        %2510 = vmatmul.mubr.bf16.gmra.mrb[0].mxu0 %v2383
        %v2511 = vpop.f32.mrb[0].mxu0
        %v2512 = vadd.f32 %v2419, %v2511
        %v2513 = vpop.f32.mrb[0].mxu0
        %v2514 = vpop.f32.mrb[0].mxu0
        %v2515 = vadd.f32 %v2419, %v2514
        %v2516 = vpop.f32.mrb[0].mxu0
        %2517 = vmatprep.mubr.bf16.mxu0 0
        %2518 = vmatmul.mubr.bf16.gmra.mrb[0].mxu0 %v2384
        %v2519 = vpop.f32.mrb[0].mxu0
        %v2520 = vadd.f32 %v2419, %v2519
        %v2521 = vpop.f32.mrb[0].mxu0
        %v2522 = vpop.f32.mrb[0].mxu0
        %v2523 = vadd.f32 %v2419, %v2522
        %v2524 = vpop.f32.mrb[0].mxu0
        %2525 = vmatprep.mubr.bf16.mxu0 0
        %2526 = vmatmul.mubr.bf16.gmra.mrb[0].mxu0 %v2385
        %v2527 = vpop.f32.mrb[0].mxu0
        %v2528 = vadd.f32 %v2419, %v2527
        %v2529 = vpop.f32.mrb[0].mxu0
        %v2530 = vpop.f32.mrb[0].mxu0
        %v2531 = vadd.f32 %v2419, %v2530
        %v2532 = vpop.f32.mrb[0].mxu0
        %2533 = vmatprep.mubr.bf16.mxu0 0
        %2534 = vmatmul.mubr.bf16.gmra.mrb[0].mxu0 %v2386
        %v2535 = vpop.f32.mrb[0].mxu0
        %v2536 = vadd.f32 %v2419, %v2535
        %v2537 = vpop.f32.mrb[0].mxu0
        %v2538 = vpop.f32.mrb[0].mxu0
        %v2539 = vadd.f32 %v2419, %v2538
        %v2540 = vpop.f32.mrb[0].mxu0
        %2541 = vmatprep.mubr.bf16.mxu0 0
        %2542 = vmatmul.mubr.bf16.gmra.mrb[0].mxu0 %v2387
        %v2543 = vpop.f32.mrb[0].mxu0
        %v2544 = vadd.f32 %v2419, %v2543
        %v2545 = vpop.f32.mrb[0].mxu0
        %v2546 = vpop.f32.mrb[0].mxu0
        %v2547 = vadd.f32 %v2419, %v2546
        %v2548 = vpop.f32.mrb[0].mxu0
        %2549 = vmatprep.mubr.bf16.mxu0 0
        %2550 = vmatmul.mubr.bf16.gmra.mrb[0].mxu0 %v2388
        %v2551 = vpop.f32.mrb[0].mxu0
        %v2552 = vadd.f32 %v2419, %v2551
        %v2553 = vpop.f32.mrb[0].mxu0
        %v2554 = vpop.f32.mrb[0].mxu0
        %v2555 = vadd.f32 %v2419, %v2554
        %v2556 = vpop.f32.mrb[0].mxu0
        %2557 = vmatprep.mubr.bf16.mxu0 0
        %2558 = vmatmul.mubr.bf16.gmra.mrb[0].mxu0 %v2389
        %v2559 = vpop.f32.mrb[0].mxu0
        %v2560 = vadd.f32 %v2419, %v2559
        %v2561 = vpop.f32.mrb[0].mxu0
        %v2562 = vpop.f32.mrb[0].mxu0
        %v2563 = vadd.f32 %v2419, %v2562
        %v2564 = vpop.f32.mrb[0].mxu0
        %2565 = vmatprep.mubr.bf16.mxu0 0
        %2566 = vmatmul.mubr.bf16.gmra.mrb[0].mxu0 %v2390
        %v2567 = vpop.f32.mrb[0].mxu0
        %v2568 = vadd.f32 %v2419, %v2567
        %v2569 = vpop.f32.mrb[0].mxu0
        %v2570 = vpop.f32.mrb[0].mxu0
        %v2571 = vadd.f32 %v2419, %v2570
        %v2572 = vpop.f32.mrb[0].mxu0
        %2573 = vmatprep.mubr.bf16.mxu0 0
        %2574 = vmatmul.mubr.bf16.gmra.mrb[0].mxu0 %v2391
        %v2575 = vpop.f32.mrb[0].mxu0
        %v2576 = vadd.f32 %v2419, %v2575
        %v2577 = vpop.f32.mrb[0].mxu0
        %v2578 = vpop.f32.mrb[0].mxu0
        %v2579 = vadd.f32 %v2419, %v2578
        %v2580 = vpop.f32.mrb[0].mxu0
        %2581 = vmatprep.mubr.bf16.mxu0 0
        %2582 = vmatmul.mubr.bf16.gmra.mrb[0].mxu0 %v2392
        %v2583 = vpop.f32.mrb[0].mxu0
        %v2584 = vadd.f32 %v2419, %v2583
        %v2585 = vpop.f32.mrb[0].mxu0
        %v2586 = vpop.f32.mrb[0].mxu0
        %v2587 = vadd.f32 %v2419, %v2586
        %v2588 = vpop.f32.mrb[0].mxu0
        %2589 = vmatprep.mubr.bf16.mxu0 0
        %2590 = vmatmul.mubr.bf16.gmra.mrb[0].mxu0 %v2393
        %v2591 = vpop.f32.mrb[0].mxu0
        %v2592 = vadd.f32 %v2419, %v2591
        %v2593 = vpop.f32.mrb[0].mxu0
        %v2594 = vpop.f32.mrb[0].mxu0
        %v2595 = vadd.f32 %v2419, %v2594
        %v2596 = vpop.f32.mrb[0].mxu0
        %2597 = vmatprep.mubr.bf16.mxu0 0
        %2598 = vmatmul.mubr.bf16.gmra.mrb[0].mxu0 %v2394
        %v2599 = vpop.f32.mrb[0].mxu0
        %v2600 = vadd.f32 %v2419, %v2599
        %v2601 = vpop.f32.mrb[0].mxu0
        %v2602 = vpop.f32.mrb[0].mxu0
        %v2603 = vadd.f32 %v2419, %v2602
        %v2604 = vpop.f32.mrb[0].mxu0
        %2605 = vmatprep.mubr.bf16.mxu0 0
        %2606 = vmatmul.mubr.bf16.gmra.mrb[0].mxu0 %v2395
        %v2607 = vpop.f32.mrb[0].mxu0
        %v2608 = vadd.f32 %v2419, %v2607
        %v2609 = vpop.f32.mrb[0].mxu0
        %v2610 = vpop.f32.mrb[0].mxu0
        %v2611 = vadd.f32 %v2419, %v2610
        %v2612 = vpop.f32.mrb[0].mxu0
        %2613 = vmatprep.mubr.bf16.mxu0 0
        %2614 = vmatmul.mubr.bf16.gmra.mrb[0].mxu0 %v2396
        %v2615 = vpop.f32.mrb[0].mxu0
        %v2616 = vadd.f32 %v2419, %v2615
        %v2617 = vpop.f32.mrb[0].mxu0
        %v2618 = vpop.f32.mrb[0].mxu0
        %v2619 = vadd.f32 %v2419, %v2618
        %v2620 = vpop.f32.mrb[0].mxu0
        %2621 = vmatprep.mubr.bf16.mxu0 0
        %2622 = vmatmul.mubr.bf16.gmra.mrb[0].mxu0 %v2397
        %v2623 = vpop.f32.mrb[0].mxu0
        %v2624 = vadd.f32 %v2419, %v2623
        %v2625 = vpop.f32.mrb[0].mxu0
        %v2626 = vpop.f32.mrb[0].mxu0
        %v2627 = vadd.f32 %v2419, %v2626
        %v2628 = vpop.f32.mrb[0].mxu0
        %2629 = vdwg.mxu0
        %v2630 = vmax.f32 %v2504, 0.0
        %v2631 = vmax.f32 %v2507, 0.0
        %v2632 = vmax.f32 %v2512, 0.0
        %v2633 = vmax.f32 %v2515, 0.0
        %v2634 = vmax.f32 %v2520, 0.0
        %v2635 = vmax.f32 %v2523, 0.0
        %v2636 = vmax.f32 %v2528, 0.0
        %v2637 = vmax.f32 %v2531, 0.0
        %v2638 = vmax.f32 %v2536, 0.0
        %v2639 = vmax.f32 %v2539, 0.0
        %v2640 = vmax.f32 %v2544, 0.0
        %v2641 = vmax.f32 %v2547, 0.0
        %v2642 = vmax.f32 %v2552, 0.0
        %v2643 = vmax.f32 %v2555, 0.0
        %v2644 = vmax.f32 %v2560, 0.0
        %v2645 = vmax.f32 %v2563, 0.0
        %v2646 = vmax.f32 %v2568, 0.0
        %v2647 = vmax.f32 %v2571, 0.0
        %v2648 = vmax.f32 %v2576, 0.0
        %v2649 = vmax.f32 %v2579, 0.0
        %v2650 = vmax.f32 %v2584, 0.0
        %v2651 = vmax.f32 %v2587, 0.0
        %v2652 = vmax.f32 %v2592, 0.0
        %v2653 = vmax.f32 %v2595, 0.0
        %v2654 = vmax.f32 %v2600, 0.0
        %v2655 = vmax.f32 %v2603, 0.0
        %v2656 = vmax.f32 %v2608, 0.0
        %v2657 = vmax.f32 %v2611, 0.0
        %v2658 = vmax.f32 %v2616, 0.0
        %v2659 = vmax.f32 %v2619, 0.0
        %v2660 = vmax.f32 %v2624, 0.0
        %v2661 = vmax.f32 %v2627, 0.0
        %v2662 = vpack.c.bf16 %v2631, %v2630
        %v2663 = vpack.c.bf16 %v2633, %v2632
        %v2664 = vpack.c.bf16 %v2635, %v2634
        %v2665 = vpack.c.bf16 %v2637, %v2636
        %v2666 = vpack.c.bf16 %v2639, %v2638
        %v2667 = vpack.c.bf16 %v2641, %v2640
        %v2668 = vpack.c.bf16 %v2643, %v2642
        %v2669 = vpack.c.bf16 %v2645, %v2644
        %v2670 = vpack.c.bf16 %v2647, %v2646
        %v2671 = vpack.c.bf16 %v2649, %v2648
        %v2672 = vpack.c.bf16 %v2651, %v2650
        %v2673 = vpack.c.bf16 %v2653, %v2652
        %v2674 = vpack.c.bf16 %v2655, %v2654
        %v2675 = vpack.c.bf16 %v2657, %v2656
        %v2676 = vpack.c.bf16 %v2659, %v2658
        %v2677 = vpack.c.bf16 %v2661, %v2660
        %s2678 = scalar_lea.vmem %s6, 64
        %v2679 = vld [vmem:[%s2678] sm:$0xf]
        %v2680 = vld [vmem:[%s2678 + $0x4] sm:$0xf]
        %v2681 = vld [vmem:[%s2678 + $0x8] sm:$0xf]
        %v2682 = vld [vmem:[%s2678 + $0xc] sm:$0xf]
        %v2683 = vld [vmem:[%s2678 + $0x10] sm:$0xf]
        %v2684 = vld [vmem:[%s2678 + $0x14] sm:$0xf]
        %v2685 = vld [vmem:[%s2678 + $0x18] sm:$0xf]
        %v2686 = vld [vmem:[%s2678 + $0x1c] sm:$0xf]
        %v2687 = vld [vmem:[%s2678 + $0x20] sm:$0xf]
        %v2688 = vld [vmem:[%s2678 + $0x24] sm:$0xf]
        %v2689 = vld [vmem:[%s2678 + $0x28] sm:$0xf]
        %v2690 = vld [vmem:[%s2678 + $0x2c] sm:$0xf]
        %v2691 = vld [vmem:[%s2678 + $0x30] sm:$0xf]
        %v2692 = vld [vmem:[%s2678 + $0x34] sm:$0xf]
        %v2693 = vld [vmem:[%s2678 + $0x38] sm:$0xf]
        %v2694 = vld [vmem:[%s2678 + $0x3c] sm:$0xf]
        %s2695 = scalar_lea.vmem %s7, 1
        %v2696 = vld [vmem:[%s2695] sm:$0x1]
        %v2698 = vlaneseq
        %v2699 = vshrl.u32 %v2698, 7
        %v2700 = vsub.s32 0, %v2699
        %v2701 = vrot.slane %v2696, %v2700
        %v2719 = vunpack.c.l.b16 %v2679
        %v2720 = vunpack.c.l.b16 %v2680
        %v2721 = vunpack.c.l.b16 %v2681
        %v2722 = vunpack.c.l.b16 %v2682
        %v2723 = vunpack.c.l.b16 %v2683
        %v2724 = vunpack.c.l.b16 %v2684
        %v2725 = vunpack.c.l.b16 %v2685
        %v2726 = vunpack.c.l.b16 %v2686
        %v2727 = vunpack.c.l.b16 %v2687
        %v2728 = vunpack.c.l.b16 %v2688
        %v2729 = vunpack.c.l.b16 %v2689
        %v2730 = vunpack.c.l.b16 %v2690
        %v2731 = vunpack.c.l.b16 %v2691
        %v2732 = vunpack.c.l.b16 %v2692
        %v2733 = vunpack.c.l.b16 %v2693
        %v2734 = vunpack.c.l.b16 %v2694
        %v2735 = vpack.c.b16 %v2720, %v2719
        %v2736 = vpack.c.b16 %v2722, %v2721
        %v2737 = vpack.c.b16 %v2724, %v2723
        %v2738 = vpack.c.b16 %v2726, %v2725
        %v2739 = vpack.c.b16 %v2728, %v2727
        %v2740 = vpack.c.b16 %v2730, %v2729
        %v2741 = vpack.c.b16 %v2732, %v2731
        %v2742 = vpack.c.b16 %v2734, %v2733
        %2751 = vmatprep.subr.bf16.mxu0 0
        %2752 = vmatpush1.bf16.msra.mxu0 %v2735
        %2753 = vmatprep.subr.bf16.mxu0 0
        %2754 = vmatpush1.bf16.msra.mxu0 %v2736
        %2755 = vmatprep.subr.bf16.mxu0 0
        %2756 = vmatpush1.bf16.msra.mxu0 %v2737
        %2757 = vmatprep.subr.bf16.mxu0 0
        %2758 = vmatpush1.bf16.msra.mxu0 %v2738
        %2759 = vmatprep.subr.bf16.mxu0 0
        %2760 = vmatpush1.bf16.msra.mxu0 %v2739
        %2761 = vmatprep.subr.bf16.mxu0 0
        %2762 = vmatpush1.bf16.msra.mxu0 %v2740
        %2763 = vmatprep.subr.bf16.mxu0 0
        %2764 = vmatpush1.bf16.msra.mxu0 %v2741
        %2765 = vmatprep.subr.bf16.mxu0 0
        %2766 = vmatpush1.bf16.msra.mxu0 %v2742
        %2767 = vmatprep.subr.bf16.mxu0 0
        %2768 = vmatpush1.bf16.msra.mxu0 0
        %2769 = vmatprep.subr.bf16.mxu0 0
        %2770 = vmatpush1.bf16.msra.mxu0 0
        %2771 = vmatprep.subr.bf16.mxu0 0
        %2772 = vmatpush1.bf16.msra.mxu0 0
        %2773 = vmatprep.subr.bf16.mxu0 0
        %2774 = vmatpush1.bf16.msra.mxu0 0
        %2775 = vmatprep.subr.bf16.mxu0 0
        %2776 = vmatpush1.bf16.msra.mxu0 0
        %2777 = vmatprep.subr.bf16.mxu0 0
        %2778 = vmatpush1.bf16.msra.mxu0 0
        %2779 = vmatprep.subr.bf16.mxu0 0
        %2780 = vmatpush1.bf16.msra.mxu0 0
        %2781 = vmatprep.subr.bf16.mxu0 0
        %2782 = vmatpush1.bf16.msra.mxu0 0
        %2783 = vmatprep.mubr.bf16.mxu0 0
        %2784 = vmatmul.mubr.bf16.gmra.mrb[0].mxu0 %v2662
        %v2785 = vpop.f32.mrb[0].mxu0
        %v2786 = vadd.f32 %v2701, %v2785
        %v2787 = vpop.f32.mrb[0].mxu0
        %v2788 = vpop.f32.mrb[0].mxu0
        %v2789 = vadd.f32 %v2701, %v2788
        %v2790 = vpop.f32.mrb[0].mxu0
        %2791 = vmatprep.mubr.bf16.mxu0 0
        %2792 = vmatmul.mubr.bf16.gmra.mrb[0].mxu0 %v2663
        %v2793 = vpop.f32.mrb[0].mxu0
        %v2794 = vadd.f32 %v2701, %v2793
        %v2795 = vpop.f32.mrb[0].mxu0
        %v2796 = vpop.f32.mrb[0].mxu0
        %v2797 = vadd.f32 %v2701, %v2796
        %v2798 = vpop.f32.mrb[0].mxu0
        %2799 = vmatprep.mubr.bf16.mxu0 0
        %2800 = vmatmul.mubr.bf16.gmra.mrb[0].mxu0 %v2664
        %v2801 = vpop.f32.mrb[0].mxu0
        %v2802 = vadd.f32 %v2701, %v2801
        %v2803 = vpop.f32.mrb[0].mxu0
        %v2804 = vpop.f32.mrb[0].mxu0
        %v2805 = vadd.f32 %v2701, %v2804
        %v2806 = vpop.f32.mrb[0].mxu0
        %2807 = vmatprep.mubr.bf16.mxu0 0
        %2808 = vmatmul.mubr.bf16.gmra.mrb[0].mxu0 %v2665
        %v2809 = vpop.f32.mrb[0].mxu0
        %v2810 = vadd.f32 %v2701, %v2809
        %v2811 = vpop.f32.mrb[0].mxu0
        %v2812 = vpop.f32.mrb[0].mxu0
        %v2813 = vadd.f32 %v2701, %v2812
        %v2814 = vpop.f32.mrb[0].mxu0
        %2815 = vmatprep.mubr.bf16.mxu0 0
        %2816 = vmatmul.mubr.bf16.gmra.mrb[0].mxu0 %v2666
        %v2817 = vpop.f32.mrb[0].mxu0
        %v2818 = vadd.f32 %v2701, %v2817
        %v2819 = vpop.f32.mrb[0].mxu0
        %v2820 = vpop.f32.mrb[0].mxu0
        %v2821 = vadd.f32 %v2701, %v2820
        %v2822 = vpop.f32.mrb[0].mxu0
        %2823 = vmatprep.mubr.bf16.mxu0 0
        %2824 = vmatmul.mubr.bf16.gmra.mrb[0].mxu0 %v2667
        %v2825 = vpop.f32.mrb[0].mxu0
        %v2826 = vadd.f32 %v2701, %v2825
        %v2827 = vpop.f32.mrb[0].mxu0
        %v2828 = vpop.f32.mrb[0].mxu0
        %v2829 = vadd.f32 %v2701, %v2828
        %v2830 = vpop.f32.mrb[0].mxu0
        %2831 = vmatprep.mubr.bf16.mxu0 0
        %2832 = vmatmul.mubr.bf16.gmra.mrb[0].mxu0 %v2668
        %v2833 = vpop.f32.mrb[0].mxu0
        %v2834 = vadd.f32 %v2701, %v2833
        %v2835 = vpop.f32.mrb[0].mxu0
        %v2836 = vpop.f32.mrb[0].mxu0
        %v2837 = vadd.f32 %v2701, %v2836
        %v2838 = vpop.f32.mrb[0].mxu0
        %2839 = vmatprep.mubr.bf16.mxu0 0
        %2840 = vmatmul.mubr.bf16.gmra.mrb[0].mxu0 %v2669
        %v2841 = vpop.f32.mrb[0].mxu0
        %v2842 = vadd.f32 %v2701, %v2841
        %v2843 = vpop.f32.mrb[0].mxu0
        %v2844 = vpop.f32.mrb[0].mxu0
        %v2845 = vadd.f32 %v2701, %v2844
        %v2846 = vpop.f32.mrb[0].mxu0
        %2847 = vmatprep.mubr.bf16.mxu0 0
        %2848 = vmatmul.mubr.bf16.gmra.mrb[0].mxu0 %v2670
        %v2849 = vpop.f32.mrb[0].mxu0
        %v2850 = vadd.f32 %v2701, %v2849
        %v2851 = vpop.f32.mrb[0].mxu0
        %v2852 = vpop.f32.mrb[0].mxu0
        %v2853 = vadd.f32 %v2701, %v2852
        %v2854 = vpop.f32.mrb[0].mxu0
        %2855 = vmatprep.mubr.bf16.mxu0 0
        %2856 = vmatmul.mubr.bf16.gmra.mrb[0].mxu0 %v2671
        %v2857 = vpop.f32.mrb[0].mxu0
        %v2858 = vadd.f32 %v2701, %v2857
        %v2859 = vpop.f32.mrb[0].mxu0
        %v2860 = vpop.f32.mrb[0].mxu0
        %v2861 = vadd.f32 %v2701, %v2860
        %v2862 = vpop.f32.mrb[0].mxu0
        %2863 = vmatprep.mubr.bf16.mxu0 0
        %2864 = vmatmul.mubr.bf16.gmra.mrb[0].mxu0 %v2672
        %v2865 = vpop.f32.mrb[0].mxu0
        %v2866 = vadd.f32 %v2701, %v2865
        %v2867 = vpop.f32.mrb[0].mxu0
        %v2868 = vpop.f32.mrb[0].mxu0
        %v2869 = vadd.f32 %v2701, %v2868
        %v2870 = vpop.f32.mrb[0].mxu0
        %2871 = vmatprep.mubr.bf16.mxu0 0
        %2872 = vmatmul.mubr.bf16.gmra.mrb[0].mxu0 %v2673
        %v2873 = vpop.f32.mrb[0].mxu0
        %v2874 = vadd.f32 %v2701, %v2873
        %v2875 = vpop.f32.mrb[0].mxu0
        %v2876 = vpop.f32.mrb[0].mxu0
        %v2877 = vadd.f32 %v2701, %v2876
        %v2878 = vpop.f32.mrb[0].mxu0
        %2879 = vmatprep.mubr.bf16.mxu0 0
        %2880 = vmatmul.mubr.bf16.gmra.mrb[0].mxu0 %v2674
        %v2881 = vpop.f32.mrb[0].mxu0
        %v2882 = vadd.f32 %v2701, %v2881
        %v2883 = vpop.f32.mrb[0].mxu0
        %v2884 = vpop.f32.mrb[0].mxu0
        %v2885 = vadd.f32 %v2701, %v2884
        %v2886 = vpop.f32.mrb[0].mxu0
        %2887 = vmatprep.mubr.bf16.mxu0 0
        %2888 = vmatmul.mubr.bf16.gmra.mrb[0].mxu0 %v2675
        %v2889 = vpop.f32.mrb[0].mxu0
        %v2890 = vadd.f32 %v2701, %v2889
        %v2891 = vpop.f32.mrb[0].mxu0
        %v2892 = vpop.f32.mrb[0].mxu0
        %v2893 = vadd.f32 %v2701, %v2892
        %v2894 = vpop.f32.mrb[0].mxu0
        %2895 = vmatprep.mubr.bf16.mxu0 0
        %2896 = vmatmul.mubr.bf16.gmra.mrb[0].mxu0 %v2676
        %v2897 = vpop.f32.mrb[0].mxu0
        %v2898 = vadd.f32 %v2701, %v2897
        %v2899 = vpop.f32.mrb[0].mxu0
        %v2900 = vpop.f32.mrb[0].mxu0
        %v2901 = vadd.f32 %v2701, %v2900
        %v2902 = vpop.f32.mrb[0].mxu0
        %2903 = vmatprep.mubr.bf16.mxu0 0
        %2904 = vmatmul.mubr.bf16.gmra.mrb[0].mxu0 %v2677
        %v2905 = vpop.f32.mrb[0].mxu0
        %v2906 = vadd.f32 %v2701, %v2905
        %v2907 = vpop.f32.mrb[0].mxu0
        %v2908 = vpop.f32.mrb[0].mxu0
        %v2909 = vadd.f32 %v2701, %v2908
        %v2910 = vpop.f32.mrb[0].mxu0
        %2911 = vdwg.mxu0
        %v2912 = vmax.f32 %v2786, 0.0
        %v2913 = vmax.f32 %v2789, 0.0
        %v2914 = vmax.f32 %v2794, 0.0
        %v2915 = vmax.f32 %v2797, 0.0
        %v2916 = vmax.f32 %v2802, 0.0
        %v2917 = vmax.f32 %v2805, 0.0
        %v2918 = vmax.f32 %v2810, 0.0
        %v2919 = vmax.f32 %v2813, 0.0
        %v2920 = vmax.f32 %v2818, 0.0
        %v2921 = vmax.f32 %v2821, 0.0
        %v2922 = vmax.f32 %v2826, 0.0
        %v2923 = vmax.f32 %v2829, 0.0
        %v2924 = vmax.f32 %v2834, 0.0
        %v2925 = vmax.f32 %v2837, 0.0
        %v2926 = vmax.f32 %v2842, 0.0
        %v2927 = vmax.f32 %v2845, 0.0
        %v2928 = vmax.f32 %v2850, 0.0
        %v2929 = vmax.f32 %v2853, 0.0
        %v2930 = vmax.f32 %v2858, 0.0
        %v2931 = vmax.f32 %v2861, 0.0
        %v2932 = vmax.f32 %v2866, 0.0
        %v2933 = vmax.f32 %v2869, 0.0
        %v2934 = vmax.f32 %v2874, 0.0
        %v2935 = vmax.f32 %v2877, 0.0
        %v2936 = vmax.f32 %v2882, 0.0
        %v2937 = vmax.f32 %v2885, 0.0
        %v2938 = vmax.f32 %v2890, 0.0
        %v2939 = vmax.f32 %v2893, 0.0
        %v2940 = vmax.f32 %v2898, 0.0
        %v2941 = vmax.f32 %v2901, 0.0
        %v2942 = vmax.f32 %v2906, 0.0
        %v2943 = vmax.f32 %v2909, 0.0
        %v2944 = vpack.c.bf16 %v2913, %v2912
        %v2945 = vpack.c.bf16 %v2915, %v2914
        %v2946 = vpack.c.bf16 %v2917, %v2916
        %v2947 = vpack.c.bf16 %v2919, %v2918
        %v2948 = vpack.c.bf16 %v2921, %v2920
        %v2949 = vpack.c.bf16 %v2923, %v2922
        %v2950 = vpack.c.bf16 %v2925, %v2924
        %v2951 = vpack.c.bf16 %v2927, %v2926
        %v2952 = vpack.c.bf16 %v2929, %v2928
        %v2953 = vpack.c.bf16 %v2931, %v2930
        %v2954 = vpack.c.bf16 %v2933, %v2932
        %v2955 = vpack.c.bf16 %v2935, %v2934
        %v2956 = vpack.c.bf16 %v2937, %v2936
        %v2957 = vpack.c.bf16 %v2939, %v2938
        %v2958 = vpack.c.bf16 %v2941, %v2940
        %v2959 = vpack.c.bf16 %v2943, %v2942
        %v2960 = vld [vmem:[%s8] sm:$0xf]
        %v2961 = vld [vmem:[%s8 + $0x4] sm:$0xf]
        %v2962 = vld [vmem:[%s8 + $0x8] sm:$0xf]
        %v2963 = vld [vmem:[%s8 + $0xc] sm:$0xf]
        %v2964 = vld [vmem:[%s8 + $0x10] sm:$0xf]
        %v2965 = vld [vmem:[%s8 + $0x14] sm:$0xf]
        %v2966 = vld [vmem:[%s8 + $0x18] sm:$0xf]
        %v2967 = vld [vmem:[%s8 + $0x1c] sm:$0xf]
        %v2968 = vld [vmem:[%s8 + $0x20] sm:$0xf]
        %v2969 = vld [vmem:[%s8 + $0x24] sm:$0xf]
        %v2970 = vld [vmem:[%s8 + $0x28] sm:$0xf]
        %v2971 = vld [vmem:[%s8 + $0x2c] sm:$0xf]
        %v2972 = vld [vmem:[%s8 + $0x30] sm:$0xf]
        %v2973 = vld [vmem:[%s8 + $0x34] sm:$0xf]
        %v2974 = vld [vmem:[%s8 + $0x38] sm:$0xf]
        %v2975 = vld [vmem:[%s8 + $0x3c] sm:$0xf]
        %v2976 = vld [vmem:[%s9] sm:$0x1]
        %v2978 = vlaneseq
        %v2979 = vshrl.u32 %v2978, 7
        %v2980 = vsub.s32 0, %v2979
        %v2981 = vrot.slane %v2976, %v2980
        %v2999 = vunpack.c.l.b16 %v2960
        %v3000 = vunpack.c.l.b16 %v2961
        %v3001 = vunpack.c.l.b16 %v2962
        %v3002 = vunpack.c.l.b16 %v2963
        %v3003 = vunpack.c.l.b16 %v2964
        %v3004 = vunpack.c.l.b16 %v2965
        %v3005 = vunpack.c.l.b16 %v2966
        %v3006 = vunpack.c.l.b16 %v2967
        %v3007 = vunpack.c.l.b16 %v2968
        %v3008 = vunpack.c.l.b16 %v2969
        %v3009 = vunpack.c.l.b16 %v2970
        %v3010 = vunpack.c.l.b16 %v2971
        %v3011 = vunpack.c.l.b16 %v2972
        %v3012 = vunpack.c.l.b16 %v2973
        %v3013 = vunpack.c.l.b16 %v2974
        %v3014 = vunpack.c.l.b16 %v2975
        %v3015 = vpack.c.b16 %v3000, %v2999
        %v3016 = vpack.c.b16 %v3002, %v3001
        %v3017 = vpack.c.b16 %v3004, %v3003
        %v3018 = vpack.c.b16 %v3006, %v3005
        %v3019 = vpack.c.b16 %v3008, %v3007
        %v3020 = vpack.c.b16 %v3010, %v3009
        %v3021 = vpack.c.b16 %v3012, %v3011
        %v3022 = vpack.c.b16 %v3014, %v3013
        %3031 = vmatprep.subr.bf16.mxu0 0
        %3032 = vmatpush1.bf16.msra.mxu0 %v3015
        %3033 = vmatprep.subr.bf16.mxu0 0
        %3034 = vmatpush1.bf16.msra.mxu0 %v3016
        %3035 = vmatprep.subr.bf16.mxu0 0
        %3036 = vmatpush1.bf16.msra.mxu0 %v3017
        %3037 = vmatprep.subr.bf16.mxu0 0
        %3038 = vmatpush1.bf16.msra.mxu0 %v3018
        %3039 = vmatprep.subr.bf16.mxu0 0
        %3040 = vmatpush1.bf16.msra.mxu0 %v3019
        %3041 = vmatprep.subr.bf16.mxu0 0
        %3042 = vmatpush1.bf16.msra.mxu0 %v3020
        %3043 = vmatprep.subr.bf16.mxu0 0
        %3044 = vmatpush1.bf16.msra.mxu0 %v3021
        %3045 = vmatprep.subr.bf16.mxu0 0
        %3046 = vmatpush1.bf16.msra.mxu0 %v3022
        %3047 = vmatprep.subr.bf16.mxu0 0
        %3048 = vmatpush1.bf16.msra.mxu0 0
        %3049 = vmatprep.subr.bf16.mxu0 0
        %3050 = vmatpush1.bf16.msra.mxu0 0
        %3051 = vmatprep.subr.bf16.mxu0 0
        %3052 = vmatpush1.bf16.msra.mxu0 0
        %3053 = vmatprep.subr.bf16.mxu0 0
        %3054 = vmatpush1.bf16.msra.mxu0 0
        %3055 = vmatprep.subr.bf16.mxu0 0
        %3056 = vmatpush1.bf16.msra.mxu0 0
        %3057 = vmatprep.subr.bf16.mxu0 0
        %3058 = vmatpush1.bf16.msra.mxu0 0
        %3059 = vmatprep.subr.bf16.mxu0 0
        %3060 = vmatpush1.bf16.msra.mxu0 0
        %3061 = vmatprep.subr.bf16.mxu0 0
        %3062 = vmatpush1.bf16.msra.mxu0 0
        %3063 = vmatprep.mubr.bf16.mxu0 0
        %3064 = vmatmul.mubr.bf16.gmra.mrb[0].mxu0 %v2944
        %v3065 = vpop.f32.mrb[0].mxu0
        %v3066 = vadd.f32 %v2981, %v3065
        %v3067 = vpop.f32.mrb[0].mxu0
        %v3068 = vpop.f32.mrb[0].mxu0
        %v3069 = vadd.f32 %v2981, %v3068
        %v3070 = vpop.f32.mrb[0].mxu0
        %3071 = vmatprep.mubr.bf16.mxu0 0
        %3072 = vmatmul.mubr.bf16.gmra.mrb[0].mxu0 %v2945
        %v3073 = vpop.f32.mrb[0].mxu0
        %v3074 = vadd.f32 %v2981, %v3073
        %v3075 = vpop.f32.mrb[0].mxu0
        %v3076 = vpop.f32.mrb[0].mxu0
        %v3077 = vadd.f32 %v2981, %v3076
        %v3078 = vpop.f32.mrb[0].mxu0
        %3079 = vmatprep.mubr.bf16.mxu0 0
        %3080 = vmatmul.mubr.bf16.gmra.mrb[0].mxu0 %v2946
        %v3081 = vpop.f32.mrb[0].mxu0
        %v3082 = vadd.f32 %v2981, %v3081
        %v3083 = vpop.f32.mrb[0].mxu0
        %v3084 = vpop.f32.mrb[0].mxu0
        %v3085 = vadd.f32 %v2981, %v3084
        %v3086 = vpop.f32.mrb[0].mxu0
        %3087 = vmatprep.mubr.bf16.mxu0 0
        %3088 = vmatmul.mubr.bf16.gmra.mrb[0].mxu0 %v2947
        %v3089 = vpop.f32.mrb[0].mxu0
        %v3090 = vadd.f32 %v2981, %v3089
        %v3091 = vpop.f32.mrb[0].mxu0
        %v3092 = vpop.f32.mrb[0].mxu0
        %v3093 = vadd.f32 %v2981, %v3092
        %v3094 = vpop.f32.mrb[0].mxu0
        %3095 = vmatprep.mubr.bf16.mxu0 0
        %3096 = vmatmul.mubr.bf16.gmra.mrb[0].mxu0 %v2948
        %v3097 = vpop.f32.mrb[0].mxu0
        %v3098 = vadd.f32 %v2981, %v3097
        %v3099 = vpop.f32.mrb[0].mxu0
        %v3100 = vpop.f32.mrb[0].mxu0
        %v3101 = vadd.f32 %v2981, %v3100
        %v3102 = vpop.f32.mrb[0].mxu0
        %3103 = vmatprep.mubr.bf16.mxu0 0
        %3104 = vmatmul.mubr.bf16.gmra.mrb[0].mxu0 %v2949
        %v3105 = vpop.f32.mrb[0].mxu0
        %v3106 = vadd.f32 %v2981, %v3105
        %v3107 = vpop.f32.mrb[0].mxu0
        %v3108 = vpop.f32.mrb[0].mxu0
        %v3109 = vadd.f32 %v2981, %v3108
        %v3110 = vpop.f32.mrb[0].mxu0
        %3111 = vmatprep.mubr.bf16.mxu0 0
        %3112 = vmatmul.mubr.bf16.gmra.mrb[0].mxu0 %v2950
        %v3113 = vpop.f32.mrb[0].mxu0
        %v3114 = vadd.f32 %v2981, %v3113
        %v3115 = vpop.f32.mrb[0].mxu0
        %v3116 = vpop.f32.mrb[0].mxu0
        %v3117 = vadd.f32 %v2981, %v3116
        %v3118 = vpop.f32.mrb[0].mxu0
        %3119 = vmatprep.mubr.bf16.mxu0 0
        %3120 = vmatmul.mubr.bf16.gmra.mrb[0].mxu0 %v2951
        %v3121 = vpop.f32.mrb[0].mxu0
        %v3122 = vadd.f32 %v2981, %v3121
        %v3123 = vpop.f32.mrb[0].mxu0
        %v3124 = vpop.f32.mrb[0].mxu0
        %v3125 = vadd.f32 %v2981, %v3124
        %v3126 = vpop.f32.mrb[0].mxu0
        %3127 = vmatprep.mubr.bf16.mxu0 0
        %3128 = vmatmul.mubr.bf16.gmra.mrb[0].mxu0 %v2952
        %v3129 = vpop.f32.mrb[0].mxu0
        %v3130 = vadd.f32 %v2981, %v3129
        %v3131 = vpop.f32.mrb[0].mxu0
        %v3132 = vpop.f32.mrb[0].mxu0
        %v3133 = vadd.f32 %v2981, %v3132
        %v3134 = vpop.f32.mrb[0].mxu0
        %3135 = vmatprep.mubr.bf16.mxu0 0
        %3136 = vmatmul.mubr.bf16.gmra.mrb[0].mxu0 %v2953
        %v3137 = vpop.f32.mrb[0].mxu0
        %v3138 = vadd.f32 %v2981, %v3137
        %v3139 = vpop.f32.mrb[0].mxu0
        %v3140 = vpop.f32.mrb[0].mxu0
        %v3141 = vadd.f32 %v2981, %v3140
        %v3142 = vpop.f32.mrb[0].mxu0
        %3143 = vmatprep.mubr.bf16.mxu0 0
        %3144 = vmatmul.mubr.bf16.gmra.mrb[0].mxu0 %v2954
        %v3145 = vpop.f32.mrb[0].mxu0
        %v3146 = vadd.f32 %v2981, %v3145
        %v3147 = vpop.f32.mrb[0].mxu0
        %v3148 = vpop.f32.mrb[0].mxu0
        %v3149 = vadd.f32 %v2981, %v3148
        %v3150 = vpop.f32.mrb[0].mxu0
        %3151 = vmatprep.mubr.bf16.mxu0 0
        %3152 = vmatmul.mubr.bf16.gmra.mrb[0].mxu0 %v2955
        %v3153 = vpop.f32.mrb[0].mxu0
        %v3154 = vadd.f32 %v2981, %v3153
        %v3155 = vpop.f32.mrb[0].mxu0
        %v3156 = vpop.f32.mrb[0].mxu0
        %v3157 = vadd.f32 %v2981, %v3156
        %v3158 = vpop.f32.mrb[0].mxu0
        %3159 = vmatprep.mubr.bf16.mxu0 0
        %3160 = vmatmul.mubr.bf16.gmra.mrb[0].mxu0 %v2956
        %v3161 = vpop.f32.mrb[0].mxu0
        %v3162 = vadd.f32 %v2981, %v3161
        %v3163 = vpop.f32.mrb[0].mxu0
        %v3164 = vpop.f32.mrb[0].mxu0
        %v3165 = vadd.f32 %v2981, %v3164
        %v3166 = vpop.f32.mrb[0].mxu0
        %3167 = vmatprep.mubr.bf16.mxu0 0
        %3168 = vmatmul.mubr.bf16.gmra.mrb[0].mxu0 %v2957
        %v3169 = vpop.f32.mrb[0].mxu0
        %v3170 = vadd.f32 %v2981, %v3169
        %v3171 = vpop.f32.mrb[0].mxu0
        %v3172 = vpop.f32.mrb[0].mxu0
        %v3173 = vadd.f32 %v2981, %v3172
        %v3174 = vpop.f32.mrb[0].mxu0
        %3175 = vmatprep.mubr.bf16.mxu0 0
        %3176 = vmatmul.mubr.bf16.gmra.mrb[0].mxu0 %v2958
        %v3177 = vpop.f32.mrb[0].mxu0
        %v3178 = vadd.f32 %v2981, %v3177
        %v3179 = vpop.f32.mrb[0].mxu0
        %v3180 = vpop.f32.mrb[0].mxu0
        %v3181 = vadd.f32 %v2981, %v3180
        %v3182 = vpop.f32.mrb[0].mxu0
        %3183 = vmatprep.mubr.bf16.mxu0 0
        %3184 = vmatmul.mubr.bf16.gmra.mrb[0].mxu0 %v2959
        %v3185 = vpop.f32.mrb[0].mxu0
        %v3186 = vadd.f32 %v2981, %v3185
        %v3187 = vpop.f32.mrb[0].mxu0
        %v3188 = vpop.f32.mrb[0].mxu0
        %v3189 = vadd.f32 %v2981, %v3188
        %v3190 = vpop.f32.mrb[0].mxu0
        %3191 = vdwg.mxu0
        %3192 = vmax.xlane.f32.xlu0 %v3066
        %v3193 = vpop.xlane.xlu0 %3192
        %3194 = vmax.xlane.f32.xlu0 %v3069
        %v3195 = vpop.xlane.xlu0 %3194
        %3196 = vmax.xlane.f32.xlu0 %v3074
        %v3197 = vpop.xlane.xlu0 %3196
        %3198 = vmax.xlane.f32.xlu0 %v3077
        %v3199 = vpop.xlane.xlu0 %3198
        %3200 = vmax.xlane.f32.xlu0 %v3082
        %v3201 = vpop.xlane.xlu0 %3200
        %3202 = vmax.xlane.f32.xlu0 %v3085
        %v3203 = vpop.xlane.xlu0 %3202
        %3204 = vmax.xlane.f32.xlu0 %v3090
        %v3205 = vpop.xlane.xlu0 %3204
        %3206 = vmax.xlane.f32.xlu0 %v3093
        %v3207 = vpop.xlane.xlu0 %3206
        %3208 = vmax.xlane.f32.xlu0 %v3098
        %v3209 = vpop.xlane.xlu0 %3208
        %3210 = vmax.xlane.f32.xlu0 %v3101
        %v3211 = vpop.xlane.xlu0 %3210
        %3212 = vmax.xlane.f32.xlu0 %v3106
        %v3213 = vpop.xlane.xlu0 %3212
        %3214 = vmax.xlane.f32.xlu0 %v3109
        %v3215 = vpop.xlane.xlu0 %3214
        %3216 = vmax.xlane.f32.xlu0 %v3114
        %v3217 = vpop.xlane.xlu0 %3216
        %3218 = vmax.xlane.f32.xlu0 %v3117
        %v3219 = vpop.xlane.xlu0 %3218
        %3220 = vmax.xlane.f32.xlu0 %v3122
        %v3221 = vpop.xlane.xlu0 %3220
        %3222 = vmax.xlane.f32.xlu0 %v3125
        %v3223 = vpop.xlane.xlu0 %3222
        %3224 = vmax.xlane.f32.xlu0 %v3130
        %v3225 = vpop.xlane.xlu0 %3224
        %3226 = vmax.xlane.f32.xlu0 %v3133
        %v3227 = vpop.xlane.xlu0 %3226
        %3228 = vmax.xlane.f32.xlu0 %v3138
        %v3229 = vpop.xlane.xlu0 %3228
        %3230 = vmax.xlane.f32.xlu0 %v3141
        %v3231 = vpop.xlane.xlu0 %3230
        %3232 = vmax.xlane.f32.xlu0 %v3146
        %v3233 = vpop.xlane.xlu0 %3232
        %3234 = vmax.xlane.f32.xlu0 %v3149
        %v3235 = vpop.xlane.xlu0 %3234
        %3236 = vmax.xlane.f32.xlu0 %v3154
        %v3237 = vpop.xlane.xlu0 %3236
        %3238 = vmax.xlane.f32.xlu0 %v3157
        %v3239 = vpop.xlane.xlu0 %3238
        %3240 = vmax.xlane.f32.xlu0 %v3162
        %v3241 = vpop.xlane.xlu0 %3240
        %3242 = vmax.xlane.f32.xlu0 %v3165
        %v3243 = vpop.xlane.xlu0 %3242
        %3244 = vmax.xlane.f32.xlu0 %v3170
        %v3245 = vpop.xlane.xlu0 %3244
        %3246 = vmax.xlane.f32.xlu0 %v3173
        %v3247 = vpop.xlane.xlu0 %3246
        %3248 = vmax.xlane.f32.xlu0 %v3178
        %v3249 = vpop.xlane.xlu0 %3248
        %3250 = vmax.xlane.f32.xlu0 %v3181
        %v3251 = vpop.xlane.xlu0 %3250
        %3252 = vmax.xlane.f32.xlu0 %v3186
        %v3253 = vpop.xlane.xlu0 %3252
        %3254 = vmax.xlane.f32.xlu0 %v3189
        %v3255 = vpop.xlane.xlu0 %3254
        %v3256 = vsub.f32 %v3066, %v3193
        %v3257 = vsub.f32 %v3069, %v3195
        %v3258 = vsub.f32 %v3074, %v3197
        %v3259 = vsub.f32 %v3077, %v3199
        %v3260 = vsub.f32 %v3082, %v3201
        %v3261 = vsub.f32 %v3085, %v3203
        %v3262 = vsub.f32 %v3090, %v3205
        %v3263 = vsub.f32 %v3093, %v3207
        %v3264 = vsub.f32 %v3098, %v3209
        %v3265 = vsub.f32 %v3101, %v3211
        %v3266 = vsub.f32 %v3106, %v3213
        %v3267 = vsub.f32 %v3109, %v3215
        %v3268 = vsub.f32 %v3114, %v3217
        %v3269 = vsub.f32 %v3117, %v3219
        %v3270 = vsub.f32 %v3122, %v3221
        %v3271 = vsub.f32 %v3125, %v3223
        %v3272 = vsub.f32 %v3130, %v3225
        %v3273 = vsub.f32 %v3133, %v3227
        %v3274 = vsub.f32 %v3138, %v3229
        %v3275 = vsub.f32 %v3141, %v3231
        %v3276 = vsub.f32 %v3146, %v3233
        %v3277 = vsub.f32 %v3149, %v3235
        %v3278 = vsub.f32 %v3154, %v3237
        %v3279 = vsub.f32 %v3157, %v3239
        %v3280 = vsub.f32 %v3162, %v3241
        %v3281 = vsub.f32 %v3165, %v3243
        %v3282 = vsub.f32 %v3170, %v3245
        %v3283 = vsub.f32 %v3173, %v3247
        %v3284 = vsub.f32 %v3178, %v3249
        %v3285 = vsub.f32 %v3181, %v3251
        %v3286 = vsub.f32 %v3186, %v3253
        %v3287 = vsub.f32 %v3189, %v3255
        %v3288 = vmul.f32 %v3256, 1.442695
        %v3289 = vpow.pop %v3288
        %v3290 = vmul.f32 %v3257, 1.442695
        %v3291 = vpow.pop %v3290
        %v3292 = vmul.f32 %v3258, 1.442695
        %v3293 = vpow.pop %v3292
        %v3294 = vmul.f32 %v3259, 1.442695
        %v3295 = vpow.pop %v3294
        %v3296 = vmul.f32 %v3260, 1.442695
        %v3297 = vpow.pop %v3296
        %v3298 = vmul.f32 %v3261, 1.442695
        %v3299 = vpow.pop %v3298
        %v3300 = vmul.f32 %v3262, 1.442695
        %v3301 = vpow.pop %v3300
        %v3302 = vmul.f32 %v3263, 1.442695
        %v3303 = vpow.pop %v3302
        %v3304 = vmul.f32 %v3264, 1.442695
        %v3305 = vpow.pop %v3304
        %v3306 = vmul.f32 %v3265, 1.442695
        %v3307 = vpow.pop %v3306
        %v3308 = vmul.f32 %v3266, 1.442695
        %v3309 = vpow.pop %v3308
        %v3310 = vmul.f32 %v3267, 1.442695
        %v3311 = vpow.pop %v3310
        %v3312 = vmul.f32 %v3268, 1.442695
        %v3313 = vpow.pop %v3312
        %v3314 = vmul.f32 %v3269, 1.442695
        %v3315 = vpow.pop %v3314
        %v3316 = vmul.f32 %v3270, 1.442695
        %v3317 = vpow.pop %v3316
        %v3318 = vmul.f32 %v3271, 1.442695
        %v3319 = vpow.pop %v3318
        %v3320 = vmul.f32 %v3272, 1.442695
        %v3321 = vpow.pop %v3320
        %v3322 = vmul.f32 %v3273, 1.442695
        %v3323 = vpow.pop %v3322
        %v3324 = vmul.f32 %v3274, 1.442695
        %v3325 = vpow.pop %v3324
        %v3326 = vmul.f32 %v3275, 1.442695
        %v3327 = vpow.pop %v3326
        %v3328 = vmul.f32 %v3276, 1.442695
        %v3329 = vpow.pop %v3328
        %v3330 = vmul.f32 %v3277, 1.442695
        %v3331 = vpow.pop %v3330
        %v3332 = vmul.f32 %v3278, 1.442695
        %v3333 = vpow.pop %v3332
        %v3334 = vmul.f32 %v3279, 1.442695
        %v3335 = vpow.pop %v3334
        %v3336 = vmul.f32 %v3280, 1.442695
        %v3337 = vpow.pop %v3336
        %v3338 = vmul.f32 %v3281, 1.442695
        %v3339 = vpow.pop %v3338
        %v3340 = vmul.f32 %v3282, 1.442695
        %v3341 = vpow.pop %v3340
        %v3342 = vmul.f32 %v3283, 1.442695
        %v3343 = vpow.pop %v3342
        %v3344 = vmul.f32 %v3284, 1.442695
        %v3345 = vpow.pop %v3344
        %v3346 = vmul.f32 %v3285, 1.442695
        %v3347 = vpow.pop %v3346
        %v3348 = vmul.f32 %v3286, 1.442695
        %v3349 = vpow.pop %v3348
        %v3350 = vmul.f32 %v3287, 1.442695
        %v3351 = vpow.pop %v3350
        %3352 = vadd.xlane.f32.xlu0 %v3289
        %v3353 = vpop.xlane.xlu0 %3352
        %3354 = vadd.xlane.f32.xlu0 %v3291
        %v3355 = vpop.xlane.xlu0 %3354
        %3356 = vadd.xlane.f32.xlu0 %v3293
        %v3357 = vpop.xlane.xlu0 %3356
        %3358 = vadd.xlane.f32.xlu0 %v3295
        %v3359 = vpop.xlane.xlu0 %3358
        %3360 = vadd.xlane.f32.xlu0 %v3297
        %v3361 = vpop.xlane.xlu0 %3360
        %3362 = vadd.xlane.f32.xlu0 %v3299
        %v3363 = vpop.xlane.xlu0 %3362
        %3364 = vadd.xlane.f32.xlu0 %v3301
        %v3365 = vpop.xlane.xlu0 %3364
        %3366 = vadd.xlane.f32.xlu0 %v3303
        %v3367 = vpop.xlane.xlu0 %3366
        %3368 = vadd.xlane.f32.xlu0 %v3305
        %v3369 = vpop.xlane.xlu0 %3368
        %3370 = vadd.xlane.f32.xlu0 %v3307
        %v3371 = vpop.xlane.xlu0 %3370
        %3372 = vadd.xlane.f32.xlu0 %v3309
        %v3373 = vpop.xlane.xlu0 %3372
        %3374 = vadd.xlane.f32.xlu0 %v3311
        %v3375 = vpop.xlane.xlu0 %3374
        %3376 = vadd.xlane.f32.xlu0 %v3313
        %v3377 = vpop.xlane.xlu0 %3376
        %3378 = vadd.xlane.f32.xlu0 %v3315
        %v3379 = vpop.xlane.xlu0 %3378
        %3380 = vadd.xlane.f32.xlu0 %v3317
        %v3381 = vpop.xlane.xlu0 %3380
        %3382 = vadd.xlane.f32.xlu0 %v3319
        %v3383 = vpop.xlane.xlu0 %3382
        %3384 = vadd.xlane.f32.xlu0 %v3321
        %v3385 = vpop.xlane.xlu0 %3384
        %3386 = vadd.xlane.f32.xlu0 %v3323
        %v3387 = vpop.xlane.xlu0 %3386
        %3388 = vadd.xlane.f32.xlu0 %v3325
        %v3389 = vpop.xlane.xlu0 %3388
        %3390 = vadd.xlane.f32.xlu0 %v3327
        %v3391 = vpop.xlane.xlu0 %3390
        %3392 = vadd.xlane.f32.xlu0 %v3329
        %v3393 = vpop.xlane.xlu0 %3392
        %3394 = vadd.xlane.f32.xlu0 %v3331
        %v3395 = vpop.xlane.xlu0 %3394
        %3396 = vadd.xlane.f32.xlu0 %v3333
        %v3397 = vpop.xlane.xlu0 %3396
        %3398 = vadd.xlane.f32.xlu0 %v3335
        %v3399 = vpop.xlane.xlu0 %3398
        %3400 = vadd.xlane.f32.xlu0 %v3337
        %v3401 = vpop.xlane.xlu0 %3400
        %3402 = vadd.xlane.f32.xlu0 %v3339
        %v3403 = vpop.xlane.xlu0 %3402
        %3404 = vadd.xlane.f32.xlu0 %v3341
        %v3405 = vpop.xlane.xlu0 %3404
        %3406 = vadd.xlane.f32.xlu0 %v3343
        %v3407 = vpop.xlane.xlu0 %3406
        %3408 = vadd.xlane.f32.xlu0 %v3345
        %v3409 = vpop.xlane.xlu0 %3408
        %3410 = vadd.xlane.f32.xlu0 %v3347
        %v3411 = vpop.xlane.xlu0 %3410
        %3412 = vadd.xlane.f32.xlu0 %v3349
        %v3413 = vpop.xlane.xlu0 %3412
        %3414 = vadd.xlane.f32.xlu0 %v3351
        %v3415 = vpop.xlane.xlu0 %3414
        %v3416 = vlog2.pop %v3353
        %v3417 = vmul.f32 %v3416, 0.6931472
        %v3418 = vlog2.pop %v3355
        %v3419 = vmul.f32 %v3418, 0.6931472
        %v3420 = vlog2.pop %v3357
        %v3421 = vmul.f32 %v3420, 0.6931472
        %v3422 = vlog2.pop %v3359
        %v3423 = vmul.f32 %v3422, 0.6931472
        %v3424 = vlog2.pop %v3361
        %v3425 = vmul.f32 %v3424, 0.6931472
        %v3426 = vlog2.pop %v3363
        %v3427 = vmul.f32 %v3426, 0.6931472
        %v3428 = vlog2.pop %v3365
        %v3429 = vmul.f32 %v3428, 0.6931472
        %v3430 = vlog2.pop %v3367
        %v3431 = vmul.f32 %v3430, 0.6931472
        %v3432 = vlog2.pop %v3369
        %v3433 = vmul.f32 %v3432, 0.6931472
        %v3434 = vlog2.pop %v3371
        %v3435 = vmul.f32 %v3434, 0.6931472
        %v3436 = vlog2.pop %v3373
        %v3437 = vmul.f32 %v3436, 0.6931472
        %v3438 = vlog2.pop %v3375
        %v3439 = vmul.f32 %v3438, 0.6931472
        %v3440 = vlog2.pop %v3377
        %v3441 = vmul.f32 %v3440, 0.6931472
        %v3442 = vlog2.pop %v3379
        %v3443 = vmul.f32 %v3442, 0.6931472
        %v3444 = vlog2.pop %v3381
        %v3445 = vmul.f32 %v3444, 0.6931472
        %v3446 = vlog2.pop %v3383
        %v3447 = vmul.f32 %v3446, 0.6931472
        %v3448 = vlog2.pop %v3385
        %v3449 = vmul.f32 %v3448, 0.6931472
        %v3450 = vlog2.pop %v3387
        %v3451 = vmul.f32 %v3450, 0.6931472
        %v3452 = vlog2.pop %v3389
        %v3453 = vmul.f32 %v3452, 0.6931472
        %v3454 = vlog2.pop %v3391
        %v3455 = vmul.f32 %v3454, 0.6931472
        %v3456 = vlog2.pop %v3393
        %v3457 = vmul.f32 %v3456, 0.6931472
        %v3458 = vlog2.pop %v3395
        %v3459 = vmul.f32 %v3458, 0.6931472
        %v3460 = vlog2.pop %v3397
        %v3461 = vmul.f32 %v3460, 0.6931472
        %v3462 = vlog2.pop %v3399
        %v3463 = vmul.f32 %v3462, 0.6931472
        %v3464 = vlog2.pop %v3401
        %v3465 = vmul.f32 %v3464, 0.6931472
        %v3466 = vlog2.pop %v3403
        %v3467 = vmul.f32 %v3466, 0.6931472
        %v3468 = vlog2.pop %v3405
        %v3469 = vmul.f32 %v3468, 0.6931472
        %v3470 = vlog2.pop %v3407
        %v3471 = vmul.f32 %v3470, 0.6931472
        %v3472 = vlog2.pop %v3409
        %v3473 = vmul.f32 %v3472, 0.6931472
        %v3474 = vlog2.pop %v3411
        %v3475 = vmul.f32 %v3474, 0.6931472
        %v3476 = vlog2.pop %v3413
        %v3477 = vmul.f32 %v3476, 0.6931472
        %v3478 = vlog2.pop %v3415
        %v3479 = vmul.f32 %v3478, 0.6931472
        %v3480 = vsub.f32 %v3256, %v3417
        %v3481 = vsub.f32 %v3257, %v3419
        %v3482 = vsub.f32 %v3258, %v3421
        %v3483 = vsub.f32 %v3259, %v3423
        %v3484 = vsub.f32 %v3260, %v3425
        %v3485 = vsub.f32 %v3261, %v3427
        %v3486 = vsub.f32 %v3262, %v3429
        %v3487 = vsub.f32 %v3263, %v3431
        %v3488 = vsub.f32 %v3264, %v3433
        %v3489 = vsub.f32 %v3265, %v3435
        %v3490 = vsub.f32 %v3266, %v3437
        %v3491 = vsub.f32 %v3267, %v3439
        %v3492 = vsub.f32 %v3268, %v3441
        %v3493 = vsub.f32 %v3269, %v3443
        %v3494 = vsub.f32 %v3270, %v3445
        %v3495 = vsub.f32 %v3271, %v3447
        %v3496 = vsub.f32 %v3272, %v3449
        %v3497 = vsub.f32 %v3273, %v3451
        %v3498 = vsub.f32 %v3274, %v3453
        %v3499 = vsub.f32 %v3275, %v3455
        %v3500 = vsub.f32 %v3276, %v3457
        %v3501 = vsub.f32 %v3277, %v3459
        %v3502 = vsub.f32 %v3278, %v3461
        %v3503 = vsub.f32 %v3279, %v3463
        %v3504 = vsub.f32 %v3280, %v3465
        %v3505 = vsub.f32 %v3281, %v3467
        %v3506 = vsub.f32 %v3282, %v3469
        %v3507 = vsub.f32 %v3283, %v3471
        %v3508 = vsub.f32 %v3284, %v3473
        %v3509 = vsub.f32 %v3285, %v3475
        %v3510 = vsub.f32 %v3286, %v3477
        %v3511 = vsub.f32 %v3287, %v3479
        %v3512 = vpack.c.bf16 %v3481, %v3480
        %v3513 = vpack.c.bf16 %v3483, %v3482
        %v3514 = vpack.c.bf16 %v3485, %v3484
        %v3515 = vpack.c.bf16 %v3487, %v3486
        %v3516 = vpack.c.bf16 %v3489, %v3488
        %v3517 = vpack.c.bf16 %v3491, %v3490
        %v3518 = vpack.c.bf16 %v3493, %v3492
        %v3519 = vpack.c.bf16 %v3495, %v3494
        %v3520 = vpack.c.bf16 %v3497, %v3496
        %v3521 = vpack.c.bf16 %v3499, %v3498
        %v3522 = vpack.c.bf16 %v3501, %v3500
        %v3523 = vpack.c.bf16 %v3503, %v3502
        %v3524 = vpack.c.bf16 %v3505, %v3504
        %v3525 = vpack.c.bf16 %v3507, %v3506
        %v3526 = vpack.c.bf16 %v3509, %v3508
        %v3527 = vpack.c.bf16 %v3511, %v3510
        %v3544 = vunpack.c.l.b16 %v3512
        %v3545 = vunpack.c.h.b16 %v3512
        %v3546 = vunpack.c.l.b16 %v3513
        %v3547 = vunpack.c.h.b16 %v3513
        %v3548 = vunpack.c.l.b16 %v3514
        %v3549 = vunpack.c.h.b16 %v3514
        %v3550 = vunpack.c.l.b16 %v3515
        %v3551 = vunpack.c.h.b16 %v3515
        %v3552 = vunpack.c.l.b16 %v3516
        %v3553 = vunpack.c.h.b16 %v3516
        %v3554 = vunpack.c.l.b16 %v3517
        %v3555 = vunpack.c.h.b16 %v3517
        %v3556 = vunpack.c.l.b16 %v3518
        %v3557 = vunpack.c.h.b16 %v3518
        %v3558 = vunpack.c.l.b16 %v3519
        %v3559 = vunpack.c.h.b16 %v3519
        %v3560 = vunpack.c.l.b16 %v3520
        %v3561 = vunpack.c.h.b16 %v3520
        %v3562 = vunpack.c.l.b16 %v3521
        %v3563 = vunpack.c.h.b16 %v3521
        %v3564 = vunpack.c.l.b16 %v3522
        %v3565 = vunpack.c.h.b16 %v3522
        %v3566 = vunpack.c.l.b16 %v3523
        %v3567 = vunpack.c.h.b16 %v3523
        %v3568 = vunpack.c.l.b16 %v3524
        %v3569 = vunpack.c.h.b16 %v3524
        %v3570 = vunpack.c.l.b16 %v3525
        %v3571 = vunpack.c.h.b16 %v3525
        %v3572 = vunpack.c.l.b16 %v3526
        %v3573 = vunpack.c.h.b16 %v3526
        %v3574 = vunpack.c.l.b16 %v3527
        %v3575 = vunpack.c.h.b16 %v3527
        %v3576 = vpack.c.b16 %v3544, %v3544
        %v3577 = vpack.c.b16 %v3545, %v3545
        %v3578 = vpack.c.b16 %v3546, %v3546
        %v3579 = vpack.c.b16 %v3547, %v3547
        %v3580 = vpack.c.b16 %v3548, %v3548
        %v3581 = vpack.c.b16 %v3549, %v3549
        %v3582 = vpack.c.b16 %v3550, %v3550
        %v3583 = vpack.c.b16 %v3551, %v3551
        %v3584 = vpack.c.b16 %v3552, %v3552
        %v3585 = vpack.c.b16 %v3553, %v3553
        %v3586 = vpack.c.b16 %v3554, %v3554
        %v3587 = vpack.c.b16 %v3555, %v3555
        %v3588 = vpack.c.b16 %v3556, %v3556
        %v3589 = vpack.c.b16 %v3557, %v3557
        %v3590 = vpack.c.b16 %v3558, %v3558
        %v3591 = vpack.c.b16 %v3559, %v3559
        %v3592 = vpack.c.b16 %v3560, %v3560
        %v3593 = vpack.c.b16 %v3561, %v3561
        %v3594 = vpack.c.b16 %v3562, %v3562
        %v3595 = vpack.c.b16 %v3563, %v3563
        %v3596 = vpack.c.b16 %v3564, %v3564
        %v3597 = vpack.c.b16 %v3565, %v3565
        %v3598 = vpack.c.b16 %v3566, %v3566
        %v3599 = vpack.c.b16 %v3567, %v3567
        %v3600 = vpack.c.b16 %v3568, %v3568
        %v3601 = vpack.c.b16 %v3569, %v3569
        %v3602 = vpack.c.b16 %v3570, %v3570
        %v3603 = vpack.c.b16 %v3571, %v3571
        %v3604 = vpack.c.b16 %v3572, %v3572
        %v3605 = vpack.c.b16 %v3573, %v3573
        %v3606 = vpack.c.b16 %v3574, %v3574
        %v3607 = vpack.c.b16 %v3575, %v3575
        %3640 = vst [vmem:[%s909] sm:$0xf] %v3576
        %3641 = vst [vmem:[%s909 + $0x4] sm:$0xf] %v3577
        %3642 = vst [vmem:[%s909 + $0x8] sm:$0xf] %v3578
        %3643 = vst [vmem:[%s909 + $0xc] sm:$0xf] %v3579
        %3644 = vst [vmem:[%s909 + $0x10] sm:$0xf] %v3580
        %3645 = vst [vmem:[%s909 + $0x14] sm:$0xf] %v3581
        %3646 = vst [vmem:[%s909 + $0x18] sm:$0xf] %v3582
        %3647 = vst [vmem:[%s909 + $0x1c] sm:$0xf] %v3583
        %3648 = vst [vmem:[%s909 + $0x20] sm:$0xf] %v3584
        %3649 = vst [vmem:[%s909 + $0x24] sm:$0xf] %v3585
        %3650 = vst [vmem:[%s909 + $0x28] sm:$0xf] %v3586
        %3651 = vst [vmem:[%s909 + $0x2c] sm:$0xf] %v3587
        %3652 = vst [vmem:[%s909 + $0x30] sm:$0xf] %v3588
        %3653 = vst [vmem:[%s909 + $0x34] sm:$0xf] %v3589
        %3654 = vst [vmem:[%s909 + $0x38] sm:$0xf] %v3590
        %3655 = vst [vmem:[%s909 + $0x3c] sm:$0xf] %v3591
        %3656 = vst [vmem:[%s909 + $0x40] sm:$0xf] %v3592
        %3657 = vst [vmem:[%s909 + $0x44] sm:$0xf] %v3593
        %3658 = vst [vmem:[%s909 + $0x48] sm:$0xf] %v3594
        %3659 = vst [vmem:[%s909 + $0x4c] sm:$0xf] %v3595
        %3660 = vst [vmem:[%s909 + $0x50] sm:$0xf] %v3596
        %3661 = vst [vmem:[%s909 + $0x54] sm:$0xf] %v3597
        %3662 = vst [vmem:[%s909 + $0x58] sm:$0xf] %v3598
        %3663 = vst [vmem:[%s909 + $0x5c] sm:$0xf] %v3599
        %3664 = vst [vmem:[%s909 + $0x60] sm:$0xf] %v3600
        %3665 = vst [vmem:[%s909 + $0x64] sm:$0xf] %v3601
        %3666 = vst [vmem:[%s909 + $0x68] sm:$0xf] %v3602
        %3667 = vst [vmem:[%s909 + $0x6c] sm:$0xf] %v3603
        %3668 = vst [vmem:[%s909 + $0x70] sm:$0xf] %v3604
        %3669 = vst [vmem:[%s909 + $0x74] sm:$0xf] %v3605
        %3670 = vst [vmem:[%s909 + $0x78] sm:$0xf] %v3606
        %3671 = vst [vmem:[%s909 + $0x7c] sm:$0xf] %v3607
        %v3672 = vlaneseq
        %v3673 = vand.u32 %v3672, 127
        %v3674 = vld [vmem:[%s929] sm:$0xff]
        %v3675 = vld [vmem:[%s929 + $0x8] sm:$0xff]
        %v3676 = vld [vmem:[%s929 + $0x10] sm:$0xff]
        %v3677 = vld [vmem:[%s929 + $0x18] sm:$0xff]
        %v3678 = vld [vmem:[%s929 + $0x20] sm:$0xff]
        %v3679 = vld [vmem:[%s929 + $0x28] sm:$0xff]
        %v3680 = vld [vmem:[%s929 + $0x30] sm:$0xff]
        %v3681 = vld [vmem:[%s929 + $0x38] sm:$0xff]
        %v3682 = vld [vmem:[%s929 + $0x40] sm:$0xff]
        %v3683 = vld [vmem:[%s929 + $0x48] sm:$0xff]
        %v3684 = vld [vmem:[%s929 + $0x50] sm:$0xff]
        %v3685 = vld [vmem:[%s929 + $0x58] sm:$0xff]
        %v3686 = vld [vmem:[%s929 + $0x60] sm:$0xff]
        %v3687 = vld [vmem:[%s929 + $0x68] sm:$0xff]
        %v3688 = vld [vmem:[%s929 + $0x70] sm:$0xff]
        %v3689 = vld [vmem:[%s929 + $0x78] sm:$0xff]
        %v3690 = vld [vmem:[%s929 + $0x80] sm:$0xff]
        %v3691 = vld [vmem:[%s929 + $0x88] sm:$0xff]
        %v3692 = vld [vmem:[%s929 + $0x90] sm:$0xff]
        %v3693 = vld [vmem:[%s929 + $0x98] sm:$0xff]
        %v3694 = vld [vmem:[%s929 + $0xa0] sm:$0xff]
        %v3695 = vld [vmem:[%s929 + $0xa8] sm:$0xff]
        %v3696 = vld [vmem:[%s929 + $0xb0] sm:$0xff]
        %v3697 = vld [vmem:[%s929 + $0xb8] sm:$0xff]
        %v3698 = vld [vmem:[%s929 + $0xc0] sm:$0xff]
        %v3699 = vld [vmem:[%s929 + $0xc8] sm:$0xff]
        %v3700 = vld [vmem:[%s929 + $0xd0] sm:$0xff]
        %v3701 = vld [vmem:[%s929 + $0xd8] sm:$0xff]
        %v3702 = vld [vmem:[%s929 + $0xe0] sm:$0xff]
        %v3703 = vld [vmem:[%s929 + $0xe8] sm:$0xff]
        %v3704 = vld [vmem:[%s929 + $0xf0] sm:$0xff]
        %v3705 = vld [vmem:[%s929 + $0xf8] sm:$0xff]
        %v3706 = vld [vmem:[%s939] sm:$0xff]
        %v3707 = vld [vmem:[%s939 + $0x8] sm:$0xff]
        %v3708 = vld [vmem:[%s939 + $0x10] sm:$0xff]
        %v3709 = vld [vmem:[%s939 + $0x18] sm:$0xff]
        %v3710 = vld [vmem:[%s939 + $0x20] sm:$0xff]
        %v3711 = vld [vmem:[%s939 + $0x28] sm:$0xff]
        %v3712 = vld [vmem:[%s939 + $0x30] sm:$0xff]
        %v3713 = vld [vmem:[%s939 + $0x38] sm:$0xff]
        %v3714 = vld [vmem:[%s939 + $0x40] sm:$0xff]
        %v3715 = vld [vmem:[%s939 + $0x48] sm:$0xff]
        %v3716 = vld [vmem:[%s939 + $0x50] sm:$0xff]
        %v3717 = vld [vmem:[%s939 + $0x58] sm:$0xff]
        %v3718 = vld [vmem:[%s939 + $0x60] sm:$0xff]
        %v3719 = vld [vmem:[%s939 + $0x68] sm:$0xff]
        %v3720 = vld [vmem:[%s939 + $0x70] sm:$0xff]
        %v3721 = vld [vmem:[%s939 + $0x78] sm:$0xff]
        %v3722 = vld [vmem:[%s939 + $0x80] sm:$0xff]
        %v3723 = vld [vmem:[%s939 + $0x88] sm:$0xff]
        %v3724 = vld [vmem:[%s939 + $0x90] sm:$0xff]
        %v3725 = vld [vmem:[%s939 + $0x98] sm:$0xff]
        %v3726 = vld [vmem:[%s939 + $0xa0] sm:$0xff]
        %v3727 = vld [vmem:[%s939 + $0xa8] sm:$0xff]
        %v3728 = vld [vmem:[%s939 + $0xb0] sm:$0xff]
        %v3729 = vld [vmem:[%s939 + $0xb8] sm:$0xff]
        %v3730 = vld [vmem:[%s939 + $0xc0] sm:$0xff]
        %v3731 = vld [vmem:[%s939 + $0xc8] sm:$0xff]
        %v3732 = vld [vmem:[%s939 + $0xd0] sm:$0xff]
        %v3733 = vld [vmem:[%s939 + $0xd8] sm:$0xff]
        %v3734 = vld [vmem:[%s939 + $0xe0] sm:$0xff]
        %v3735 = vld [vmem:[%s939 + $0xe8] sm:$0xff]
        %v3736 = vld [vmem:[%s939 + $0xf0] sm:$0xff]
        %v3737 = vld [vmem:[%s939 + $0xf8] sm:$0xff]
        %vm3738 = vcmp.gt.f32.partialorder %v3706, 0.0
        %vm3739 = vcmp.gt.f32.partialorder %v3707, 0.0
        %vm3740 = vcmp.gt.f32.partialorder %v3708, 0.0
        %vm3741 = vcmp.gt.f32.partialorder %v3709, 0.0
        %vm3742 = vcmp.gt.f32.partialorder %v3710, 0.0
        %vm3743 = vcmp.gt.f32.partialorder %v3711, 0.0
        %vm3744 = vcmp.gt.f32.partialorder %v3712, 0.0
        %vm3745 = vcmp.gt.f32.partialorder %v3713, 0.0
        %vm3746 = vcmp.gt.f32.partialorder %v3714, 0.0
        %vm3747 = vcmp.gt.f32.partialorder %v3715, 0.0
        %vm3748 = vcmp.gt.f32.partialorder %v3716, 0.0
        %vm3749 = vcmp.gt.f32.partialorder %v3717, 0.0
        %vm3750 = vcmp.gt.f32.partialorder %v3718, 0.0
        %vm3751 = vcmp.gt.f32.partialorder %v3719, 0.0
        %vm3752 = vcmp.gt.f32.partialorder %v3720, 0.0
        %vm3753 = vcmp.gt.f32.partialorder %v3721, 0.0
        %vm3754 = vcmp.gt.f32.partialorder %v3722, 0.0
        %vm3755 = vcmp.gt.f32.partialorder %v3723, 0.0
        %vm3756 = vcmp.gt.f32.partialorder %v3724, 0.0
        %vm3757 = vcmp.gt.f32.partialorder %v3725, 0.0
        %vm3758 = vcmp.gt.f32.partialorder %v3726, 0.0
        %vm3759 = vcmp.gt.f32.partialorder %v3727, 0.0
        %vm3760 = vcmp.gt.f32.partialorder %v3728, 0.0
        %vm3761 = vcmp.gt.f32.partialorder %v3729, 0.0
        %vm3762 = vcmp.gt.f32.partialorder %v3730, 0.0
        %vm3763 = vcmp.gt.f32.partialorder %v3731, 0.0
        %vm3764 = vcmp.gt.f32.partialorder %v3732, 0.0
        %vm3765 = vcmp.gt.f32.partialorder %v3733, 0.0
        %vm3766 = vcmp.gt.f32.partialorder %v3734, 0.0
        %vm3767 = vcmp.gt.f32.partialorder %v3735, 0.0
        %vm3768 = vcmp.gt.f32.partialorder %v3736, 0.0
        %vm3769 = vcmp.gt.f32.partialorder %v3737, 0.0
        %3770 = vset.pattern.permute.xlu0 0
        %3771 = vperm.xlu0 %3770, %v3674
        %v3772 = vpop.permute.xlu0 %3771
        %3773 = vset.pattern.permute.xlu0 0
        %3774 = vperm.xlu0 %3773, %v3675
        %v3775 = vpop.permute.xlu0 %3774
        %3776 = vset.pattern.permute.xlu0 0
        %3777 = vperm.xlu0 %3776, %v3676
        %v3778 = vpop.permute.xlu0 %3777
        %3779 = vset.pattern.permute.xlu0 0
        %3780 = vperm.xlu0 %3779, %v3677
        %v3781 = vpop.permute.xlu0 %3780
        %3782 = vset.pattern.permute.xlu0 0
        %3783 = vperm.xlu0 %3782, %v3678
        %v3784 = vpop.permute.xlu0 %3783
        %3785 = vset.pattern.permute.xlu0 0
        %3786 = vperm.xlu0 %3785, %v3679
        %v3787 = vpop.permute.xlu0 %3786
        %3788 = vset.pattern.permute.xlu0 0
        %3789 = vperm.xlu0 %3788, %v3680
        %v3790 = vpop.permute.xlu0 %3789
        %3791 = vset.pattern.permute.xlu0 0
        %3792 = vperm.xlu0 %3791, %v3681
        %v3793 = vpop.permute.xlu0 %3792
        %3794 = vset.pattern.permute.xlu0 0
        %3795 = vperm.xlu0 %3794, %v3682
        %v3796 = vpop.permute.xlu0 %3795
        %3797 = vset.pattern.permute.xlu0 0
        %3798 = vperm.xlu0 %3797, %v3683
        %v3799 = vpop.permute.xlu0 %3798
        %3800 = vset.pattern.permute.xlu0 0
        %3801 = vperm.xlu0 %3800, %v3684
        %v3802 = vpop.permute.xlu0 %3801
        %3803 = vset.pattern.permute.xlu0 0
        %3804 = vperm.xlu0 %3803, %v3685
        %v3805 = vpop.permute.xlu0 %3804
        %3806 = vset.pattern.permute.xlu0 0
        %3807 = vperm.xlu0 %3806, %v3686
        %v3808 = vpop.permute.xlu0 %3807
        %3809 = vset.pattern.permute.xlu0 0
        %3810 = vperm.xlu0 %3809, %v3687
        %v3811 = vpop.permute.xlu0 %3810
        %3812 = vset.pattern.permute.xlu0 0
        %3813 = vperm.xlu0 %3812, %v3688
        %v3814 = vpop.permute.xlu0 %3813
        %3815 = vset.pattern.permute.xlu0 0
        %3816 = vperm.xlu0 %3815, %v3689
        %v3817 = vpop.permute.xlu0 %3816
        %3818 = vset.pattern.permute.xlu0 0
        %3819 = vperm.xlu0 %3818, %v3690
        %v3820 = vpop.permute.xlu0 %3819
        %3821 = vset.pattern.permute.xlu0 0
        %3822 = vperm.xlu0 %3821, %v3691
        %v3823 = vpop.permute.xlu0 %3822
        %3824 = vset.pattern.permute.xlu0 0
        %3825 = vperm.xlu0 %3824, %v3692
        %v3826 = vpop.permute.xlu0 %3825
        %3827 = vset.pattern.permute.xlu0 0
        %3828 = vperm.xlu0 %3827, %v3693
        %v3829 = vpop.permute.xlu0 %3828
        %3830 = vset.pattern.permute.xlu0 0
        %3831 = vperm.xlu0 %3830, %v3694
        %v3832 = vpop.permute.xlu0 %3831
        %3833 = vset.pattern.permute.xlu0 0
        %3834 = vperm.xlu0 %3833, %v3695
        %v3835 = vpop.permute.xlu0 %3834
        %3836 = vset.pattern.permute.xlu0 0
        %3837 = vperm.xlu0 %3836, %v3696
        %v3838 = vpop.permute.xlu0 %3837
        %3839 = vset.pattern.permute.xlu0 0
        %3840 = vperm.xlu0 %3839, %v3697
        %v3841 = vpop.permute.xlu0 %3840
        %3842 = vset.pattern.permute.xlu0 0
        %3843 = vperm.xlu0 %3842, %v3698
        %v3844 = vpop.permute.xlu0 %3843
        %3845 = vset.pattern.permute.xlu0 0
        %3846 = vperm.xlu0 %3845, %v3699
        %v3847 = vpop.permute.xlu0 %3846
        %3848 = vset.pattern.permute.xlu0 0
        %3849 = vperm.xlu0 %3848, %v3700
        %v3850 = vpop.permute.xlu0 %3849
        %3851 = vset.pattern.permute.xlu0 0
        %3852 = vperm.xlu0 %3851, %v3701
        %v3853 = vpop.permute.xlu0 %3852
        %3854 = vset.pattern.permute.xlu0 0
        %3855 = vperm.xlu0 %3854, %v3702
        %v3856 = vpop.permute.xlu0 %3855
        %3857 = vset.pattern.permute.xlu0 0
        %3858 = vperm.xlu0 %3857, %v3703
        %v3859 = vpop.permute.xlu0 %3858
        %3860 = vset.pattern.permute.xlu0 0
        %3861 = vperm.xlu0 %3860, %v3704
        %v3862 = vpop.permute.xlu0 %3861
        %3863 = vset.pattern.permute.xlu0 0
        %3864 = vperm.xlu0 %3863, %v3705
        %v3865 = vpop.permute.xlu0 %3864
        %vm3866 = vcmp.eq.s32.totalorder %v3673, %v3772
        %vm3867 = vcmp.eq.s32.totalorder %v3673, %v3775
        %vm3868 = vcmp.eq.s32.totalorder %v3673, %v3778
        %vm3869 = vcmp.eq.s32.totalorder %v3673, %v3781
        %vm3870 = vcmp.eq.s32.totalorder %v3673, %v3784
        %vm3871 = vcmp.eq.s32.totalorder %v3673, %v3787
        %vm3872 = vcmp.eq.s32.totalorder %v3673, %v3790
        %vm3873 = vcmp.eq.s32.totalorder %v3673, %v3793
        %vm3874 = vcmp.eq.s32.totalorder %v3673, %v3796
        %vm3875 = vcmp.eq.s32.totalorder %v3673, %v3799
        %vm3876 = vcmp.eq.s32.totalorder %v3673, %v3802
        %vm3877 = vcmp.eq.s32.totalorder %v3673, %v3805
        %vm3878 = vcmp.eq.s32.totalorder %v3673, %v3808
        %vm3879 = vcmp.eq.s32.totalorder %v3673, %v3811
        %vm3880 = vcmp.eq.s32.totalorder %v3673, %v3814
        %vm3881 = vcmp.eq.s32.totalorder %v3673, %v3817
        %vm3882 = vcmp.eq.s32.totalorder %v3673, %v3820
        %vm3883 = vcmp.eq.s32.totalorder %v3673, %v3823
        %vm3884 = vcmp.eq.s32.totalorder %v3673, %v3826
        %vm3885 = vcmp.eq.s32.totalorder %v3673, %v3829
        %vm3886 = vcmp.eq.s32.totalorder %v3673, %v3832
        %vm3887 = vcmp.eq.s32.totalorder %v3673, %v3835
        %vm3888 = vcmp.eq.s32.totalorder %v3673, %v3838
        %vm3889 = vcmp.eq.s32.totalorder %v3673, %v3841
        %vm3890 = vcmp.eq.s32.totalorder %v3673, %v3844
        %vm3891 = vcmp.eq.s32.totalorder %v3673, %v3847
        %vm3892 = vcmp.eq.s32.totalorder %v3673, %v3850
        %vm3893 = vcmp.eq.s32.totalorder %v3673, %v3853
        %vm3894 = vcmp.eq.s32.totalorder %v3673, %v3856
        %vm3895 = vcmp.eq.s32.totalorder %v3673, %v3859
        %vm3896 = vcmp.eq.s32.totalorder %v3673, %v3862
        %vm3897 = vcmp.eq.s32.totalorder %v3673, %v3865
        %v3898 = vsel %vm3866, 1, 0
        %v3899 = vsel %vm3867, 1, 0
        %v3900 = vsel %vm3868, 1, 0
        %v3901 = vsel %vm3869, 1, 0
        %v3902 = vsel %vm3870, 1, 0
        %v3903 = vsel %vm3871, 1, 0
        %v3904 = vsel %vm3872, 1, 0
        %v3905 = vsel %vm3873, 1, 0
        %v3906 = vsel %vm3874, 1, 0
        %v3907 = vsel %vm3875, 1, 0
        %v3908 = vsel %vm3876, 1, 0
        %v3909 = vsel %vm3877, 1, 0
        %v3910 = vsel %vm3878, 1, 0
        %v3911 = vsel %vm3879, 1, 0
        %v3912 = vsel %vm3880, 1, 0
        %v3913 = vsel %vm3881, 1, 0
        %v3914 = vsel %vm3882, 1, 0
        %v3915 = vsel %vm3883, 1, 0
        %v3916 = vsel %vm3884, 1, 0
        %v3917 = vsel %vm3885, 1, 0
        %v3918 = vsel %vm3886, 1, 0
        %v3919 = vsel %vm3887, 1, 0
        %v3920 = vsel %vm3888, 1, 0
        %v3921 = vsel %vm3889, 1, 0
        %v3922 = vsel %vm3890, 1, 0
        %v3923 = vsel %vm3891, 1, 0
        %v3924 = vsel %vm3892, 1, 0
        %v3925 = vsel %vm3893, 1, 0
        %v3926 = vsel %vm3894, 1, 0
        %v3927 = vsel %vm3895, 1, 0
        %v3928 = vsel %vm3896, 1, 0
        %v3929 = vsel %vm3897, 1, 0
        %v3930 = vcvt.s32.f32 %v3898
        %v3931 = vcvt.s32.f32 %v3899
        %v3932 = vcvt.s32.f32 %v3900
        %v3933 = vcvt.s32.f32 %v3901
        %v3934 = vcvt.s32.f32 %v3902
        %v3935 = vcvt.s32.f32 %v3903
        %v3936 = vcvt.s32.f32 %v3904
        %v3937 = vcvt.s32.f32 %v3905
        %v3938 = vcvt.s32.f32 %v3906
        %v3939 = vcvt.s32.f32 %v3907
        %v3940 = vcvt.s32.f32 %v3908
        %v3941 = vcvt.s32.f32 %v3909
        %v3942 = vcvt.s32.f32 %v3910
        %v3943 = vcvt.s32.f32 %v3911
        %v3944 = vcvt.s32.f32 %v3912
        %v3945 = vcvt.s32.f32 %v3913
        %v3946 = vcvt.s32.f32 %v3914
        %v3947 = vcvt.s32.f32 %v3915
        %v3948 = vcvt.s32.f32 %v3916
        %v3949 = vcvt.s32.f32 %v3917
        %v3950 = vcvt.s32.f32 %v3918
        %v3951 = vcvt.s32.f32 %v3919
        %v3952 = vcvt.s32.f32 %v3920
        %v3953 = vcvt.s32.f32 %v3921
        %v3954 = vcvt.s32.f32 %v3922
        %v3955 = vcvt.s32.f32 %v3923
        %v3956 = vcvt.s32.f32 %v3924
        %v3957 = vcvt.s32.f32 %v3925
        %v3958 = vcvt.s32.f32 %v3926
        %v3959 = vcvt.s32.f32 %v3927
        %v3960 = vcvt.s32.f32 %v3928
        %v3961 = vcvt.s32.f32 %v3929
        %v3962 = vmul.f32 %v3480, %v3930
        %v3963 = vmul.f32 %v3481, %v3931
        %v3964 = vmul.f32 %v3482, %v3932
        %v3965 = vmul.f32 %v3483, %v3933
        %v3966 = vmul.f32 %v3484, %v3934
        %v3967 = vmul.f32 %v3485, %v3935
        %v3968 = vmul.f32 %v3486, %v3936
        %v3969 = vmul.f32 %v3487, %v3937
        %v3970 = vmul.f32 %v3488, %v3938
        %v3971 = vmul.f32 %v3489, %v3939
        %v3972 = vmul.f32 %v3490, %v3940
        %v3973 = vmul.f32 %v3491, %v3941
        %v3974 = vmul.f32 %v3492, %v3942
        %v3975 = vmul.f32 %v3493, %v3943
        %v3976 = vmul.f32 %v3494, %v3944
        %v3977 = vmul.f32 %v3495, %v3945
        %v3978 = vmul.f32 %v3496, %v3946
        %v3979 = vmul.f32 %v3497, %v3947
        %v3980 = vmul.f32 %v3498, %v3948
        %v3981 = vmul.f32 %v3499, %v3949
        %v3982 = vmul.f32 %v3500, %v3950
        %v3983 = vmul.f32 %v3501, %v3951
        %v3984 = vmul.f32 %v3502, %v3952
        %v3985 = vmul.f32 %v3503, %v3953
        %v3986 = vmul.f32 %v3504, %v3954
        %v3987 = vmul.f32 %v3505, %v3955
        %v3988 = vmul.f32 %v3506, %v3956
        %v3989 = vmul.f32 %v3507, %v3957
        %v3990 = vmul.f32 %v3508, %v3958
        %v3991 = vmul.f32 %v3509, %v3959
        %v3992 = vmul.f32 %v3510, %v3960
        %v3993 = vmul.f32 %v3511, %v3961
        %3994 = vadd.xlane.f32.xlu0 %v3962
        %v3995 = vpop.xlane.xlu0 %3994
        %3996 = vadd.xlane.f32.xlu0 %v3963
        %v3997 = vpop.xlane.xlu0 %3996
        %3998 = vadd.xlane.f32.xlu0 %v3964
        %v3999 = vpop.xlane.xlu0 %3998
        %4000 = vadd.xlane.f32.xlu0 %v3965
        %v4001 = vpop.xlane.xlu0 %4000
        %4002 = vadd.xlane.f32.xlu0 %v3966
        %v4003 = vpop.xlane.xlu0 %4002
        %4004 = vadd.xlane.f32.xlu0 %v3967
        %v4005 = vpop.xlane.xlu0 %4004
        %4006 = vadd.xlane.f32.xlu0 %v3968
        %v4007 = vpop.xlane.xlu0 %4006
        %4008 = vadd.xlane.f32.xlu0 %v3969
        %v4009 = vpop.xlane.xlu0 %4008
        %4010 = vadd.xlane.f32.xlu0 %v3970
        %v4011 = vpop.xlane.xlu0 %4010
        %4012 = vadd.xlane.f32.xlu0 %v3971
        %v4013 = vpop.xlane.xlu0 %4012
        %4014 = vadd.xlane.f32.xlu0 %v3972
        %v4015 = vpop.xlane.xlu0 %4014
        %4016 = vadd.xlane.f32.xlu0 %v3973
        %v4017 = vpop.xlane.xlu0 %4016
        %4018 = vadd.xlane.f32.xlu0 %v3974
        %v4019 = vpop.xlane.xlu0 %4018
        %4020 = vadd.xlane.f32.xlu0 %v3975
        %v4021 = vpop.xlane.xlu0 %4020
        %4022 = vadd.xlane.f32.xlu0 %v3976
        %v4023 = vpop.xlane.xlu0 %4022
        %4024 = vadd.xlane.f32.xlu0 %v3977
        %v4025 = vpop.xlane.xlu0 %4024
        %4026 = vadd.xlane.f32.xlu0 %v3978
        %v4027 = vpop.xlane.xlu0 %4026
        %4028 = vadd.xlane.f32.xlu0 %v3979
        %v4029 = vpop.xlane.xlu0 %4028
        %4030 = vadd.xlane.f32.xlu0 %v3980
        %v4031 = vpop.xlane.xlu0 %4030
        %4032 = vadd.xlane.f32.xlu0 %v3981
        %v4033 = vpop.xlane.xlu0 %4032
        %4034 = vadd.xlane.f32.xlu0 %v3982
        %v4035 = vpop.xlane.xlu0 %4034
        %4036 = vadd.xlane.f32.xlu0 %v3983
        %v4037 = vpop.xlane.xlu0 %4036
        %4038 = vadd.xlane.f32.xlu0 %v3984
        %v4039 = vpop.xlane.xlu0 %4038
        %4040 = vadd.xlane.f32.xlu0 %v3985
        %v4041 = vpop.xlane.xlu0 %4040
        %4042 = vadd.xlane.f32.xlu0 %v3986
        %v4043 = vpop.xlane.xlu0 %4042
        %4044 = vadd.xlane.f32.xlu0 %v3987
        %v4045 = vpop.xlane.xlu0 %4044
        %4046 = vadd.xlane.f32.xlu0 %v3988
        %v4047 = vpop.xlane.xlu0 %4046
        %4048 = vadd.xlane.f32.xlu0 %v3989
        %v4049 = vpop.xlane.xlu0 %4048
        %4050 = vadd.xlane.f32.xlu0 %v3990
        %v4051 = vpop.xlane.xlu0 %4050
        %4052 = vadd.xlane.f32.xlu0 %v3991
        %v4053 = vpop.xlane.xlu0 %4052
        %4054 = vadd.xlane.f32.xlu0 %v3992
        %v4055 = vpop.xlane.xlu0 %4054
        %4056 = vadd.xlane.f32.xlu0 %v3993
        %v4057 = vpop.xlane.xlu0 %4056
        %4058 = vmax.xlane.f32.xlu0 %v3480
        %v4059 = vpop.xlane.xlu0 %4058
        %4060 = vmax.xlane.f32.xlu0 %v3481
        %v4061 = vpop.xlane.xlu0 %4060
        %4062 = vmax.xlane.f32.xlu0 %v3482
        %v4063 = vpop.xlane.xlu0 %4062
        %4064 = vmax.xlane.f32.xlu0 %v3483
        %v4065 = vpop.xlane.xlu0 %4064
        %4066 = vmax.xlane.f32.xlu0 %v3484
        %v4067 = vpop.xlane.xlu0 %4066
        %4068 = vmax.xlane.f32.xlu0 %v3485
        %v4069 = vpop.xlane.xlu0 %4068
        %4070 = vmax.xlane.f32.xlu0 %v3486
        %v4071 = vpop.xlane.xlu0 %4070
        %4072 = vmax.xlane.f32.xlu0 %v3487
        %v4073 = vpop.xlane.xlu0 %4072
        %4074 = vmax.xlane.f32.xlu0 %v3488
        %v4075 = vpop.xlane.xlu0 %4074
        %4076 = vmax.xlane.f32.xlu0 %v3489
        %v4077 = vpop.xlane.xlu0 %4076
        %4078 = vmax.xlane.f32.xlu0 %v3490
        %v4079 = vpop.xlane.xlu0 %4078
        %4080 = vmax.xlane.f32.xlu0 %v3491
        %v4081 = vpop.xlane.xlu0 %4080
        %4082 = vmax.xlane.f32.xlu0 %v3492
        %v4083 = vpop.xlane.xlu0 %4082
        %4084 = vmax.xlane.f32.xlu0 %v3493
        %v4085 = vpop.xlane.xlu0 %4084
        %4086 = vmax.xlane.f32.xlu0 %v3494
        %v4087 = vpop.xlane.xlu0 %4086
        %4088 = vmax.xlane.f32.xlu0 %v3495
        %v4089 = vpop.xlane.xlu0 %4088
        %4090 = vmax.xlane.f32.xlu0 %v3496
        %v4091 = vpop.xlane.xlu0 %4090
        %4092 = vmax.xlane.f32.xlu0 %v3497
        %v4093 = vpop.xlane.xlu0 %4092
        %4094 = vmax.xlane.f32.xlu0 %v3498
        %v4095 = vpop.xlane.xlu0 %4094
        %4096 = vmax.xlane.f32.xlu0 %v3499
        %v4097 = vpop.xlane.xlu0 %4096
        %4098 = vmax.xlane.f32.xlu0 %v3500
        %v4099 = vpop.xlane.xlu0 %4098
        %4100 = vmax.xlane.f32.xlu0 %v3501
        %v4101 = vpop.xlane.xlu0 %4100
        %4102 = vmax.xlane.f32.xlu0 %v3502
        %v4103 = vpop.xlane.xlu0 %4102
        %4104 = vmax.xlane.f32.xlu0 %v3503
        %v4105 = vpop.xlane.xlu0 %4104
        %4106 = vmax.xlane.f32.xlu0 %v3504
        %v4107 = vpop.xlane.xlu0 %4106
        %4108 = vmax.xlane.f32.xlu0 %v3505
        %v4109 = vpop.xlane.xlu0 %4108
        %4110 = vmax.xlane.f32.xlu0 %v3506
        %v4111 = vpop.xlane.xlu0 %4110
        %4112 = vmax.xlane.f32.xlu0 %v3507
        %v4113 = vpop.xlane.xlu0 %4112
        %4114 = vmax.xlane.f32.xlu0 %v3508
        %v4115 = vpop.xlane.xlu0 %4114
        %4116 = vmax.xlane.f32.xlu0 %v3509
        %v4117 = vpop.xlane.xlu0 %4116
        %4118 = vmax.xlane.f32.xlu0 %v3510
        %v4119 = vpop.xlane.xlu0 %4118
        %4120 = vmax.xlane.f32.xlu0 %v3511
        %v4121 = vpop.xlane.xlu0 %4120
        %vm4122 = vcmp.eq.f32.partialorder %v3480, %v4059
        %vm4123 = vcmp.eq.f32.partialorder %v3481, %v4061
        %vm4124 = vcmp.eq.f32.partialorder %v3482, %v4063
        %vm4125 = vcmp.eq.f32.partialorder %v3483, %v4065
        %vm4126 = vcmp.eq.f32.partialorder %v3484, %v4067
        %vm4127 = vcmp.eq.f32.partialorder %v3485, %v4069
        %vm4128 = vcmp.eq.f32.partialorder %v3486, %v4071
        %vm4129 = vcmp.eq.f32.partialorder %v3487, %v4073
        %vm4130 = vcmp.eq.f32.partialorder %v3488, %v4075
        %vm4131 = vcmp.eq.f32.partialorder %v3489, %v4077
        %vm4132 = vcmp.eq.f32.partialorder %v3490, %v4079
        %vm4133 = vcmp.eq.f32.partialorder %v3491, %v4081
        %vm4134 = vcmp.eq.f32.partialorder %v3492, %v4083
        %vm4135 = vcmp.eq.f32.partialorder %v3493, %v4085
        %vm4136 = vcmp.eq.f32.partialorder %v3494, %v4087
        %vm4137 = vcmp.eq.f32.partialorder %v3495, %v4089
        %vm4138 = vcmp.eq.f32.partialorder %v3496, %v4091
        %vm4139 = vcmp.eq.f32.partialorder %v3497, %v4093
        %vm4140 = vcmp.eq.f32.partialorder %v3498, %v4095
        %vm4141 = vcmp.eq.f32.partialorder %v3499, %v4097
        %vm4142 = vcmp.eq.f32.partialorder %v3500, %v4099
        %vm4143 = vcmp.eq.f32.partialorder %v3501, %v4101
        %vm4144 = vcmp.eq.f32.partialorder %v3502, %v4103
        %vm4145 = vcmp.eq.f32.partialorder %v3503, %v4105
        %vm4146 = vcmp.eq.f32.partialorder %v3504, %v4107
        %vm4147 = vcmp.eq.f32.partialorder %v3505, %v4109
        %vm4148 = vcmp.eq.f32.partialorder %v3506, %v4111
        %vm4149 = vcmp.eq.f32.partialorder %v3507, %v4113
        %vm4150 = vcmp.eq.f32.partialorder %v3508, %v4115
        %vm4151 = vcmp.eq.f32.partialorder %v3509, %v4117
        %vm4152 = vcmp.eq.f32.partialorder %v3510, %v4119
        %vm4153 = vcmp.eq.f32.partialorder %v3511, %v4121
        %v4154 = vsel %vm4122, %v3673, 128
        %v4155 = vsel %vm4123, %v3673, 128
        %v4156 = vsel %vm4124, %v3673, 128
        %v4157 = vsel %vm4125, %v3673, 128
        %v4158 = vsel %vm4126, %v3673, 128
        %v4159 = vsel %vm4127, %v3673, 128
        %v4160 = vsel %vm4128, %v3673, 128
        %v4161 = vsel %vm4129, %v3673, 128
        %v4162 = vsel %vm4130, %v3673, 128
        %v4163 = vsel %vm4131, %v3673, 128
        %v4164 = vsel %vm4132, %v3673, 128
        %v4165 = vsel %vm4133, %v3673, 128
        %v4166 = vsel %vm4134, %v3673, 128
        %v4167 = vsel %vm4135, %v3673, 128
        %v4168 = vsel %vm4136, %v3673, 128
        %v4169 = vsel %vm4137, %v3673, 128
        %v4170 = vsel %vm4138, %v3673, 128
        %v4171 = vsel %vm4139, %v3673, 128
        %v4172 = vsel %vm4140, %v3673, 128
        %v4173 = vsel %vm4141, %v3673, 128
        %v4174 = vsel %vm4142, %v3673, 128
        %v4175 = vsel %vm4143, %v3673, 128
        %v4176 = vsel %vm4144, %v3673, 128
        %v4177 = vsel %vm4145, %v3673, 128
        %v4178 = vsel %vm4146, %v3673, 128
        %v4179 = vsel %vm4147, %v3673, 128
        %v4180 = vsel %vm4148, %v3673, 128
        %v4181 = vsel %vm4149, %v3673, 128
        %v4182 = vsel %vm4150, %v3673, 128
        %v4183 = vsel %vm4151, %v3673, 128
        %v4184 = vsel %vm4152, %v3673, 128
        %v4185 = vsel %vm4153, %v3673, 128
        %v4186 = vand.u32 %v4154, 65535
        %v4187 = vshra.s32 %v4154, 16
        %v4188 = vcvt.s32.f32 %v4186
        %v4189 = vcvt.s32.f32 %v4187
        %4190 = vmin.xlane.f32.xlu0 %v4189
        %v4191 = vpop.xlane.xlu0 %4190
        %vm4192 = vcmp.eq.f32.partialorder %v4189, %v4191
        %v4193 = vsel %vm4192, %v4188, inf
        %4194 = vmin.xlane.f32.xlu0 %v4193
        %v4195 = vpop.xlane.xlu0 %4194
        %v4196 = vcvt.f32.s32 %v4195
        %v4197 = vcvt.f32.s32 %v4191
        %v4198 = vshll.u32 %v4197, 16
        %v4199 = vadd.s32 %v4198, %v4196
        %v4200 = vand.u32 %v4155, 65535
        %v4201 = vshra.s32 %v4155, 16
        %v4202 = vcvt.s32.f32 %v4200
        %v4203 = vcvt.s32.f32 %v4201
        %4204 = vmin.xlane.f32.xlu0 %v4203
        %v4205 = vpop.xlane.xlu0 %4204
        %vm4206 = vcmp.eq.f32.partialorder %v4203, %v4205
        %v4207 = vsel %vm4206, %v4202, inf
        %4208 = vmin.xlane.f32.xlu0 %v4207
        %v4209 = vpop.xlane.xlu0 %4208
        %v4210 = vcvt.f32.s32 %v4209
        %v4211 = vcvt.f32.s32 %v4205
        %v4212 = vshll.u32 %v4211, 16
        %v4213 = vadd.s32 %v4212, %v4210
        %v4214 = vand.u32 %v4156, 65535
        %v4215 = vshra.s32 %v4156, 16
        %v4216 = vcvt.s32.f32 %v4214
        %v4217 = vcvt.s32.f32 %v4215
        %4218 = vmin.xlane.f32.xlu0 %v4217
        %v4219 = vpop.xlane.xlu0 %4218
        %vm4220 = vcmp.eq.f32.partialorder %v4217, %v4219
        %v4221 = vsel %vm4220, %v4216, inf
        %4222 = vmin.xlane.f32.xlu0 %v4221
        %v4223 = vpop.xlane.xlu0 %4222
        %v4224 = vcvt.f32.s32 %v4223
        %v4225 = vcvt.f32.s32 %v4219
        %v4226 = vshll.u32 %v4225, 16
        %v4227 = vadd.s32 %v4226, %v4224
        %v4228 = vand.u32 %v4157, 65535
        %v4229 = vshra.s32 %v4157, 16
        %v4230 = vcvt.s32.f32 %v4228
        %v4231 = vcvt.s32.f32 %v4229
        %4232 = vmin.xlane.f32.xlu0 %v4231
        %v4233 = vpop.xlane.xlu0 %4232
        %vm4234 = vcmp.eq.f32.partialorder %v4231, %v4233
        %v4235 = vsel %vm4234, %v4230, inf
        %4236 = vmin.xlane.f32.xlu0 %v4235
        %v4237 = vpop.xlane.xlu0 %4236
        %v4238 = vcvt.f32.s32 %v4237
        %v4239 = vcvt.f32.s32 %v4233
        %v4240 = vshll.u32 %v4239, 16
        %v4241 = vadd.s32 %v4240, %v4238
        %v4242 = vand.u32 %v4158, 65535
        %v4243 = vshra.s32 %v4158, 16
        %v4244 = vcvt.s32.f32 %v4242
        %v4245 = vcvt.s32.f32 %v4243
        %4246 = vmin.xlane.f32.xlu0 %v4245
        %v4247 = vpop.xlane.xlu0 %4246
        %vm4248 = vcmp.eq.f32.partialorder %v4245, %v4247
        %v4249 = vsel %vm4248, %v4244, inf
        %4250 = vmin.xlane.f32.xlu0 %v4249
        %v4251 = vpop.xlane.xlu0 %4250
        %v4252 = vcvt.f32.s32 %v4251
        %v4253 = vcvt.f32.s32 %v4247
        %v4254 = vshll.u32 %v4253, 16
        %v4255 = vadd.s32 %v4254, %v4252
        %v4256 = vand.u32 %v4159, 65535
        %v4257 = vshra.s32 %v4159, 16
        %v4258 = vcvt.s32.f32 %v4256
        %v4259 = vcvt.s32.f32 %v4257
        %4260 = vmin.xlane.f32.xlu0 %v4259
        %v4261 = vpop.xlane.xlu0 %4260
        %vm4262 = vcmp.eq.f32.partialorder %v4259, %v4261
        %v4263 = vsel %vm4262, %v4258, inf
        %4264 = vmin.xlane.f32.xlu0 %v4263
        %v4265 = vpop.xlane.xlu0 %4264
        %v4266 = vcvt.f32.s32 %v4265
        %v4267 = vcvt.f32.s32 %v4261
        %v4268 = vshll.u32 %v4267, 16
        %v4269 = vadd.s32 %v4268, %v4266
        %v4270 = vand.u32 %v4160, 65535
        %v4271 = vshra.s32 %v4160, 16
        %v4272 = vcvt.s32.f32 %v4270
        %v4273 = vcvt.s32.f32 %v4271
        %4274 = vmin.xlane.f32.xlu0 %v4273
        %v4275 = vpop.xlane.xlu0 %4274
        %vm4276 = vcmp.eq.f32.partialorder %v4273, %v4275
        %v4277 = vsel %vm4276, %v4272, inf
        %4278 = vmin.xlane.f32.xlu0 %v4277
        %v4279 = vpop.xlane.xlu0 %4278
        %v4280 = vcvt.f32.s32 %v4279
        %v4281 = vcvt.f32.s32 %v4275
        %v4282 = vshll.u32 %v4281, 16
        %v4283 = vadd.s32 %v4282, %v4280
        %v4284 = vand.u32 %v4161, 65535
        %v4285 = vshra.s32 %v4161, 16
        %v4286 = vcvt.s32.f32 %v4284
        %v4287 = vcvt.s32.f32 %v4285
        %4288 = vmin.xlane.f32.xlu0 %v4287
        %v4289 = vpop.xlane.xlu0 %4288
        %vm4290 = vcmp.eq.f32.partialorder %v4287, %v4289
        %v4291 = vsel %vm4290, %v4286, inf
        %4292 = vmin.xlane.f32.xlu0 %v4291
        %v4293 = vpop.xlane.xlu0 %4292
        %v4294 = vcvt.f32.s32 %v4293
        %v4295 = vcvt.f32.s32 %v4289
        %v4296 = vshll.u32 %v4295, 16
        %v4297 = vadd.s32 %v4296, %v4294
        %v4298 = vand.u32 %v4162, 65535
        %v4299 = vshra.s32 %v4162, 16
        %v4300 = vcvt.s32.f32 %v4298
        %v4301 = vcvt.s32.f32 %v4299
        %4302 = vmin.xlane.f32.xlu0 %v4301
        %v4303 = vpop.xlane.xlu0 %4302
        %vm4304 = vcmp.eq.f32.partialorder %v4301, %v4303
        %v4305 = vsel %vm4304, %v4300, inf
        %4306 = vmin.xlane.f32.xlu0 %v4305
        %v4307 = vpop.xlane.xlu0 %4306
        %v4308 = vcvt.f32.s32 %v4307
        %v4309 = vcvt.f32.s32 %v4303
        %v4310 = vshll.u32 %v4309, 16
        %v4311 = vadd.s32 %v4310, %v4308
        %v4312 = vand.u32 %v4163, 65535
        %v4313 = vshra.s32 %v4163, 16
        %v4314 = vcvt.s32.f32 %v4312
        %v4315 = vcvt.s32.f32 %v4313
        %4316 = vmin.xlane.f32.xlu0 %v4315
        %v4317 = vpop.xlane.xlu0 %4316
        %vm4318 = vcmp.eq.f32.partialorder %v4315, %v4317
        %v4319 = vsel %vm4318, %v4314, inf
        %4320 = vmin.xlane.f32.xlu0 %v4319
        %v4321 = vpop.xlane.xlu0 %4320
        %v4322 = vcvt.f32.s32 %v4321
        %v4323 = vcvt.f32.s32 %v4317
        %v4324 = vshll.u32 %v4323, 16
        %v4325 = vadd.s32 %v4324, %v4322
        %v4326 = vand.u32 %v4164, 65535
        %v4327 = vshra.s32 %v4164, 16
        %v4328 = vcvt.s32.f32 %v4326
        %v4329 = vcvt.s32.f32 %v4327
        %4330 = vmin.xlane.f32.xlu0 %v4329
        %v4331 = vpop.xlane.xlu0 %4330
        %vm4332 = vcmp.eq.f32.partialorder %v4329, %v4331
        %v4333 = vsel %vm4332, %v4328, inf
        %4334 = vmin.xlane.f32.xlu0 %v4333
        %v4335 = vpop.xlane.xlu0 %4334
        %v4336 = vcvt.f32.s32 %v4335
        %v4337 = vcvt.f32.s32 %v4331
        %v4338 = vshll.u32 %v4337, 16
        %v4339 = vadd.s32 %v4338, %v4336
        %v4340 = vand.u32 %v4165, 65535
        %v4341 = vshra.s32 %v4165, 16
        %v4342 = vcvt.s32.f32 %v4340
        %v4343 = vcvt.s32.f32 %v4341
        %4344 = vmin.xlane.f32.xlu0 %v4343
        %v4345 = vpop.xlane.xlu0 %4344
        %vm4346 = vcmp.eq.f32.partialorder %v4343, %v4345
        %v4347 = vsel %vm4346, %v4342, inf
        %4348 = vmin.xlane.f32.xlu0 %v4347
        %v4349 = vpop.xlane.xlu0 %4348
        %v4350 = vcvt.f32.s32 %v4349
        %v4351 = vcvt.f32.s32 %v4345
        %v4352 = vshll.u32 %v4351, 16
        %v4353 = vadd.s32 %v4352, %v4350
        %v4354 = vand.u32 %v4166, 65535
        %v4355 = vshra.s32 %v4166, 16
        %v4356 = vcvt.s32.f32 %v4354
        %v4357 = vcvt.s32.f32 %v4355
        %4358 = vmin.xlane.f32.xlu0 %v4357
        %v4359 = vpop.xlane.xlu0 %4358
        %vm4360 = vcmp.eq.f32.partialorder %v4357, %v4359
        %v4361 = vsel %vm4360, %v4356, inf
        %4362 = vmin.xlane.f32.xlu0 %v4361
        %v4363 = vpop.xlane.xlu0 %4362
        %v4364 = vcvt.f32.s32 %v4363
        %v4365 = vcvt.f32.s32 %v4359
        %v4366 = vshll.u32 %v4365, 16
        %v4367 = vadd.s32 %v4366, %v4364
        %v4368 = vand.u32 %v4167, 65535
        %v4369 = vshra.s32 %v4167, 16
        %v4370 = vcvt.s32.f32 %v4368
        %v4371 = vcvt.s32.f32 %v4369
        %4372 = vmin.xlane.f32.xlu0 %v4371
        %v4373 = vpop.xlane.xlu0 %4372
        %vm4374 = vcmp.eq.f32.partialorder %v4371, %v4373
        %v4375 = vsel %vm4374, %v4370, inf
        %4376 = vmin.xlane.f32.xlu0 %v4375
        %v4377 = vpop.xlane.xlu0 %4376
        %v4378 = vcvt.f32.s32 %v4377
        %v4379 = vcvt.f32.s32 %v4373
        %v4380 = vshll.u32 %v4379, 16
        %v4381 = vadd.s32 %v4380, %v4378
        %v4382 = vand.u32 %v4168, 65535
        %v4383 = vshra.s32 %v4168, 16
        %v4384 = vcvt.s32.f32 %v4382
        %v4385 = vcvt.s32.f32 %v4383
        %4386 = vmin.xlane.f32.xlu0 %v4385
        %v4387 = vpop.xlane.xlu0 %4386
        %vm4388 = vcmp.eq.f32.partialorder %v4385, %v4387
        %v4389 = vsel %vm4388, %v4384, inf
        %4390 = vmin.xlane.f32.xlu0 %v4389
        %v4391 = vpop.xlane.xlu0 %4390
        %v4392 = vcvt.f32.s32 %v4391
        %v4393 = vcvt.f32.s32 %v4387
        %v4394 = vshll.u32 %v4393, 16
        %v4395 = vadd.s32 %v4394, %v4392
        %v4396 = vand.u32 %v4169, 65535
        %v4397 = vshra.s32 %v4169, 16
        %v4398 = vcvt.s32.f32 %v4396
        %v4399 = vcvt.s32.f32 %v4397
        %4400 = vmin.xlane.f32.xlu0 %v4399
        %v4401 = vpop.xlane.xlu0 %4400
        %vm4402 = vcmp.eq.f32.partialorder %v4399, %v4401
        %v4403 = vsel %vm4402, %v4398, inf
        %4404 = vmin.xlane.f32.xlu0 %v4403
        %v4405 = vpop.xlane.xlu0 %4404
        %v4406 = vcvt.f32.s32 %v4405
        %v4407 = vcvt.f32.s32 %v4401
        %v4408 = vshll.u32 %v4407, 16
        %v4409 = vadd.s32 %v4408, %v4406
        %v4410 = vand.u32 %v4170, 65535
        %v4411 = vshra.s32 %v4170, 16
        %v4412 = vcvt.s32.f32 %v4410
        %v4413 = vcvt.s32.f32 %v4411
        %4414 = vmin.xlane.f32.xlu0 %v4413
        %v4415 = vpop.xlane.xlu0 %4414
        %vm4416 = vcmp.eq.f32.partialorder %v4413, %v4415
        %v4417 = vsel %vm4416, %v4412, inf
        %4418 = vmin.xlane.f32.xlu0 %v4417
        %v4419 = vpop.xlane.xlu0 %4418
        %v4420 = vcvt.f32.s32 %v4419
        %v4421 = vcvt.f32.s32 %v4415
        %v4422 = vshll.u32 %v4421, 16
        %v4423 = vadd.s32 %v4422, %v4420
        %v4424 = vand.u32 %v4171, 65535
        %v4425 = vshra.s32 %v4171, 16
        %v4426 = vcvt.s32.f32 %v4424
        %v4427 = vcvt.s32.f32 %v4425
        %4428 = vmin.xlane.f32.xlu0 %v4427
        %v4429 = vpop.xlane.xlu0 %4428
        %vm4430 = vcmp.eq.f32.partialorder %v4427, %v4429
        %v4431 = vsel %vm4430, %v4426, inf
        %4432 = vmin.xlane.f32.xlu0 %v4431
        %v4433 = vpop.xlane.xlu0 %4432
        %v4434 = vcvt.f32.s32 %v4433
        %v4435 = vcvt.f32.s32 %v4429
        %v4436 = vshll.u32 %v4435, 16
        %v4437 = vadd.s32 %v4436, %v4434
        %v4438 = vand.u32 %v4172, 65535
        %v4439 = vshra.s32 %v4172, 16
        %v4440 = vcvt.s32.f32 %v4438
        %v4441 = vcvt.s32.f32 %v4439
        %4442 = vmin.xlane.f32.xlu0 %v4441
        %v4443 = vpop.xlane.xlu0 %4442
        %vm4444 = vcmp.eq.f32.partialorder %v4441, %v4443
        %v4445 = vsel %vm4444, %v4440, inf
        %4446 = vmin.xlane.f32.xlu0 %v4445
        %v4447 = vpop.xlane.xlu0 %4446
        %v4448 = vcvt.f32.s32 %v4447
        %v4449 = vcvt.f32.s32 %v4443
        %v4450 = vshll.u32 %v4449, 16
        %v4451 = vadd.s32 %v4450, %v4448
        %v4452 = vand.u32 %v4173, 65535
        %v4453 = vshra.s32 %v4173, 16
        %v4454 = vcvt.s32.f32 %v4452
        %v4455 = vcvt.s32.f32 %v4453
        %4456 = vmin.xlane.f32.xlu0 %v4455
        %v4457 = vpop.xlane.xlu0 %4456
        %vm4458 = vcmp.eq.f32.partialorder %v4455, %v4457
        %v4459 = vsel %vm4458, %v4454, inf
        %4460 = vmin.xlane.f32.xlu0 %v4459
        %v4461 = vpop.xlane.xlu0 %4460
        %v4462 = vcvt.f32.s32 %v4461
        %v4463 = vcvt.f32.s32 %v4457
        %v4464 = vshll.u32 %v4463, 16
        %v4465 = vadd.s32 %v4464, %v4462
        %v4466 = vand.u32 %v4174, 65535
        %v4467 = vshra.s32 %v4174, 16
        %v4468 = vcvt.s32.f32 %v4466
        %v4469 = vcvt.s32.f32 %v4467
        %4470 = vmin.xlane.f32.xlu0 %v4469
        %v4471 = vpop.xlane.xlu0 %4470
        %vm4472 = vcmp.eq.f32.partialorder %v4469, %v4471
        %v4473 = vsel %vm4472, %v4468, inf
        %4474 = vmin.xlane.f32.xlu0 %v4473
        %v4475 = vpop.xlane.xlu0 %4474
        %v4476 = vcvt.f32.s32 %v4475
        %v4477 = vcvt.f32.s32 %v4471
        %v4478 = vshll.u32 %v4477, 16
        %v4479 = vadd.s32 %v4478, %v4476
        %v4480 = vand.u32 %v4175, 65535
        %v4481 = vshra.s32 %v4175, 16
        %v4482 = vcvt.s32.f32 %v4480
        %v4483 = vcvt.s32.f32 %v4481
        %4484 = vmin.xlane.f32.xlu0 %v4483
        %v4485 = vpop.xlane.xlu0 %4484
        %vm4486 = vcmp.eq.f32.partialorder %v4483, %v4485
        %v4487 = vsel %vm4486, %v4482, inf
        %4488 = vmin.xlane.f32.xlu0 %v4487
        %v4489 = vpop.xlane.xlu0 %4488
        %v4490 = vcvt.f32.s32 %v4489
        %v4491 = vcvt.f32.s32 %v4485
        %v4492 = vshll.u32 %v4491, 16
        %v4493 = vadd.s32 %v4492, %v4490
        %v4494 = vand.u32 %v4176, 65535
        %v4495 = vshra.s32 %v4176, 16
        %v4496 = vcvt.s32.f32 %v4494
        %v4497 = vcvt.s32.f32 %v4495
        %4498 = vmin.xlane.f32.xlu0 %v4497
        %v4499 = vpop.xlane.xlu0 %4498
        %vm4500 = vcmp.eq.f32.partialorder %v4497, %v4499
        %v4501 = vsel %vm4500, %v4496, inf
        %4502 = vmin.xlane.f32.xlu0 %v4501
        %v4503 = vpop.xlane.xlu0 %4502
        %v4504 = vcvt.f32.s32 %v4503
        %v4505 = vcvt.f32.s32 %v4499
        %v4506 = vshll.u32 %v4505, 16
        %v4507 = vadd.s32 %v4506, %v4504
        %v4508 = vand.u32 %v4177, 65535
        %v4509 = vshra.s32 %v4177, 16
        %v4510 = vcvt.s32.f32 %v4508
        %v4511 = vcvt.s32.f32 %v4509
        %4512 = vmin.xlane.f32.xlu0 %v4511
        %v4513 = vpop.xlane.xlu0 %4512
        %vm4514 = vcmp.eq.f32.partialorder %v4511, %v4513
        %v4515 = vsel %vm4514, %v4510, inf
        %4516 = vmin.xlane.f32.xlu0 %v4515
        %v4517 = vpop.xlane.xlu0 %4516
        %v4518 = vcvt.f32.s32 %v4517
        %v4519 = vcvt.f32.s32 %v4513
        %v4520 = vshll.u32 %v4519, 16
        %v4521 = vadd.s32 %v4520, %v4518
        %v4522 = vand.u32 %v4178, 65535
        %v4523 = vshra.s32 %v4178, 16
        %v4524 = vcvt.s32.f32 %v4522
        %v4525 = vcvt.s32.f32 %v4523
        %4526 = vmin.xlane.f32.xlu0 %v4525
        %v4527 = vpop.xlane.xlu0 %4526
        %vm4528 = vcmp.eq.f32.partialorder %v4525, %v4527
        %v4529 = vsel %vm4528, %v4524, inf
        %4530 = vmin.xlane.f32.xlu0 %v4529
        %v4531 = vpop.xlane.xlu0 %4530
        %v4532 = vcvt.f32.s32 %v4531
        %v4533 = vcvt.f32.s32 %v4527
        %v4534 = vshll.u32 %v4533, 16
        %v4535 = vadd.s32 %v4534, %v4532
        %v4536 = vand.u32 %v4179, 65535
        %v4537 = vshra.s32 %v4179, 16
        %v4538 = vcvt.s32.f32 %v4536
        %v4539 = vcvt.s32.f32 %v4537
        %4540 = vmin.xlane.f32.xlu0 %v4539
        %v4541 = vpop.xlane.xlu0 %4540
        %vm4542 = vcmp.eq.f32.partialorder %v4539, %v4541
        %v4543 = vsel %vm4542, %v4538, inf
        %4544 = vmin.xlane.f32.xlu0 %v4543
        %v4545 = vpop.xlane.xlu0 %4544
        %v4546 = vcvt.f32.s32 %v4545
        %v4547 = vcvt.f32.s32 %v4541
        %v4548 = vshll.u32 %v4547, 16
        %v4549 = vadd.s32 %v4548, %v4546
        %v4550 = vand.u32 %v4180, 65535
        %v4551 = vshra.s32 %v4180, 16
        %v4552 = vcvt.s32.f32 %v4550
        %v4553 = vcvt.s32.f32 %v4551
        %4554 = vmin.xlane.f32.xlu0 %v4553
        %v4555 = vpop.xlane.xlu0 %4554
        %vm4556 = vcmp.eq.f32.partialorder %v4553, %v4555
        %v4557 = vsel %vm4556, %v4552, inf
        %4558 = vmin.xlane.f32.xlu0 %v4557
        %v4559 = vpop.xlane.xlu0 %4558
        %v4560 = vcvt.f32.s32 %v4559
        %v4561 = vcvt.f32.s32 %v4555
        %v4562 = vshll.u32 %v4561, 16
        %v4563 = vadd.s32 %v4562, %v4560
        %v4564 = vand.u32 %v4181, 65535
        %v4565 = vshra.s32 %v4181, 16
        %v4566 = vcvt.s32.f32 %v4564
        %v4567 = vcvt.s32.f32 %v4565
        %4568 = vmin.xlane.f32.xlu0 %v4567
        %v4569 = vpop.xlane.xlu0 %4568
        %vm4570 = vcmp.eq.f32.partialorder %v4567, %v4569
        %v4571 = vsel %vm4570, %v4566, inf
        %4572 = vmin.xlane.f32.xlu0 %v4571
        %v4573 = vpop.xlane.xlu0 %4572
        %v4574 = vcvt.f32.s32 %v4573
        %v4575 = vcvt.f32.s32 %v4569
        %v4576 = vshll.u32 %v4575, 16
        %v4577 = vadd.s32 %v4576, %v4574
        %v4578 = vand.u32 %v4182, 65535
        %v4579 = vshra.s32 %v4182, 16
        %v4580 = vcvt.s32.f32 %v4578
        %v4581 = vcvt.s32.f32 %v4579
        %4582 = vmin.xlane.f32.xlu0 %v4581
        %v4583 = vpop.xlane.xlu0 %4582
        %vm4584 = vcmp.eq.f32.partialorder %v4581, %v4583
        %v4585 = vsel %vm4584, %v4580, inf
        %4586 = vmin.xlane.f32.xlu0 %v4585
        %v4587 = vpop.xlane.xlu0 %4586
        %v4588 = vcvt.f32.s32 %v4587
        %v4589 = vcvt.f32.s32 %v4583
        %v4590 = vshll.u32 %v4589, 16
        %v4591 = vadd.s32 %v4590, %v4588
        %v4592 = vand.u32 %v4183, 65535
        %v4593 = vshra.s32 %v4183, 16
        %v4594 = vcvt.s32.f32 %v4592
        %v4595 = vcvt.s32.f32 %v4593
        %4596 = vmin.xlane.f32.xlu0 %v4595
        %v4597 = vpop.xlane.xlu0 %4596
        %vm4598 = vcmp.eq.f32.partialorder %v4595, %v4597
        %v4599 = vsel %vm4598, %v4594, inf
        %4600 = vmin.xlane.f32.xlu0 %v4599
        %v4601 = vpop.xlane.xlu0 %4600
        %v4602 = vcvt.f32.s32 %v4601
        %v4603 = vcvt.f32.s32 %v4597
        %v4604 = vshll.u32 %v4603, 16
        %v4605 = vadd.s32 %v4604, %v4602
        %v4606 = vand.u32 %v4184, 65535
        %v4607 = vshra.s32 %v4184, 16
        %v4608 = vcvt.s32.f32 %v4606
        %v4609 = vcvt.s32.f32 %v4607
        %4610 = vmin.xlane.f32.xlu0 %v4609
        %v4611 = vpop.xlane.xlu0 %4610
        %vm4612 = vcmp.eq.f32.partialorder %v4609, %v4611
        %v4613 = vsel %vm4612, %v4608, inf
        %4614 = vmin.xlane.f32.xlu0 %v4613
        %v4615 = vpop.xlane.xlu0 %4614
        %v4616 = vcvt.f32.s32 %v4615
        %v4617 = vcvt.f32.s32 %v4611
        %v4618 = vshll.u32 %v4617, 16
        %v4619 = vadd.s32 %v4618, %v4616
        %v4620 = vand.u32 %v4185, 65535
        %v4621 = vshra.s32 %v4185, 16
        %v4622 = vcvt.s32.f32 %v4620
        %v4623 = vcvt.s32.f32 %v4621
        %4624 = vmin.xlane.f32.xlu0 %v4623
        %v4625 = vpop.xlane.xlu0 %4624
        %vm4626 = vcmp.eq.f32.partialorder %v4623, %v4625
        %v4627 = vsel %vm4626, %v4622, inf
        %4628 = vmin.xlane.f32.xlu0 %v4627
        %v4629 = vpop.xlane.xlu0 %4628
        %v4630 = vcvt.f32.s32 %v4629
        %v4631 = vcvt.f32.s32 %v4625
        %v4632 = vshll.u32 %v4631, 16
        %v4633 = vadd.s32 %v4632, %v4630
        %v4634 = vsel %vm3738, %v3995, 0.0
        %v4635 = vsel %vm3739, %v3997, 0.0
        %v4636 = vsel %vm3740, %v3999, 0.0
        %v4637 = vsel %vm3741, %v4001, 0.0
        %v4638 = vsel %vm3742, %v4003, 0.0
        %v4639 = vsel %vm3743, %v4005, 0.0
        %v4640 = vsel %vm3744, %v4007, 0.0
        %v4641 = vsel %vm3745, %v4009, 0.0
        %v4642 = vsel %vm3746, %v4011, 0.0
        %v4643 = vsel %vm3747, %v4013, 0.0
        %v4644 = vsel %vm3748, %v4015, 0.0
        %v4645 = vsel %vm3749, %v4017, 0.0
        %v4646 = vsel %vm3750, %v4019, 0.0
        %v4647 = vsel %vm3751, %v4021, 0.0
        %v4648 = vsel %vm3752, %v4023, 0.0
        %v4649 = vsel %vm3753, %v4025, 0.0
        %v4650 = vsel %vm3754, %v4027, 0.0
        %v4651 = vsel %vm3755, %v4029, 0.0
        %v4652 = vsel %vm3756, %v4031, 0.0
        %v4653 = vsel %vm3757, %v4033, 0.0
        %v4654 = vsel %vm3758, %v4035, 0.0
        %v4655 = vsel %vm3759, %v4037, 0.0
        %v4656 = vsel %vm3760, %v4039, 0.0
        %v4657 = vsel %vm3761, %v4041, 0.0
        %v4658 = vsel %vm3762, %v4043, 0.0
        %v4659 = vsel %vm3763, %v4045, 0.0
        %v4660 = vsel %vm3764, %v4047, 0.0
        %v4661 = vsel %vm3765, %v4049, 0.0
        %v4662 = vsel %vm3766, %v4051, 0.0
        %v4663 = vsel %vm3767, %v4053, 0.0
        %v4664 = vsel %vm3768, %v4055, 0.0
        %v4665 = vsel %vm3769, %v4057, 0.0
        %vm4666 = vcmask 7168
        %v4667 = vsel %vm4666, %v4634, 0.0
        %v4668 = vsel %vm4666, %v4635, 0.0
        %v4669 = vadd.f32 %v4667, %v4668
        %v4670 = vsel %vm4666, %v4636, 0.0
        %v4671 = vadd.f32 %v4669, %v4670
        %v4672 = vsel %vm4666, %v4637, 0.0
        %v4673 = vadd.f32 %v4671, %v4672
        %v4674 = vsel %vm4666, %v4638, 0.0
        %v4675 = vadd.f32 %v4673, %v4674
        %v4676 = vsel %vm4666, %v4639, 0.0
        %v4677 = vadd.f32 %v4675, %v4676
        %v4678 = vsel %vm4666, %v4640, 0.0
        %v4679 = vadd.f32 %v4677, %v4678
        %v4680 = vsel %vm4666, %v4641, 0.0
        %v4681 = vadd.f32 %v4679, %v4680
        %v4682 = vsel %vm4666, %v4642, 0.0
        %v4683 = vadd.f32 %v4681, %v4682
        %v4684 = vsel %vm4666, %v4643, 0.0
        %v4685 = vadd.f32 %v4683, %v4684
        %v4686 = vsel %vm4666, %v4644, 0.0
        %v4687 = vadd.f32 %v4685, %v4686
        %v4688 = vsel %vm4666, %v4645, 0.0
        %v4689 = vadd.f32 %v4687, %v4688
        %v4690 = vsel %vm4666, %v4646, 0.0
        %v4691 = vadd.f32 %v4689, %v4690
        %v4692 = vsel %vm4666, %v4647, 0.0
        %v4693 = vadd.f32 %v4691, %v4692
        %v4694 = vsel %vm4666, %v4648, 0.0
        %v4695 = vadd.f32 %v4693, %v4694
        %v4696 = vsel %vm4666, %v4649, 0.0
        %v4697 = vadd.f32 %v4695, %v4696
        %v4698 = vsel %vm4666, %v4650, 0.0
        %v4699 = vadd.f32 %v4697, %v4698
        %v4700 = vsel %vm4666, %v4651, 0.0
        %v4701 = vadd.f32 %v4699, %v4700
        %v4702 = vsel %vm4666, %v4652, 0.0
        %v4703 = vadd.f32 %v4701, %v4702
        %v4704 = vsel %vm4666, %v4653, 0.0
        %v4705 = vadd.f32 %v4703, %v4704
        %v4706 = vsel %vm4666, %v4654, 0.0
        %v4707 = vadd.f32 %v4705, %v4706
        %v4708 = vsel %vm4666, %v4655, 0.0
        %v4709 = vadd.f32 %v4707, %v4708
        %v4710 = vsel %vm4666, %v4656, 0.0
        %v4711 = vadd.f32 %v4709, %v4710
        %v4712 = vsel %vm4666, %v4657, 0.0
        %v4713 = vadd.f32 %v4711, %v4712
        %v4714 = vsel %vm4666, %v4658, 0.0
        %v4715 = vadd.f32 %v4713, %v4714
        %v4716 = vsel %vm4666, %v4659, 0.0
        %v4717 = vadd.f32 %v4715, %v4716
        %v4718 = vsel %vm4666, %v4660, 0.0
        %v4719 = vadd.f32 %v4717, %v4718
        %v4720 = vsel %vm4666, %v4661, 0.0
        %v4721 = vadd.f32 %v4719, %v4720
        %v4722 = vsel %vm4666, %v4662, 0.0
        %v4723 = vadd.f32 %v4721, %v4722
        %v4724 = vsel %vm4666, %v4663, 0.0
        %v4725 = vadd.f32 %v4723, %v4724
        %v4726 = vsel %vm4666, %v4664, 0.0
        %v4727 = vadd.f32 %v4725, %v4726
        %v4728 = vsel %vm4666, %v4665, 0.0
        %v4729 = vadd.f32 %v4727, %v4728
        %4730 = vadd.xlane.f32.xlu0 %v4729
        %v4731 = vpop.xlane.xlu0 %4730
        %v4732 = vrot.slane %v4731, 4
        %v4733 = vadd.f32 %v4731, %v4732
        %v4734 = vrot.slane %v4733, 2
        %v4735 = vadd.f32 %v4733, %v4734
        %v4736 = vrot.slane %v4735, 1
        %v4737 = vadd.f32 %v4735, %v4736
        %s4738 = vtos %v4737
        %vm4739 = vcmp.eq.s32.totalorder %v4199, %v3674
        %vm4740 = vcmp.eq.s32.totalorder %v4213, %v3675
        %vm4741 = vcmp.eq.s32.totalorder %v4227, %v3676
        %vm4742 = vcmp.eq.s32.totalorder %v4241, %v3677
        %vm4743 = vcmp.eq.s32.totalorder %v4255, %v3678
        %vm4744 = vcmp.eq.s32.totalorder %v4269, %v3679
        %vm4745 = vcmp.eq.s32.totalorder %v4283, %v3680
        %vm4746 = vcmp.eq.s32.totalorder %v4297, %v3681
        %vm4747 = vcmp.eq.s32.totalorder %v4311, %v3682
        %vm4748 = vcmp.eq.s32.totalorder %v4325, %v3683
        %vm4749 = vcmp.eq.s32.totalorder %v4339, %v3684
        %vm4750 = vcmp.eq.s32.totalorder %v4353, %v3685
        %vm4751 = vcmp.eq.s32.totalorder %v4367, %v3686
        %vm4752 = vcmp.eq.s32.totalorder %v4381, %v3687
        %vm4753 = vcmp.eq.s32.totalorder %v4395, %v3688
        %vm4754 = vcmp.eq.s32.totalorder %v4409, %v3689
        %vm4755 = vcmp.eq.s32.totalorder %v4423, %v3690
        %vm4756 = vcmp.eq.s32.totalorder %v4437, %v3691
        %vm4757 = vcmp.eq.s32.totalorder %v4451, %v3692
        %vm4758 = vcmp.eq.s32.totalorder %v4465, %v3693
        %vm4759 = vcmp.eq.s32.totalorder %v4479, %v3694
        %vm4760 = vcmp.eq.s32.totalorder %v4493, %v3695
        %vm4761 = vcmp.eq.s32.totalorder %v4507, %v3696
        %vm4762 = vcmp.eq.s32.totalorder %v4521, %v3697
        %vm4763 = vcmp.eq.s32.totalorder %v4535, %v3698
        %vm4764 = vcmp.eq.s32.totalorder %v4549, %v3699
        %vm4765 = vcmp.eq.s32.totalorder %v4563, %v3700
        %vm4766 = vcmp.eq.s32.totalorder %v4577, %v3701
        %vm4767 = vcmp.eq.s32.totalorder %v4591, %v3702
        %vm4768 = vcmp.eq.s32.totalorder %v4605, %v3703
        %vm4769 = vcmp.eq.s32.totalorder %v4619, %v3704
        %vm4770 = vcmp.eq.s32.totalorder %v4633, %v3705
        %vm4771 = vmand %vm3738, %vm4739
        %vm4772 = vmand %vm3739, %vm4740
        %vm4773 = vmand %vm3740, %vm4741
        %vm4774 = vmand %vm3741, %vm4742
        %vm4775 = vmand %vm3742, %vm4743
        %vm4776 = vmand %vm3743, %vm4744
        %vm4777 = vmand %vm3744, %vm4745
        %vm4778 = vmand %vm3745, %vm4746
        %vm4779 = vmand %vm3746, %vm4747
        %vm4780 = vmand %vm3747, %vm4748
        %vm4781 = vmand %vm3748, %vm4749
        %vm4782 = vmand %vm3749, %vm4750
        %vm4783 = vmand %vm3750, %vm4751
        %vm4784 = vmand %vm3751, %vm4752
        %vm4785 = vmand %vm3752, %vm4753
        %vm4786 = vmand %vm3753, %vm4754
        %vm4787 = vmand %vm3754, %vm4755
        %vm4788 = vmand %vm3755, %vm4756
        %vm4789 = vmand %vm3756, %vm4757
        %vm4790 = vmand %vm3757, %vm4758
        %vm4791 = vmand %vm3758, %vm4759
        %vm4792 = vmand %vm3759, %vm4760
        %vm4793 = vmand %vm3760, %vm4761
        %vm4794 = vmand %vm3761, %vm4762
        %vm4795 = vmand %vm3762, %vm4763
        %vm4796 = vmand %vm3763, %vm4764
        %vm4797 = vmand %vm3764, %vm4765
        %vm4798 = vmand %vm3765, %vm4766
        %vm4799 = vmand %vm3766, %vm4767
        %vm4800 = vmand %vm3767, %vm4768
        %vm4801 = vmand %vm3768, %vm4769
        %vm4802 = vmand %vm3769, %vm4770
        %v4803 = vsel %vm4771, 1.0, 0.0
        %v4804 = vsel %vm4772, 1.0, 0.0
        %v4805 = vsel %vm4773, 1.0, 0.0
        %v4806 = vsel %vm4774, 1.0, 0.0
        %v4807 = vsel %vm4775, 1.0, 0.0
        %v4808 = vsel %vm4776, 1.0, 0.0
        %v4809 = vsel %vm4777, 1.0, 0.0
        %v4810 = vsel %vm4778, 1.0, 0.0
        %v4811 = vsel %vm4779, 1.0, 0.0
        %v4812 = vsel %vm4780, 1.0, 0.0
        %v4813 = vsel %vm4781, 1.0, 0.0
        %v4814 = vsel %vm4782, 1.0, 0.0
        %v4815 = vsel %vm4783, 1.0, 0.0
        %v4816 = vsel %vm4784, 1.0, 0.0
        %v4817 = vsel %vm4785, 1.0, 0.0
        %v4818 = vsel %vm4786, 1.0, 0.0
        %v4819 = vsel %vm4787, 1.0, 0.0
        %v4820 = vsel %vm4788, 1.0, 0.0
        %v4821 = vsel %vm4789, 1.0, 0.0
        %v4822 = vsel %vm4790, 1.0, 0.0
        %v4823 = vsel %vm4791, 1.0, 0.0
        %v4824 = vsel %vm4792, 1.0, 0.0
        %v4825 = vsel %vm4793, 1.0, 0.0
        %v4826 = vsel %vm4794, 1.0, 0.0
        %v4827 = vsel %vm4795, 1.0, 0.0
        %v4828 = vsel %vm4796, 1.0, 0.0
        %v4829 = vsel %vm4797, 1.0, 0.0
        %v4830 = vsel %vm4798, 1.0, 0.0
        %v4831 = vsel %vm4799, 1.0, 0.0
        %v4832 = vsel %vm4800, 1.0, 0.0
        %v4833 = vsel %vm4801, 1.0, 0.0
        %v4834 = vsel %vm4802, 1.0, 0.0
        %v4835 = vsel %vm4666, %v4803, 0.0
        %v4836 = vsel %vm4666, %v4804, 0.0
        %v4837 = vadd.f32 %v4835, %v4836
        %v4838 = vsel %vm4666, %v4805, 0.0
        %v4839 = vadd.f32 %v4837, %v4838
        %v4840 = vsel %vm4666, %v4806, 0.0
        %v4841 = vadd.f32 %v4839, %v4840
        %v4842 = vsel %vm4666, %v4807, 0.0
        %v4843 = vadd.f32 %v4841, %v4842
        %v4844 = vsel %vm4666, %v4808, 0.0
        %v4845 = vadd.f32 %v4843, %v4844
        %v4846 = vsel %vm4666, %v4809, 0.0
        %v4847 = vadd.f32 %v4845, %v4846
        %v4848 = vsel %vm4666, %v4810, 0.0
        %v4849 = vadd.f32 %v4847, %v4848
        %v4850 = vsel %vm4666, %v4811, 0.0
        %v4851 = vadd.f32 %v4849, %v4850
        %v4852 = vsel %vm4666, %v4812, 0.0
        %v4853 = vadd.f32 %v4851, %v4852
        %v4854 = vsel %vm4666, %v4813, 0.0
        %v4855 = vadd.f32 %v4853, %v4854
        %v4856 = vsel %vm4666, %v4814, 0.0
        %v4857 = vadd.f32 %v4855, %v4856
        %v4858 = vsel %vm4666, %v4815, 0.0
        %v4859 = vadd.f32 %v4857, %v4858
        %v4860 = vsel %vm4666, %v4816, 0.0
        %v4861 = vadd.f32 %v4859, %v4860
        %v4862 = vsel %vm4666, %v4817, 0.0
        %v4863 = vadd.f32 %v4861, %v4862
        %v4864 = vsel %vm4666, %v4818, 0.0
        %v4865 = vadd.f32 %v4863, %v4864
        %v4866 = vsel %vm4666, %v4819, 0.0
        %v4867 = vadd.f32 %v4865, %v4866
        %v4868 = vsel %vm4666, %v4820, 0.0
        %v4869 = vadd.f32 %v4867, %v4868
        %v4870 = vsel %vm4666, %v4821, 0.0
        %v4871 = vadd.f32 %v4869, %v4870
        %v4872 = vsel %vm4666, %v4822, 0.0
        %v4873 = vadd.f32 %v4871, %v4872
        %v4874 = vsel %vm4666, %v4823, 0.0
        %v4875 = vadd.f32 %v4873, %v4874
        %v4876 = vsel %vm4666, %v4824, 0.0
        %v4877 = vadd.f32 %v4875, %v4876
        %v4878 = vsel %vm4666, %v4825, 0.0
        %v4879 = vadd.f32 %v4877, %v4878
        %v4880 = vsel %vm4666, %v4826, 0.0
        %v4881 = vadd.f32 %v4879, %v4880
        %v4882 = vsel %vm4666, %v4827, 0.0
        %v4883 = vadd.f32 %v4881, %v4882
        %v4884 = vsel %vm4666, %v4828, 0.0
        %v4885 = vadd.f32 %v4883, %v4884
        %v4886 = vsel %vm4666, %v4829, 0.0
        %v4887 = vadd.f32 %v4885, %v4886
        %v4888 = vsel %vm4666, %v4830, 0.0
        %v4889 = vadd.f32 %v4887, %v4888
        %v4890 = vsel %vm4666, %v4831, 0.0
        %v4891 = vadd.f32 %v4889, %v4890
        %v4892 = vsel %vm4666, %v4832, 0.0
        %v4893 = vadd.f32 %v4891, %v4892
        %v4894 = vsel %vm4666, %v4833, 0.0
        %v4895 = vadd.f32 %v4893, %v4894
        %v4896 = vsel %vm4666, %v4834, 0.0
        %v4897 = vadd.f32 %v4895, %v4896
        %4898 = vadd.xlane.f32.xlu0 %v4897
        %v4899 = vpop.xlane.xlu0 %4898
        %v4900 = vrot.slane %v4899, 4
        %v4901 = vadd.f32 %v4899, %v4900
        %v4902 = vrot.slane %v4901, 2
        %v4903 = vadd.f32 %v4901, %v4902
        %v4904 = vrot.slane %v4903, 1
        %v4905 = vadd.f32 %v4903, %v4904
        %s4906 = vtos %v4905
        %v4907 = vsel %vm4666, %v3706, 0.0
        %v4908 = vsel %vm4666, %v3707, 0.0
        %v4909 = vadd.f32 %v4907, %v4908
        %v4910 = vsel %vm4666, %v3708, 0.0
        %v4911 = vadd.f32 %v4909, %v4910
        %v4912 = vsel %vm4666, %v3709, 0.0
        %v4913 = vadd.f32 %v4911, %v4912
        %v4914 = vsel %vm4666, %v3710, 0.0
        %v4915 = vadd.f32 %v4913, %v4914
        %v4916 = vsel %vm4666, %v3711, 0.0
        %v4917 = vadd.f32 %v4915, %v4916
        %v4918 = vsel %vm4666, %v3712, 0.0
        %v4919 = vadd.f32 %v4917, %v4918
        %v4920 = vsel %vm4666, %v3713, 0.0
        %v4921 = vadd.f32 %v4919, %v4920
        %v4922 = vsel %vm4666, %v3714, 0.0
        %v4923 = vadd.f32 %v4921, %v4922
        %v4924 = vsel %vm4666, %v3715, 0.0
        %v4925 = vadd.f32 %v4923, %v4924
        %v4926 = vsel %vm4666, %v3716, 0.0
        %v4927 = vadd.f32 %v4925, %v4926
        %v4928 = vsel %vm4666, %v3717, 0.0
        %v4929 = vadd.f32 %v4927, %v4928
        %v4930 = vsel %vm4666, %v3718, 0.0
        %v4931 = vadd.f32 %v4929, %v4930
        %v4932 = vsel %vm4666, %v3719, 0.0
        %v4933 = vadd.f32 %v4931, %v4932
        %v4934 = vsel %vm4666, %v3720, 0.0
        %v4935 = vadd.f32 %v4933, %v4934
        %v4936 = vsel %vm4666, %v3721, 0.0
        %v4937 = vadd.f32 %v4935, %v4936
        %v4938 = vsel %vm4666, %v3722, 0.0
        %v4939 = vadd.f32 %v4937, %v4938
        %v4940 = vsel %vm4666, %v3723, 0.0
        %v4941 = vadd.f32 %v4939, %v4940
        %v4942 = vsel %vm4666, %v3724, 0.0
        %v4943 = vadd.f32 %v4941, %v4942
        %v4944 = vsel %vm4666, %v3725, 0.0
        %v4945 = vadd.f32 %v4943, %v4944
        %v4946 = vsel %vm4666, %v3726, 0.0
        %v4947 = vadd.f32 %v4945, %v4946
        %v4948 = vsel %vm4666, %v3727, 0.0
        %v4949 = vadd.f32 %v4947, %v4948
        %v4950 = vsel %vm4666, %v3728, 0.0
        %v4951 = vadd.f32 %v4949, %v4950
        %v4952 = vsel %vm4666, %v3729, 0.0
        %v4953 = vadd.f32 %v4951, %v4952
        %v4954 = vsel %vm4666, %v3730, 0.0
        %v4955 = vadd.f32 %v4953, %v4954
        %v4956 = vsel %vm4666, %v3731, 0.0
        %v4957 = vadd.f32 %v4955, %v4956
        %v4958 = vsel %vm4666, %v3732, 0.0
        %v4959 = vadd.f32 %v4957, %v4958
        %v4960 = vsel %vm4666, %v3733, 0.0
        %v4961 = vadd.f32 %v4959, %v4960
        %v4962 = vsel %vm4666, %v3734, 0.0
        %v4963 = vadd.f32 %v4961, %v4962
        %v4964 = vsel %vm4666, %v3735, 0.0
        %v4965 = vadd.f32 %v4963, %v4964
        %v4966 = vsel %vm4666, %v3736, 0.0
        %v4967 = vadd.f32 %v4965, %v4966
        %v4968 = vsel %vm4666, %v3737, 0.0
        %v4969 = vadd.f32 %v4967, %v4968
        %4970 = vadd.xlane.f32.xlu0 %v4969
        %v4971 = vpop.xlane.xlu0 %4970
        %v4972 = vrot.slane %v4971, 4
        %v4973 = vadd.f32 %v4971, %v4972
        %v4974 = vrot.slane %v4973, 2
        %v4975 = vadd.f32 %v4973, %v4974
        %v4976 = vrot.slane %v4975, 1
        %v4977 = vadd.f32 %v4975, %v4976
        %s4978 = vtos %v4977
        %vm4979 = vcmp.eq.s32.totalorder %v3673, 0
        %v4980 = vstv %s4738
        %v4981 = vsel %vm4979, %v4980, 0.0
        %vm4982 = vcmp.eq.s32.totalorder %v3673, 1
        %v4983 = vstv %s4906
        %v4984 = vsel %vm4982, %v4983, 0.0
        %v4985 = vadd.f32 %v4981, %v4984
        %vm4986 = vcmp.eq.s32.totalorder %v3673, 2
        %v4987 = vstv %s4978
        %v4988 = vsel %vm4986, %v4987, 0.0
        %v4989 = vadd.f32 %v4985, %v4988
        %4990 = vst [vmem:[%s915] sm:$0x1] %v4989
        %s4991 = sand.u32 %s280, 1
        %s4992 = sand.u32 %s280, 1
        %s4993 = smul.addr %s4992, 128
        %s4994 = scalar_lea.vmem [#allocation6], %s4993
        %s4995 = sand.u32 %s308, 1
        %s4996 = scalar_lea.sflag [#allocation3], %s4995
        %s4997 = sand.u32 %s308, 1
        %s4998 = scalar_lea.vmem [#allocation7], %s4997
        // Predicated region
        $region117: #{tpu_custom_call.1} parent=107 // pred_check
          %p4999 = pneg %p290
        $region118: #{tpu_custom_call.1} parent=107 // pred_check_branch
          %5001 = sbr.rel (%p4999) target = $region120
        $region119: #{tpu_custom_call.1} parent=107 // pred_region
          %s5002 = smul.u32 32, %s32
          %s5003 = ssub.s32 63, %s5002
          %p5004 = scmp.lt.s32.totalorder %s5003, 32
          %s5005 = scalar_select %p5004, %s5003, 32
          %s5006 = smul.u32 64, %s5005
          %p5007 = scmp.ne.s32.totalorder 0, %s5006
          %s5008 = smul.addr %s31, 63
          %s5009 = sadd.s32 %s5002, %s5008
          %s5010 = smul.addr %s5009, 4
          %s5011 = scalar_lea.vmem %s10, %s5010
          // Predicated region
          $region121: #{tpu_custom_call.1} parent=119 // pred_check
            %p5012 = pneg %p5007
          $region122: #{tpu_custom_call.1} parent=119 // pred_check_branch
            %5014 = sbr.rel (%p5012) target = $region124
          $region123: #{tpu_custom_call.1} parent=119 // pred_region
            // Predicated region
            $region125: #{tpu_custom_call.1} parent=123 // pred_check
              _
            $region126: #{tpu_custom_call.1} parent=123 // pred_check_branch
              %5016 = sbr.rel target = $region128
            $region127: #{tpu_custom_call.1} parent=123 // pred_region
              // Predicated region
              $region147: #{tpu_custom_call.1} parent=127 // pred_check
                _
              $region148: #{tpu_custom_call.1} parent=127 // pred_check_branch
                %5127 = sbr.rel (0) target = $region150
              $region149: #{tpu_custom_call.1} parent=127 // pred_region
                %s5129 = sshrl.u32 %s5005, 5
                // While loop
                $region151: #{tpu_custom_call.1} parent=149 // loop_pre_header
                  _
                $region152: #{tpu_custom_call.1} parent=149 // loop_header
                  %s5131 = sphi 0, %s5133
                  %p5132 = scmp.ge.s32.totalorder %s5131, %s5129
                  %s5136 = sphi 0, %s5205
                  %s5137 = sphi %s4994, %s5208
                  %s5138 = sphi %s5011, %s5209
                $region153: #{tpu_custom_call.1} parent=149 // loop_header_branch
                  %5135 = sbr.rel (%p5132) target = $region157
                $region154: #{tpu_custom_call.1} parent=149 // loop_body
                  %v5139 = vld [vmem:[%s5137] sm:$0xf]
                  %5140 = vst [vmem:[%s5138] sm:$0xf] %v5139
                  %v5141 = vld [vmem:[%s5137 + $0x4] sm:$0xf]
                  %5142 = vst [vmem:[%s5138 + $0x4] sm:$0xf] %v5141
                  %v5143 = vld [vmem:[%s5137 + $0x8] sm:$0xf]
                  %5144 = vst [vmem:[%s5138 + $0x8] sm:$0xf] %v5143
                  %v5145 = vld [vmem:[%s5137 + $0xc] sm:$0xf]
                  %5146 = vst [vmem:[%s5138 + $0xc] sm:$0xf] %v5145
                  %v5147 = vld [vmem:[%s5137 + $0x10] sm:$0xf]
                  %5148 = vst [vmem:[%s5138 + $0x10] sm:$0xf] %v5147
                  %v5149 = vld [vmem:[%s5137 + $0x14] sm:$0xf]
                  %5150 = vst [vmem:[%s5138 + $0x14] sm:$0xf] %v5149
                  %v5151 = vld [vmem:[%s5137 + $0x18] sm:$0xf]
                  %5152 = vst [vmem:[%s5138 + $0x18] sm:$0xf] %v5151
                  %v5153 = vld [vmem:[%s5137 + $0x1c] sm:$0xf]
                  %5154 = vst [vmem:[%s5138 + $0x1c] sm:$0xf] %v5153
                  %v5155 = vld [vmem:[%s5137 + $0x20] sm:$0xf]
                  %5156 = vst [vmem:[%s5138 + $0x20] sm:$0xf] %v5155
                  %v5157 = vld [vmem:[%s5137 + $0x24] sm:$0xf]
                  %5158 = vst [vmem:[%s5138 + $0x24] sm:$0xf] %v5157
                  %v5159 = vld [vmem:[%s5137 + $0x28] sm:$0xf]
                  %5160 = vst [vmem:[%s5138 + $0x28] sm:$0xf] %v5159
                  %v5161 = vld [vmem:[%s5137 + $0x2c] sm:$0xf]
                  %5162 = vst [vmem:[%s5138 + $0x2c] sm:$0xf] %v5161
                  %v5163 = vld [vmem:[%s5137 + $0x30] sm:$0xf]
                  %5164 = vst [vmem:[%s5138 + $0x30] sm:$0xf] %v5163
                  %v5165 = vld [vmem:[%s5137 + $0x34] sm:$0xf]
                  %5166 = vst [vmem:[%s5138 + $0x34] sm:$0xf] %v5165
                  %v5167 = vld [vmem:[%s5137 + $0x38] sm:$0xf]
                  %5168 = vst [vmem:[%s5138 + $0x38] sm:$0xf] %v5167
                  %v5169 = vld [vmem:[%s5137 + $0x3c] sm:$0xf]
                  %5170 = vst [vmem:[%s5138 + $0x3c] sm:$0xf] %v5169
                  %v5171 = vld [vmem:[%s5137 + $0x40] sm:$0xf]
                  %5172 = vst [vmem:[%s5138 + $0x40] sm:$0xf] %v5171
                  %v5173 = vld [vmem:[%s5137 + $0x44] sm:$0xf]
                  %5174 = vst [vmem:[%s5138 + $0x44] sm:$0xf] %v5173
                  %v5175 = vld [vmem:[%s5137 + $0x48] sm:$0xf]
                  %5176 = vst [vmem:[%s5138 + $0x48] sm:$0xf] %v5175
                  %v5177 = vld [vmem:[%s5137 + $0x4c] sm:$0xf]
                  %5178 = vst [vmem:[%s5138 + $0x4c] sm:$0xf] %v5177
                  %v5179 = vld [vmem:[%s5137 + $0x50] sm:$0xf]
                  %5180 = vst [vmem:[%s5138 + $0x50] sm:$0xf] %v5179
                  %v5181 = vld [vmem:[%s5137 + $0x54] sm:$0xf]
                  %5182 = vst [vmem:[%s5138 + $0x54] sm:$0xf] %v5181
                  %v5183 = vld [vmem:[%s5137 + $0x58] sm:$0xf]
                  %5184 = vst [vmem:[%s5138 + $0x58] sm:$0xf] %v5183
                  %v5185 = vld [vmem:[%s5137 + $0x5c] sm:$0xf]
                  %5186 = vst [vmem:[%s5138 + $0x5c] sm:$0xf] %v5185
                  %v5187 = vld [vmem:[%s5137 + $0x60] sm:$0xf]
                  %5188 = vst [vmem:[%s5138 + $0x60] sm:$0xf] %v5187
                  %v5189 = vld [vmem:[%s5137 + $0x64] sm:$0xf]
                  %5190 = vst [vmem:[%s5138 + $0x64] sm:$0xf] %v5189
                  %v5191 = vld [vmem:[%s5137 + $0x68] sm:$0xf]
                  %5192 = vst [vmem:[%s5138 + $0x68] sm:$0xf] %v5191
                  %v5193 = vld [vmem:[%s5137 + $0x6c] sm:$0xf]
                  %5194 = vst [vmem:[%s5138 + $0x6c] sm:$0xf] %v5193
                  %v5195 = vld [vmem:[%s5137 + $0x70] sm:$0xf]
                  %5196 = vst [vmem:[%s5138 + $0x70] sm:$0xf] %v5195
                  %v5197 = vld [vmem:[%s5137 + $0x74] sm:$0xf]
                  %5198 = vst [vmem:[%s5138 + $0x74] sm:$0xf] %v5197
                  %v5199 = vld [vmem:[%s5137 + $0x78] sm:$0xf]
                  %5200 = vst [vmem:[%s5138 + $0x78] sm:$0xf] %v5199
                  %v5201 = vld [vmem:[%s5137 + $0x7c] sm:$0xf]
                  %5202 = vst [vmem:[%s5138 + $0x7c] sm:$0xf] %v5201
                  %s5203 = sadd.s32 1, %s5136
                  %p5204 = scmp.ge.s32.totalorder %s5203, %s5129
                  %s5205 = scalar_select %p5204, 0, %s5203
                  %s5206 = smul.u32 %s5205, 128
                  %s5207 = smul.u32 %s5205, 128
                  %s5208 = scalar_lea.vmem %s4994, %s5206 [#allocation6]
                  %s5209 = scalar_lea.vmem %s5011, %s5207
                $region155: #{tpu_custom_call.1} parent=149 // loop_footer
                  %s5133 = sadd.s32 %s5131, 1
                $region156: #{tpu_custom_call.1} parent=149 // loop_footer_branch
                  %5130 = sbr.rel target = $region152
                $region157: #{tpu_custom_call.1} parent=149 // loop_exit
                  _
                %s5210 = sshrl.u32 %s5005, 5
                %s5211 = sand.u32 %s5005, 31
                %s5212 = smul.u32 %s5210, 32
                %s5213 = smul.u32 4, %s5212
                %s5214 = scalar_lea.vmem %s4994, %s5213 [#allocation6]
                %s5215 = smul.u32 4, %s5212
                %s5216 = scalar_lea.vmem %s5011, %s5215
                // While loop
                $region158: #{tpu_custom_call.1} parent=149 // loop_pre_header
                  _
                $region159: #{tpu_custom_call.1} parent=149 // loop_header
                  %s5218 = sphi 0, %s5220
                  %p5219 = scmp.ge.s32.totalorder %s5218, %s5211
                  %s5223 = sphi 0, %s5230
                  %s5224 = sphi %s5214, %s5233
                  %s5225 = sphi %s5216, %s5234
                $region160: #{tpu_custom_call.1} parent=149 // loop_header_branch
                  %5222 = sbr.rel (%p5219) target = $region164
                $region161: #{tpu_custom_call.1} parent=149 // loop_body
                  %v5226 = vld [vmem:[%s5224] sm:$0xf]
                  %5227 = vst [vmem:[%s5225] sm:$0xf] %v5226
                  %s5228 = sadd.s32 1, %s5223
                  %p5229 = scmp.ge.s32.totalorder %s5228, %s5211
                  %s5230 = scalar_select %p5229, 0, %s5228
                  %s5231 = smul.u32 %s5230, 4
                  %s5232 = smul.u32 %s5230, 4
                  %s5233 = scalar_lea.vmem %s5214, %s5231 [#allocation6]
                  %s5234 = scalar_lea.vmem %s5216, %s5232
                $region162: #{tpu_custom_call.1} parent=149 // loop_footer
                  %s5220 = sadd.s32 %s5218, 1
                $region163: #{tpu_custom_call.1} parent=149 // loop_footer_branch
                  %5217 = sbr.rel target = $region159
                $region164: #{tpu_custom_call.1} parent=149 // loop_exit
                  _
              $region150: #{tpu_custom_call.1} parent=127 // pred_fallthru
                _
            $region128: #{tpu_custom_call.1} parent=123 // pred_fallthru
              _
            // Predicated region
            $region129: #{tpu_custom_call.1} parent=123 // pred_check
              _
            $region130: #{tpu_custom_call.1} parent=123 // pred_check_branch
              %5018 = sbr.rel (0) target = $region132
            $region131: #{tpu_custom_call.1} parent=123 // pred_region
              %s5020 = sshrl.u32 %s5005, 5
              // While loop
              $region133: #{tpu_custom_call.1} parent=131 // loop_pre_header
                _
              $region134: #{tpu_custom_call.1} parent=131 // loop_header
                %s5022 = sphi 0, %s5024
                %p5023 = scmp.ge.s32.totalorder %s5022, %s5020
                %s5027 = sphi 0, %s5096
                %s5028 = sphi %s4994, %s5099
                %s5029 = sphi %s5011, %s5100
              $region135: #{tpu_custom_call.1} parent=131 // loop_header_branch
                %5026 = sbr.rel (%p5023) target = $region139
              $region136: #{tpu_custom_call.1} parent=131 // loop_body
                %v5030 = vld [vmem:[%s5028] sm:$0xf]
                %5031 = vst [vmem:[%s5029] sm:$0xf] %v5030
                %v5032 = vld [vmem:[%s5028 + $0x4] sm:$0xf]
                %5033 = vst [vmem:[%s5029 + $0x4] sm:$0xf] %v5032
                %v5034 = vld [vmem:[%s5028 + $0x8] sm:$0xf]
                %5035 = vst [vmem:[%s5029 + $0x8] sm:$0xf] %v5034
                %v5036 = vld [vmem:[%s5028 + $0xc] sm:$0xf]
                %5037 = vst [vmem:[%s5029 + $0xc] sm:$0xf] %v5036
                %v5038 = vld [vmem:[%s5028 + $0x10] sm:$0xf]
                %5039 = vst [vmem:[%s5029 + $0x10] sm:$0xf] %v5038
                %v5040 = vld [vmem:[%s5028 + $0x14] sm:$0xf]
                %5041 = vst [vmem:[%s5029 + $0x14] sm:$0xf] %v5040
                %v5042 = vld [vmem:[%s5028 + $0x18] sm:$0xf]
                %5043 = vst [vmem:[%s5029 + $0x18] sm:$0xf] %v5042
                %v5044 = vld [vmem:[%s5028 + $0x1c] sm:$0xf]
                %5045 = vst [vmem:[%s5029 + $0x1c] sm:$0xf] %v5044
                %v5046 = vld [vmem:[%s5028 + $0x20] sm:$0xf]
                %5047 = vst [vmem:[%s5029 + $0x20] sm:$0xf] %v5046
                %v5048 = vld [vmem:[%s5028 + $0x24] sm:$0xf]
                %5049 = vst [vmem:[%s5029 + $0x24] sm:$0xf] %v5048
                %v5050 = vld [vmem:[%s5028 + $0x28] sm:$0xf]
                %5051 = vst [vmem:[%s5029 + $0x28] sm:$0xf] %v5050
                %v5052 = vld [vmem:[%s5028 + $0x2c] sm:$0xf]
                %5053 = vst [vmem:[%s5029 + $0x2c] sm:$0xf] %v5052
                %v5054 = vld [vmem:[%s5028 + $0x30] sm:$0xf]
                %5055 = vst [vmem:[%s5029 + $0x30] sm:$0xf] %v5054
                %v5056 = vld [vmem:[%s5028 + $0x34] sm:$0xf]
                %5057 = vst [vmem:[%s5029 + $0x34] sm:$0xf] %v5056
                %v5058 = vld [vmem:[%s5028 + $0x38] sm:$0xf]
                %5059 = vst [vmem:[%s5029 + $0x38] sm:$0xf] %v5058
                %v5060 = vld [vmem:[%s5028 + $0x3c] sm:$0xf]
                %5061 = vst [vmem:[%s5029 + $0x3c] sm:$0xf] %v5060
                %v5062 = vld [vmem:[%s5028 + $0x40] sm:$0xf]
                %5063 = vst [vmem:[%s5029 + $0x40] sm:$0xf] %v5062
                %v5064 = vld [vmem:[%s5028 + $0x44] sm:$0xf]
                %5065 = vst [vmem:[%s5029 + $0x44] sm:$0xf] %v5064
                %v5066 = vld [vmem:[%s5028 + $0x48] sm:$0xf]
                %5067 = vst [vmem:[%s5029 + $0x48] sm:$0xf] %v5066
                %v5068 = vld [vmem:[%s5028 + $0x4c] sm:$0xf]
                %5069 = vst [vmem:[%s5029 + $0x4c] sm:$0xf] %v5068
                %v5070 = vld [vmem:[%s5028 + $0x50] sm:$0xf]
                %5071 = vst [vmem:[%s5029 + $0x50] sm:$0xf] %v5070
                %v5072 = vld [vmem:[%s5028 + $0x54] sm:$0xf]
                %5073 = vst [vmem:[%s5029 + $0x54] sm:$0xf] %v5072
                %v5074 = vld [vmem:[%s5028 + $0x58] sm:$0xf]
                %5075 = vst [vmem:[%s5029 + $0x58] sm:$0xf] %v5074
                %v5076 = vld [vmem:[%s5028 + $0x5c] sm:$0xf]
                %5077 = vst [vmem:[%s5029 + $0x5c] sm:$0xf] %v5076
                %v5078 = vld [vmem:[%s5028 + $0x60] sm:$0xf]
                %5079 = vst [vmem:[%s5029 + $0x60] sm:$0xf] %v5078
                %v5080 = vld [vmem:[%s5028 + $0x64] sm:$0xf]
                %5081 = vst [vmem:[%s5029 + $0x64] sm:$0xf] %v5080
                %v5082 = vld [vmem:[%s5028 + $0x68] sm:$0xf]
                %5083 = vst [vmem:[%s5029 + $0x68] sm:$0xf] %v5082
                %v5084 = vld [vmem:[%s5028 + $0x6c] sm:$0xf]
                %5085 = vst [vmem:[%s5029 + $0x6c] sm:$0xf] %v5084
                %v5086 = vld [vmem:[%s5028 + $0x70] sm:$0xf]
                %5087 = vst [vmem:[%s5029 + $0x70] sm:$0xf] %v5086
                %v5088 = vld [vmem:[%s5028 + $0x74] sm:$0xf]
                %5089 = vst [vmem:[%s5029 + $0x74] sm:$0xf] %v5088
                %v5090 = vld [vmem:[%s5028 + $0x78] sm:$0xf]
                %5091 = vst [vmem:[%s5029 + $0x78] sm:$0xf] %v5090
                %v5092 = vld [vmem:[%s5028 + $0x7c] sm:$0xf]
                %5093 = vst [vmem:[%s5029 + $0x7c] sm:$0xf] %v5092
                %s5094 = sadd.s32 1, %s5027
                %p5095 = scmp.ge.s32.totalorder %s5094, %s5020
                %s5096 = scalar_select %p5095, 0, %s5094
                %s5097 = smul.u32 %s5096, 128
                %s5098 = smul.u32 %s5096, 128
                %s5099 = scalar_lea.vmem %s4994, %s5097 [#allocation6]
                %s5100 = scalar_lea.vmem %s5011, %s5098
              $region137: #{tpu_custom_call.1} parent=131 // loop_footer
                %s5024 = sadd.s32 %s5022, 1
              $region138: #{tpu_custom_call.1} parent=131 // loop_footer_branch
                %5021 = sbr.rel target = $region134
              $region139: #{tpu_custom_call.1} parent=131 // loop_exit
                _
              %s5101 = sshrl.u32 %s5005, 5
              %s5102 = sand.u32 %s5005, 31
              %s5103 = smul.u32 %s5101, 32
              %s5104 = smul.u32 4, %s5103
              %s5105 = scalar_lea.vmem %s4994, %s5104 [#allocation6]
              %s5106 = smul.u32 4, %s5103
              %s5107 = scalar_lea.vmem %s5011, %s5106
              // While loop
              $region140: #{tpu_custom_call.1} parent=131 // loop_pre_header
                _
              $region141: #{tpu_custom_call.1} parent=131 // loop_header
                %s5109 = sphi 0, %s5111
                %p5110 = scmp.ge.s32.totalorder %s5109, %s5102
                %s5114 = sphi 0, %s5121
                %s5115 = sphi %s5105, %s5124
                %s5116 = sphi %s5107, %s5125
              $region142: #{tpu_custom_call.1} parent=131 // loop_header_branch
                %5113 = sbr.rel (%p5110) target = $region146
              $region143: #{tpu_custom_call.1} parent=131 // loop_body
                %v5117 = vld [vmem:[%s5115] sm:$0xf]
                %5118 = vst [vmem:[%s5116] sm:$0xf] %v5117
                %s5119 = sadd.s32 1, %s5114
                %p5120 = scmp.ge.s32.totalorder %s5119, %s5102
                %s5121 = scalar_select %p5120, 0, %s5119
                %s5122 = smul.u32 %s5121, 4
                %s5123 = smul.u32 %s5121, 4
                %s5124 = scalar_lea.vmem %s5105, %s5122 [#allocation6]
                %s5125 = scalar_lea.vmem %s5107, %s5123
              $region144: #{tpu_custom_call.1} parent=131 // loop_footer
                %s5111 = sadd.s32 %s5109, 1
              $region145: #{tpu_custom_call.1} parent=131 // loop_footer_branch
                %5108 = sbr.rel target = $region141
              $region146: #{tpu_custom_call.1} parent=131 // loop_exit
                _
            $region132: #{tpu_custom_call.1} parent=123 // pred_fallthru
              _
          $region124: #{tpu_custom_call.1} parent=119 // pred_fallthru
            _
          %5235 = vnop
        $region120: #{tpu_custom_call.1} parent=107 // pred_fallthru
          _
        // Predicated region
        $region165: #{tpu_custom_call.1} parent=107 // pred_check
          %p5236 = pneg %p318
        $region166: #{tpu_custom_call.1} parent=107 // pred_check_branch
          %5238 = sbr.rel (%p5236) target = $region168
        $region167: #{tpu_custom_call.1} parent=107 // pred_region
          %s5240 = ssub.s32 16, 16
          %5241 = vsyncadd %s4996, %s5240
          %s5242 = smul.addr %s31, 2
          %s5243 = sadd.s32 %s32, %s5242
          %s5244 = smul.addr %s5243, 16
          %s5245 = scalar_lea.hbm %s11, %s5244
          %s5247 = sshll.u32 %s4998, 4
          %s5248 = int_to_ptr.vmem [resolvable:$true] %s5247
          %5250 = dma.vmem_to_hbm [thread:$0]  %s5248, 16, %s5245, %s4996
        $region168: #{tpu_custom_call.1} parent=107 // pred_fallthru
          _
      $region108: #{tpu_custom_call.1} parent=5 // pred_fallthru
        _
      %p5251 = scmp.le.s32.totalorder 2, %s22
      // Predicated region
      $region169: #{tpu_custom_call.1} parent=5 // pred_check
        %p5252 = pneg %p5251
      $region170: #{tpu_custom_call.1} parent=5 // pred_check_branch
        %5254 = sbr.rel (%p5252) target = $region172
      $region171: #{tpu_custom_call.1} parent=5 // pred_region
        %s5255 = ssub.s32 %s22, 2
        // Predicated region
        $region173: #{tpu_custom_call.1} parent=171 // pred_check
          %p5256 = pneg %p296
        $region174: #{tpu_custom_call.1} parent=171 // pred_check_branch
          %5258 = sbr.rel (%p5256) target = $region176
        $region175: #{tpu_custom_call.1} parent=171 // pred_region
          %s5259 = sand.u32 %s281, 1
          %s5260 = sand.u32 %s281, 1
          %s5261 = smul.addr %s5260, 128
          %s5262 = scalar_lea.vmem [#allocation6], %s5261
        $region176: #{tpu_custom_call.1} parent=171 // pred_fallthru
          _
        // Predicated region
        $region177: #{tpu_custom_call.1} parent=171 // pred_check
          %p5263 = pneg %p324
        $region178: #{tpu_custom_call.1} parent=171 // pred_check_branch
          %5265 = sbr.rel (%p5263) target = $region180
        $region179: #{tpu_custom_call.1} parent=171 // pred_region
          %s5266 = sand.u32 %s309, 1
          %s5267 = scalar_lea.sflag [#allocation3], %s5266
          %s5268 = sand.u32 %s309, 1
          %s5269 = scalar_lea.vmem [#allocation7], %s5268
          %5270 = dma.done %s5267, 16
        $region180: #{tpu_custom_call.1} parent=171 // pred_fallthru
          _
      $region172: #{tpu_custom_call.1} parent=5 // pred_fallthru
        _
    $region6: #{tpu_custom_call.1} parent=1 // loop_footer
      %s26 = sadd.s32 1, %s22
    $region7: #{tpu_custom_call.1} parent=1 // loop_footer_branch
      %21 = sbr.rel target = $region3
    $region8: #{tpu_custom_call.1} parent=1 // loop_exit
      _
    %5271 = vsyncpa [#allocation3], 1
    %s5272 = scalar_lea.sflag [#allocation3], 1
    %5273 = vsyncpa %s5272, 1
    %5274 = vsyncpa [#allocation4], 1
    %s5275 = scalar_lea.sflag [#allocation4], 1
    %5276 = vsyncpa %s5275, 1

</llo_original>
